<compile_context>
chip_gen: v7x
topology: tpu7x:2x2x1
jax: 0.10.0
libtpu: 0.0.40
codegen_flags: <defaults>
</compile_context>

<pallas_src>
import jax
import jax.numpy as jnp
from jax.experimental import pallas as pl
from jax.experimental.pallas import tpu as pltpu

EPS = 1e-5
LANE = 128


def _round_up(x, m):
    return (x + m - 1) // m * m


def _tpu_config():
    """Generation-aware VMEM cap & tile preference."""
    try:
        kind = jax.devices()[0].device_kind.lower()
    except Exception:
        kind = ""
    if ("v5" in kind) or ("v6" in kind):          # 128 MiB physical VMEM
        return {"vmem": 96 * 1024 * 1024, "row_tile": 1024, "fin_tile": 1024}
    # v7x (64 MiB per TensorCore) and anything unknown: conservative.
    return {"vmem": 48 * 1024 * 1024, "row_tile": 512, "fin_tile": 512}


def _pick_tile(s, pref):
    """Largest divisor of s that is <= pref (prefer sublane multiples).

    Never exceeds `pref`, so one block can never blow the VMEM budget.
    TODO(synk): pad s up to a tile multiple for prime-ish spatial sizes.
    """
    hi = max(1, min(pref, s))
    for t in range(hi, 7, -1):
        if s % t == 0 and t % 8 == 0:
            return t
    for t in range(hi, 0, -1):
        if s % t == 0:
            return t
    return 1


# ----------------------------- Pallas kernels -----------------------------

def _matmul_stats_kernel(x_ref, w_ref, o_ref, psum_ref, psq_ref):
    # (tm, K) bf16 @ (K, CP) bf16 -> f32 on the MXU, plus per-tile partial
    # per-channel sum / sum-of-squares (fused stats: no extra HBM pass).
    acc = jnp.dot(x_ref[...], w_ref[...], preferred_element_type=jnp.float32)
    o_ref[...] = acc
    psum_ref[...] = jnp.sum(acc, axis=0, keepdims=True)[None]
    psq_ref[...] = jnp.sum(acc * acc, axis=0, keepdims=True)[None]


def matmul_with_stats(x, w, tm, vmem_limit):
    M, K = x.shape
    C = w.shape[1]
    nt = M // tm
    return pl.pallas_call(
        _matmul_stats_kernel,
        out_shape=(jax.ShapeDtypeStruct((M, C), jnp.float32),
                   jax.ShapeDtypeStruct((nt, 1, C), jnp.float32),
                   jax.ShapeDtypeStruct((nt, 1, C), jnp.float32)),
        grid=(nt,),
        in_specs=[
            pl.BlockSpec((tm, K), lambda i: (i, 0)),
            pl.BlockSpec((K, C), lambda i: (0, 0)),     # weights stay resident
        ],
        out_specs=(pl.BlockSpec((tm, C), lambda i: (i, 0)),
                   pl.BlockSpec((1, 1, C), lambda i: (i, 0, 0)),
                   pl.BlockSpec((1, 1, C), lambda i: (i, 0, 0))),
        compiler_params=pltpu.CompilerParams(
            dimension_semantics=("parallel",),
            vmem_limit_bytes=vmem_limit,
        ),
    )(x, w)


def _affine_relu_kernel(x_ref, s_ref, t_ref, o_ref):
    # BN(affine-folded) + ReLU, cast to bf16 in-kernel (halves write traffic).
    o_ref[...] = jnp.maximum(
        x_ref[...] * s_ref[...] + t_ref[...], 0.0).astype(o_ref.dtype)


def affine_relu_bf16(x, scale, shift, tm, vmem_limit):
    M, C = x.shape
    return pl.pallas_call(
        _affine_relu_kernel,
        out_shape=jax.ShapeDtypeStruct((M, C), jnp.bfloat16),
        grid=(M // tm,),
        in_specs=[
            pl.BlockSpec((tm, C), lambda i: (i, 0)),
            pl.BlockSpec((1, C), lambda i: (0, 0)),
            pl.BlockSpec((1, C), lambda i: (0, 0)),
        ],
        out_specs=pl.BlockSpec((tm, C), lambda i: (i, 0)),
        compiler_params=pltpu.CompilerParams(
            dimension_semantics=("parallel",),
            vmem_limit_bytes=vmem_limit,
        ),
    )(x, scale, shift)


def _fin_apply_kernel(res_ref, y12_ref, s1_ref, s2_ref, sh_ref, o_ref):
    # ReLU( BN2(res) + IN(skip) ) folded into a single affine form; the skip
    # values are read directly from y12 (columns [0:Cout]); s2 is zero on all
    # other lanes so the conv1 half contributes nothing.
    o_ref[...] = jnp.maximum(
        res_ref[...] * s1_ref[...] + y12_ref[...] * s2_ref[...] + sh_ref[...],
        0.0,
    )


def finalize_apply(res, y12, s1, s2, sh, ts, vmem_limit):
    Nb, S, C = res.shape
    return pl.pallas_call(
        _fin_apply_kernel,
        out_shape=jax.ShapeDtypeStruct((Nb, S, C), jnp.float32),
        grid=(Nb, S // ts),
        in_specs=[
            pl.BlockSpec((1, ts, C), lambda n, s: (n, s, 0)),
            pl.BlockSpec((1, ts, C), lambda n, s: (n, s, 0)),
            pl.BlockSpec((1, 1, C), lambda n, s: (0, 0, 0)),
            pl.BlockSpec((1, 1, C), lambda n, s: (n, 0, 0)),
            pl.BlockSpec((1, 1, C), lambda n, s: (n, 0, 0)),
        ],
        out_specs=pl.BlockSpec((1, ts, C), lambda n, s: (n, s, 0)),
        compiler_params=pltpu.CompilerParams(
            dimension_semantics=("parallel", "parallel"),
            vmem_limit_bytes=vmem_limit,
        ),
    )(res, y12, s1, s2, sh)


# ----------------------------- conv3d glue (plain JAX) ----------------------

def _im2col_3d(x, stride, k_pad):
    # x: (N, D, H, W, C) bf16, kernel 3x3x3, padding 1.
    # TODO(synk): fuse this gather into the matmul kernel (tap grid axis).
    N, D, H, W, C = x.shape
    xp = jnp.pad(x, ((0, 0), (1, 1), (1, 1), (1, 1), (0, 0)))
    OD = (D + 2 - 3) // stride + 1
    OH = (H + 2 - 3) // stride + 1
    OW = (W + 2 - 3) // stride + 1
    cols = []
    for kd in range(3):
        for kh in range(3):
            for kw in range(3):
                sl = xp[:, kd: kd + stride * (OD - 1) + 1: stride,
                           kh: kh + stride * (OH - 1) + 1: stride,
                           kw: kw + stride * (OW - 1) + 1: stride, :]
                cols.append(sl)
    patches = jnp.stack(cols, axis=4)                  # (N,OD,OH,OW,27,C)
    patches = patches.reshape(N * OD * OH * OW, 27 * C)
    if k_pad > 27 * C:
        patches = jnp.pad(patches, ((0, 0), (0, k_pad - 27 * C)))
    return patches, (N, OD, OH, OW)


def _prep_weight(w, k_pad, c_pad):
    # w: (Cout, Cin, 3, 3, 3) PyTorch layout; flatten (kd,kh,kw) major,
    # cin minor to match patch order; zero-pad K and Cout for lane density.
    # Conv biases are intentionally dropped: they cancel exactly in the
    # train-mode BatchNorm / InstanceNorm that immediately follows each conv.
    Cout, Cin = w.shape[0], w.shape[1]
    wm = jnp.transpose(w, (2, 3, 4, 1, 0)).reshape(27 * Cin, Cout)
    wm = jnp.pad(wm, ((0, k_pad - 27 * Cin), (0, c_pad - Cout)))
    return wm.astype(jnp.bfloat16)


# ----------------------------- full forward ---------------------------------

def resblock_v2_forward(x_ncdhw, p):
    cfg = _tpu_config()
    vmem = cfg["vmem"]

    x = jnp.transpose(x_ncdhw, (0, 2, 3, 4, 1)).astype(jnp.float32)   # NDHWC
    Nb, D, H, W, Cin = x.shape
    Cout = p["w1"].shape[0]
    CP = _round_up(max(2 * Cout, LANE), LANE)          # lane-dense channels

    # ---- fused stride-2 convs sharing one im2col:
    #      skip conv -> columns [0:Cout], residual conv1 -> [Cout:2*Cout] ----
    K1p = _round_up(27 * Cin, LANE)
    patches1, (Nb, OD, OH, OW) = _im2col_3d(x.astype(jnp.bfloat16), 2, K1p)
    w12 = jnp.concatenate([p["ws"], p["w1"]], axis=0)  # (2*Cout, Cin, 3,3,3)
    w12m = _prep_weight(w12, K1p, CP)
    S = OD * OH * OW
    M1 = Nb * S
    tm = _pick_tile(S, cfg["row_tile"])                # tm | S: tiles never straddle batches
    tiles_per_b = S // tm
    y12, p1_sum, p1_sq = matmul_with_stats(patches1, w12m, tm, vmem)

    # ---- BatchNorm1 (batch stats) + ReLU on the conv1 half, bf16 out -------
    mean1 = jnp.sum(p1_sum, axis=(0, 1)) / M1                       # (CP,)
    var1 = jnp.maximum(jnp.sum(p1_sq, axis=(0, 1)) / M1 - mean1 * mean1, 0.0)
    gamma1 = jnp.zeros((CP,), jnp.float32).at[Cout:2 * Cout].set(p["bn1_g"])
    beta1 = jnp.zeros((CP,), jnp.float32).at[Cout:2 * Cout].set(p["bn1_b"])
    scale1 = gamma1 * jax.lax.rsqrt(var1 + EPS)
    shift1 = beta1 - mean1 * scale1
    r1p = affine_relu_bf16(y12, scale1.reshape(1, CP), shift1.reshape(1, CP),
                           tm, vmem)                                 # (M1, CP) bf16

    # ---- second conv, stride 1, on the real conv1 channels -----------------
    r1 = r1p[:, Cout:2 * Cout].reshape(Nb, OD, OH, OW, Cout)
    K2p = _round_up(27 * Cout, LANE)
    patches2, _ = _im2col_3d(r1, 1, K2p)
    w2m = _prep_weight(p["w2"], K2p, CP)
    r2, p2_sum, p2_sq = matmul_with_stats(patches2, w2m, tm, vmem)   # (M1, CP)

    # ---- finalize: ReLU( BN2(res) + IN(skip) ), stats from fused partials --
    # BatchNorm3d (train mode): reduce over batch + spatial, per channel.
    bmean = jnp.sum(p2_sum, axis=(0, 1)) / M1
    bvar = jnp.maximum(jnp.sum(p2_sq, axis=(0, 1)) / M1 - bmean * bmean, 0.0)
    gamma2 = jnp.zeros((CP,), jnp.float32).at[:Cout].set(p["bn2_g"])
    beta2 = jnp.zeros((CP,), jnp.float32).at[:Cout].set(p["bn2_b"])
    s1v = gamma2 * jax.lax.rsqrt(bvar + EPS)                         # (CP,)
    # InstanceNorm3d (no affine): per-(batch, channel) spatial stats of the
    # skip columns [0:Cout], recovered from the first matmul's partials.
    imean = p1_sum.reshape(Nb, tiles_per_b, CP).sum(axis=1) / S      # (Nb, CP)
    ivar = jnp.maximum(
        p1_sq.reshape(Nb, tiles_per_b, CP).sum(axis=1) / S - imean * imean, 0.0)
    in_mask = jnp.zeros((CP,), jnp.float32).at[:Cout].set(1.0)
    s2v = in_mask * jax.lax.rsqrt(ivar + EPS)                        # (Nb, CP)
    shv = (beta2 - bmean * s1v) - imean * s2v                        # (Nb, CP)

    ts = _pick_tile(S, cfg["fin_tile"])
    out = finalize_apply(
        r2.reshape(Nb, S, CP), y12.reshape(Nb, S, CP),
        s1v.reshape(1, 1, CP), s2v.reshape(Nb, 1, CP), shv.reshape(Nb, 1, CP),
        ts, vmem)                                                    # (Nb, S, CP)

    # Module contract is NCDHW; if the next block accepts NDHWC this slice +
    # transpose could be skipped entirely (kept here for semantic parity).
    out = out.reshape(Nb, OD, OH, OW, CP)[..., :Cout]
    return jnp.transpose(out, (0, 4, 1, 2, 3))


# ----------------------------- plain-JAX reference ---------------------------

def _ref_conv(x, w, b, stride):
    y = jax.lax.conv_general_dilated(
        x.astype(jnp.bfloat16), w.astype(jnp.bfloat16),
        window_strides=(stride,) * 3, padding=[(1, 1)] * 3,
        dimension_numbers=("NCDHW", "OIDHW", "NCDHW"),
        preferred_element_type=jnp.float32)
    return y + b.reshape(1, -1, 1, 1, 1)


def reference_forward(x, p):
    # Mirrors the PyTorch module in train mode (batch/instance statistics).
    r = _ref_conv(x, p["w1"], p["b1"], 2)
    m = r.mean(axis=(0, 2, 3, 4), keepdims=True)
    v = r.var(axis=(0, 2, 3, 4), keepdims=True)
    r = (r - m) * jax.lax.rsqrt(v + EPS)
    r = r * p["bn1_g"].reshape(1, -1, 1, 1, 1) + p["bn1_b"].reshape(1, -1, 1, 1, 1)
    r = jnp.maximum(r, 0.0)
    r2 = _ref_conv(r, p["w2"], p["b2"], 1)
    m2 = r2.mean(axis=(0, 2, 3, 4), keepdims=True)
    v2 = r2.var(axis=(0, 2, 3, 4), keepdims=True)
    r2 = (r2 - m2) * jax.lax.rsqrt(v2 + EPS)
    r2 = r2 * p["bn2_g"].reshape(1, -1, 1, 1, 1) + p["bn2_b"].reshape(1, -1, 1, 1, 1)
    s = _ref_conv(x, p["ws"], p["bs"], 2)
    im = s.mean(axis=(2, 3, 4), keepdims=True)
    iv = s.var(axis=(2, 3, 4), keepdims=True)
    s = (s - im) * jax.lax.rsqrt(iv + EPS)
    return jnp.maximum(r2 + s, 0.0)


# ----------------------------- driver ---------------------------------------

if __name__ == "__main__":
    key = jax.random.PRNGKey(0)
    keys = jax.random.split(key, 7)
    Nb, Cin, Cout, Dsp = 2, 4, 8, 16

    params = {
        "w1": 0.1 * jax.random.normal(keys[0], (Cout, Cin, 3, 3, 3), jnp.float32),
        "b1": 0.1 * jax.random.normal(keys[1], (Cout,), jnp.float32),
        "w2": 0.1 * jax.random.normal(keys[2], (Cout, Cout, 3, 3, 3), jnp.float32),
        "b2": 0.1 * jax.random.normal(keys[3], (Cout,), jnp.float32),
        "ws": 0.1 * jax.random.normal(keys[4], (Cout, Cin, 3, 3, 3), jnp.float32),
        "bs": 0.1 * jax.random.normal(keys[5], (Cout,), jnp.float32),
        # BatchNorm3d default init: weight=1, bias=0. Running stats are not
        # updated here (forward output does not depend on them in train mode).
        "bn1_g": jnp.ones((Cout,), jnp.float32),
        "bn1_b": jnp.zeros((Cout,), jnp.float32),
        "bn2_g": jnp.ones((Cout,), jnp.float32),
        "bn2_b": jnp.zeros((Cout,), jnp.float32),
    }

    x = jax.random.normal(keys[6], (Nb, Cin, Dsp, Dsp, Dsp), jnp.float32)

    out = jax.jit(resblock_v2_forward)(x, params)
    out = jax.block_until_ready(out)
    ref = jax.block_until_ready(jax.jit(reference_forward)(x, params))

    assert out.shape == (Nb, Cout, Dsp // 2, Dsp // 2, Dsp // 2), out.shape
    assert bool(jnp.all(jnp.isfinite(out)))
    assert bool(jnp.all(out >= 0.0))                     # final ReLU
    max_diff = float(jnp.max(jnp.abs(out - ref)))
    assert max_diff < 0.05, f"mismatch vs reference: {max_diff}"
    print("KERNEL_OK")
</pallas_src>

<mosaic_0001>
module attributes {stable_mosaic.version = 11 : i64} {
  func.func @_affine_relu_kernel(%arg0: i32, %arg1: memref<512x128xf32, #tpu.memory_space<vmem>>, %arg2: memref<1x128xf32, #tpu.memory_space<vmem>>, %arg3: memref<1x128xf32, #tpu.memory_space<vmem>>, %arg4: memref<512x128xbf16, #tpu.memory_space<vmem>>) attributes {dimension_semantics = [#tpu.dimension_semantics<parallel>], iteration_bounds = array<i64: 2>, scalar_prefetch = 0 : i64, scratch_operands = 0 : i64, tpu.core_type = #tpu.core_type<tc>, window_params = [{transform_indices = @transform_0, window_bounds = array<i64: 512, 128>}, {pipeline_mode = #tpu.pipeline_mode<synchronous>, transform_indices = @transform_1, window_bounds = array<i64: 1, 128>}, {pipeline_mode = #tpu.pipeline_mode<synchronous>, transform_indices = @transform_2, window_bounds = array<i64: 1, 128>}, {transform_indices = @transform_3, window_bounds = array<i64: 512, 128>}]} {
    %c0 = arith.constant 0 : index
    %c0_0 = arith.constant 0 : index
    %0 = vector.load %arg1[%c0, %c0_0] : memref<512x128xf32, #tpu.memory_space<vmem>>, vector<512x128xf32>
    %c0_1 = arith.constant 0 : index
    %c0_2 = arith.constant 0 : index
    %1 = vector.load %arg2[%c0_1, %c0_2] : memref<1x128xf32, #tpu.memory_space<vmem>>, vector<1x128xf32>
    %2 = vector.broadcast %1 : vector<1x128xf32> to vector<512x128xf32>
    %3 = arith.mulf %0, %2 : vector<512x128xf32>
    %c0_3 = arith.constant 0 : index
    %c0_4 = arith.constant 0 : index
    %4 = vector.load %arg3[%c0_3, %c0_4] : memref<1x128xf32, #tpu.memory_space<vmem>>, vector<1x128xf32>
    %5 = vector.broadcast %4 : vector<1x128xf32> to vector<512x128xf32>
    %6 = arith.addf %3, %5 : vector<512x128xf32>
    %cst = arith.constant 0.000000e+00 : f32
    %7 = vector.broadcast %cst : f32 to vector<512x128xf32>
    %8 = arith.maximumf %6, %7 : vector<512x128xf32>
    %9 = arith.truncf %8 : vector<512x128xf32> to vector<512x128xbf16>
    %c0_5 = arith.constant 0 : index
    %c0_6 = arith.constant 0 : index
    %10 = vector.load %arg4[%c0_5, %c0_6] : memref<512x128xbf16, #tpu.memory_space<vmem>>, vector<512x128xbf16>
    tpu.vector_store %arg4[%c0_5, %c0_6], %9 {strides = array<i32>} : memref<512x128xbf16, #tpu.memory_space<vmem>>, vector<512x128xbf16>,
    return
  }
  func.func @transform_0(%arg0: i32) -> (i32, i32) {
    %c0_i32 = arith.constant 0 : i32
    %c0_i32_0 = arith.constant 0 : i32
    return %arg0, %c0_i32 : i32, i32
  }
  func.func @transform_1(%arg0: i32) -> (i32, i32) {
    %c0_i32 = arith.constant 0 : i32
    %c0_i32_0 = arith.constant 0 : i32
    %c0_i32_1 = arith.constant 0 : i32
    return %c0_i32, %c0_i32_0 : i32, i32
  }
  func.func @transform_2(%arg0: i32) -> (i32, i32) {
    %c0_i32 = arith.constant 0 : i32
    %c0_i32_0 = arith.constant 0 : i32
    %c0_i32_1 = arith.constant 0 : i32
    return %c0_i32, %c0_i32_0 : i32, i32
  }
  func.func @transform_3(%arg0: i32) -> (i32, i32) {
    %c0_i32 = arith.constant 0 : i32
    %c0_i32_0 = arith.constant 0 : i32
    return %arg0, %c0_i32 : i32, i32
  }
}

module attributes {stable_mosaic.version = 11 : i64} {
  func.func @_matmul_stats_kernel(%arg0: i32, %arg1: memref<512x128xbf16, #tpu.memory_space<vmem>>, %arg2: memref<128x128xbf16, #tpu.memory_space<vmem>>, %arg3: memref<512x128xf32, #tpu.memory_space<vmem>>, %arg4: memref<1x1x128xf32, #tpu.memory_space<vmem>>, %arg5: memref<1x1x128xf32, #tpu.memory_space<vmem>>) attributes {dimension_semantics = [#tpu.dimension_semantics<parallel>], iteration_bounds = array<i64: 2>, scalar_prefetch = 0 : i64, scratch_operands = 0 : i64, tpu.core_type = #tpu.core_type<tc>, window_params = [{transform_indices = @transform_0, window_bounds = array<i64: 512, 128>}, {pipeline_mode = #tpu.pipeline_mode<synchronous>, transform_indices = @transform_1, window_bounds = array<i64: 128, 128>}, {transform_indices = @transform_2, window_bounds = array<i64: 512, 128>}, {transform_indices = @transform_3, window_bounds = array<i64: 1, 1, 128>}, {transform_indices = @transform_4, window_bounds = array<i64: 1, 1, 128>}]} {
    %c0 = arith.constant 0 : index
    %c0_0 = arith.constant 0 : index
    %0 = vector.load %arg1[%c0, %c0_0] : memref<512x128xbf16, #tpu.memory_space<vmem>>, vector<512x128xbf16>
    %c0_1 = arith.constant 0 : index
    %c0_2 = arith.constant 0 : index
    %1 = vector.load %arg2[%c0_1, %c0_2] : memref<128x128xbf16, #tpu.memory_space<vmem>>, vector<128x128xbf16>
    %cst = arith.constant dense<0.000000e+00> : vector<512x128xf32>
    %2 = tpu.matmul %0, %1, %cst {dimension_numbers = #tpu.dot_dimension_numbers<[1], [0], [0], [1], [0, 0, 1, 1], [], []>} : vector<512x128xbf16>, vector<128x128xbf16>, vector<512x128xf32> -> vector<512x128xf32>
    %c0_3 = arith.constant 0 : index
    %c0_4 = arith.constant 0 : index
    %3 = vector.load %arg3[%c0_3, %c0_4] : memref<512x128xf32, #tpu.memory_space<vmem>>, vector<512x128xf32>
    tpu.vector_store %arg3[%c0_3, %c0_4], %2 {strides = array<i32>} : memref<512x128xf32, #tpu.memory_space<vmem>>, vector<512x128xf32>,
    %cst_5 = arith.constant dense<0.000000e+00> : vector<128xf32>
    %4 = vector.multi_reduction <add>, %2, %cst_5 [0] : vector<512x128xf32> to vector<128xf32>
    %5 = vector.shape_cast %4 : vector<128xf32> to vector<1x128xf32>
    %6 = vector.shape_cast %5 : vector<1x128xf32> to vector<1x1x128xf32>
    %c0_6 = arith.constant 0 : index
    %c0_7 = arith.constant 0 : index
    %c0_8 = arith.constant 0 : index
    %7 = vector.load %arg4[%c0_6, %c0_7, %c0_8] : memref<1x1x128xf32, #tpu.memory_space<vmem>>, vector<1x1x128xf32>
    tpu.vector_store %arg4[%c0_6, %c0_7, %c0_8], %6 {strides = array<i32>} : memref<1x1x128xf32, #tpu.memory_space<vmem>>, vector<1x1x128xf32>,
    %8 = arith.mulf %2, %2 : vector<512x128xf32>
    %cst_9 = arith.constant dense<0.000000e+00> : vector<128xf32>
    %9 = vector.multi_reduction <add>, %8, %cst_9 [0] : vector<512x128xf32> to vector<128xf32>
    %10 = vector.shape_cast %9 : vector<128xf32> to vector<1x128xf32>
    %11 = vector.shape_cast %10 : vector<1x128xf32> to vector<1x1x128xf32>
    %c0_10 = arith.constant 0 : index
    %c0_11 = arith.constant 0 : index
    %c0_12 = arith.constant 0 : index
    %12 = vector.load %arg5[%c0_10, %c0_11, %c0_12] : memref<1x1x128xf32, #tpu.memory_space<vmem>>, vector<1x1x128xf32>
    tpu.vector_store %arg5[%c0_10, %c0_11, %c0_12], %11 {strides = array<i32>} : memref<1x1x128xf32, #tpu.memory_space<vmem>>, vector<1x1x128xf32>,
    return
  }
  func.func @transform_0(%arg0: i32) -> (i32, i32) {
    %c0_i32 = arith.constant 0 : i32
    %c0_i32_0 = arith.constant 0 : i32
    return %arg0, %c0_i32 : i32, i32
  }
  func.func @transform_1(%arg0: i32) -> (i32, i32) {
    %c0_i32 = arith.constant 0 : i32
    %c0_i32_0 = arith.constant 0 : i32
    %c0_i32_1 = arith.constant 0 : i32
    return %c0_i32, %c0_i32_0 : i32, i32
  }
  func.func @transform_2(%arg0: i32) -> (i32, i32) {
    %c0_i32 = arith.constant 0 : i32
    %c0_i32_0 = arith.constant 0 : i32
    return %arg0, %c0_i32 : i32, i32
  }
  func.func @transform_3(%arg0: i32) -> (i32, i32, i32) {
    %c0_i32 = arith.constant 0 : i32
    %c0_i32_0 = arith.constant 0 : i32
    %c0_i32_1 = arith.constant 0 : i32
    return %arg0, %c0_i32, %c0_i32_0 : i32, i32, i32
  }
  func.func @transform_4(%arg0: i32) -> (i32, i32, i32) {
    %c0_i32 = arith.constant 0 : i32
    %c0_i32_0 = arith.constant 0 : i32
    %c0_i32_1 = arith.constant 0 : i32
    return %arg0, %c0_i32, %c0_i32_0 : i32, i32, i32
  }
}

module attributes {stable_mosaic.version = 11 : i64} {
  func.func @_matmul_stats_kernel(%arg0: i32, %arg1: memref<512x256xbf16, #tpu.memory_space<vmem>>, %arg2: memref<256x128xbf16, #tpu.memory_space<vmem>>, %arg3: memref<512x128xf32, #tpu.memory_space<vmem>>, %arg4: memref<1x1x128xf32, #tpu.memory_space<vmem>>, %arg5: memref<1x1x128xf32, #tpu.memory_space<vmem>>) attributes {dimension_semantics = [#tpu.dimension_semantics<parallel>], iteration_bounds = array<i64: 2>, scalar_prefetch = 0 : i64, scratch_operands = 0 : i64, tpu.core_type = #tpu.core_type<tc>, window_params = [{transform_indices = @transform_0, window_bounds = array<i64: 512, 256>}, {pipeline_mode = #tpu.pipeline_mode<synchronous>, transform_indices = @transform_1, window_bounds = array<i64: 256, 128>}, {transform_indices = @transform_2, window_bounds = array<i64: 512, 128>}, {transform_indices = @transform_3, window_bounds = array<i64: 1, 1, 128>}, {transform_indices = @transform_4, window_bounds = array<i64: 1, 1, 128>}]} {
    %c0 = arith.constant 0 : index
    %c0_0 = arith.constant 0 : index
    %0 = vector.load %arg1[%c0, %c0_0] : memref<512x256xbf16, #tpu.memory_space<vmem>>, vector<512x256xbf16>
    %c0_1 = arith.constant 0 : index
    %c0_2 = arith.constant 0 : index
    %1 = vector.load %arg2[%c0_1, %c0_2] : memref<256x128xbf16, #tpu.memory_space<vmem>>, vector<256x128xbf16>
    %cst = arith.constant dense<0.000000e+00> : vector<512x128xf32>
    %2 = tpu.matmul %0, %1, %cst {dimension_numbers = #tpu.dot_dimension_numbers<[1], [0], [0], [1], [0, 0, 1, 1], [], []>} : vector<512x256xbf16>, vector<256x128xbf16>, vector<512x128xf32> -> vector<512x128xf32>
    %c0_3 = arith.constant 0 : index
    %c0_4 = arith.constant 0 : index
    %3 = vector.load %arg3[%c0_3, %c0_4] : memref<512x128xf32, #tpu.memory_space<vmem>>, vector<512x128xf32>
    tpu.vector_store %arg3[%c0_3, %c0_4], %2 {strides = array<i32>} : memref<512x128xf32, #tpu.memory_space<vmem>>, vector<512x128xf32>,
    %cst_5 = arith.constant dense<0.000000e+00> : vector<128xf32>
    %4 = vector.multi_reduction <add>, %2, %cst_5 [0] : vector<512x128xf32> to vector<128xf32>
    %5 = vector.shape_cast %4 : vector<128xf32> to vector<1x128xf32>
    %6 = vector.shape_cast %5 : vector<1x128xf32> to vector<1x1x128xf32>
    %c0_6 = arith.constant 0 : index
    %c0_7 = arith.constant 0 : index
    %c0_8 = arith.constant 0 : index
    %7 = vector.load %arg4[%c0_6, %c0_7, %c0_8] : memref<1x1x128xf32, #tpu.memory_space<vmem>>, vector<1x1x128xf32>
    tpu.vector_store %arg4[%c0_6, %c0_7, %c0_8], %6 {strides = array<i32>} : memref<1x1x128xf32, #tpu.memory_space<vmem>>, vector<1x1x128xf32>,
    %8 = arith.mulf %2, %2 : vector<512x128xf32>
    %cst_9 = arith.constant dense<0.000000e+00> : vector<128xf32>
    %9 = vector.multi_reduction <add>, %8, %cst_9 [0] : vector<512x128xf32> to vector<128xf32>
    %10 = vector.shape_cast %9 : vector<128xf32> to vector<1x128xf32>
    %11 = vector.shape_cast %10 : vector<1x128xf32> to vector<1x1x128xf32>
    %c0_10 = arith.constant 0 : index
    %c0_11 = arith.constant 0 : index
    %c0_12 = arith.constant 0 : index
    %12 = vector.load %arg5[%c0_10, %c0_11, %c0_12] : memref<1x1x128xf32, #tpu.memory_space<vmem>>, vector<1x1x128xf32>
    tpu.vector_store %arg5[%c0_10, %c0_11, %c0_12], %11 {strides = array<i32>} : memref<1x1x128xf32, #tpu.memory_space<vmem>>, vector<1x1x128xf32>,
    return
  }
  func.func @transform_0(%arg0: i32) -> (i32, i32) {
    %c0_i32 = arith.constant 0 : i32
    %c0_i32_0 = arith.constant 0 : i32
    return %arg0, %c0_i32 : i32, i32
  }
  func.func @transform_1(%arg0: i32) -> (i32, i32) {
    %c0_i32 = arith.constant 0 : i32
    %c0_i32_0 = arith.constant 0 : i32
    %c0_i32_1 = arith.constant 0 : i32
    return %c0_i32, %c0_i32_0 : i32, i32
  }
  func.func @transform_2(%arg0: i32) -> (i32, i32) {
    %c0_i32 = arith.constant 0 : i32
    %c0_i32_0 = arith.constant 0 : i32
    return %arg0, %c0_i32 : i32, i32
  }
  func.func @transform_3(%arg0: i32) -> (i32, i32, i32) {
    %c0_i32 = arith.constant 0 : i32
    %c0_i32_0 = arith.constant 0 : i32
    %c0_i32_1 = arith.constant 0 : i32
    return %arg0, %c0_i32, %c0_i32_0 : i32, i32, i32
  }
  func.func @transform_4(%arg0: i32) -> (i32, i32, i32) {
    %c0_i32 = arith.constant 0 : i32
    %c0_i32_0 = arith.constant 0 : i32
    %c0_i32_1 = arith.constant 0 : i32
    return %arg0, %c0_i32, %c0_i32_0 : i32, i32, i32
  }
}

module attributes {stable_mosaic.version = 11 : i64} {
  func.func @_fin_apply_kernel(%arg0: i32, %arg1: i32, %arg2: memref<1x512x128xf32, #tpu.memory_space<vmem>>, %arg3: memref<1x512x128xf32, #tpu.memory_space<vmem>>, %arg4: memref<1x1x128xf32, #tpu.memory_space<vmem>>, %arg5: memref<1x1x128xf32, #tpu.memory_space<vmem>>, %arg6: memref<1x1x128xf32, #tpu.memory_space<vmem>>, %arg7: memref<1x512x128xf32, #tpu.memory_space<vmem>>) attributes {dimension_semantics = [#tpu.dimension_semantics<parallel>, #tpu.dimension_semantics<parallel>], iteration_bounds = array<i64: 2, 1>, scalar_prefetch = 0 : i64, scratch_operands = 0 : i64, tpu.core_type = #tpu.core_type<tc>, window_params = [{transform_indices = @transform_0, window_bounds = array<i64: 1, 512, 128>}, {transform_indices = @transform_1, window_bounds = array<i64: 1, 512, 128>}, {pipeline_mode = #tpu.pipeline_mode<synchronous>, transform_indices = @transform_2, window_bounds = array<i64: 1, 1, 128>}, {transform_indices = @transform_3, window_bounds = array<i64: 1, 1, 128>}, {transform_indices = @transform_4, window_bounds = array<i64: 1, 1, 128>}, {transform_indices = @transform_5, window_bounds = array<i64: 1, 512, 128>}]} {
    %c0 = arith.constant 0 : index
    %c0_0 = arith.constant 0 : index
    %c0_1 = arith.constant 0 : index
    %0 = vector.load %arg2[%c0, %c0_0, %c0_1] : memref<1x512x128xf32, #tpu.memory_space<vmem>>, vector<1x512x128xf32>
    %c0_2 = arith.constant 0 : index
    %c0_3 = arith.constant 0 : index
    %c0_4 = arith.constant 0 : index
    %1 = vector.load %arg4[%c0_2, %c0_3, %c0_4] : memref<1x1x128xf32, #tpu.memory_space<vmem>>, vector<1x1x128xf32>
    %2 = vector.broadcast %1 : vector<1x1x128xf32> to vector<1x512x128xf32>
    %3 = arith.mulf %0, %2 : vector<1x512x128xf32>
    %c0_5 = arith.constant 0 : index
    %c0_6 = arith.constant 0 : index
    %c0_7 = arith.constant 0 : index
    %4 = vector.load %arg3[%c0_5, %c0_6, %c0_7] : memref<1x512x128xf32, #tpu.memory_space<vmem>>, vector<1x512x128xf32>
    %c0_8 = arith.constant 0 : index
    %c0_9 = arith.constant 0 : index
    %c0_10 = arith.constant 0 : index
    %5 = vector.load %arg5[%c0_8, %c0_9, %c0_10] : memref<1x1x128xf32, #tpu.memory_space<vmem>>, vector<1x1x128xf32>
    %6 = vector.broadcast %5 : vector<1x1x128xf32> to vector<1x512x128xf32>
    %7 = arith.mulf %4, %6 : vector<1x512x128xf32>
    %8 = arith.addf %3, %7 : vector<1x512x128xf32>
    %c0_11 = arith.constant 0 : index
    %c0_12 = arith.constant 0 : index
    %c0_13 = arith.constant 0 : index
    %9 = vector.load %arg6[%c0_11, %c0_12, %c0_13] : memref<1x1x128xf32, #tpu.memory_space<vmem>>, vector<1x1x128xf32>
    %10 = vector.broadcast %9 : vector<1x1x128xf32> to vector<1x512x128xf32>
    %11 = arith.addf %8, %10 : vector<1x512x128xf32>
    %cst = arith.constant 0.000000e+00 : f32
    %12 = vector.broadcast %cst : f32 to vector<1x512x128xf32>
    %13 = arith.maximumf %11, %12 : vector<1x512x128xf32>
    %c0_14 = arith.constant 0 : index
    %c0_15 = arith.constant 0 : index
    %c0_16 = arith.constant 0 : index
    %14 = vector.load %arg7[%c0_14, %c0_15, %c0_16] : memref<1x512x128xf32, #tpu.memory_space<vmem>>, vector<1x512x128xf32>
    tpu.vector_store %arg7[%c0_14, %c0_15, %c0_16], %13 {strides = array<i32>} : memref<1x512x128xf32, #tpu.memory_space<vmem>>, vector<1x512x128xf32>,
    return
  }
  func.func @transform_0(%arg0: i32, %arg1: i32) -> (i32, i32, i32) {
    %c0_i32 = arith.constant 0 : i32
    %c0_i32_0 = arith.constant 0 : i32
    return %arg0, %arg1, %c0_i32 : i32, i32, i32
  }
  func.func @transform_1(%arg0: i32, %arg1: i32) -> (i32, i32, i32) {
    %c0_i32 = arith.constant 0 : i32
    %c0_i32_0 = arith.constant 0 : i32
    return %arg0, %arg1, %c0_i32 : i32, i32, i32
  }
  func.func @transform_2(%arg0: i32, %arg1: i32) -> (i32, i32, i32) {
    %c0_i32 = arith.constant 0 : i32
    %c0_i32_0 = arith.constant 0 : i32
    %c0_i32_1 = arith.constant 0 : i32
    %c0_i32_2 = arith.constant 0 : i32
    return %c0_i32, %c0_i32_0, %c0_i32_1 : i32, i32, i32
  }
  func.func @transform_3(%arg0: i32, %arg1: i32) -> (i32, i32, i32) {
    %c0_i32 = arith.constant 0 : i32
    %c0_i32_0 = arith.constant 0 : i32
    %c0_i32_1 = arith.constant 0 : i32
    return %arg0, %c0_i32, %c0_i32_0 : i32, i32, i32
  }
  func.func @transform_4(%arg0: i32, %arg1: i32) -> (i32, i32, i32) {
    %c0_i32 = arith.constant 0 : i32
    %c0_i32_0 = arith.constant 0 : i32
    %c0_i32_1 = arith.constant 0 : i32
    return %arg0, %c0_i32, %c0_i32_0 : i32, i32, i32
  }
  func.func @transform_5(%arg0: i32, %arg1: i32) -> (i32, i32, i32) {
    %c0_i32 = arith.constant 0 : i32
    %c0_i32_0 = arith.constant 0 : i32
    return %arg0, %arg1, %c0_i32 : i32, i32, i32
  }
}

</mosaic_0001>

<llo_original>
// kernel: resblock_v2_forward.5
$region0: #{resblock_v2_forward.5}
  #allocation0 [shape = 'u32[]', space=smem, size = 0x4, offset = 0x4, fixed_abs, tag = 'smem constant byte address 0x4 - core index']
  #allocation1 [shape = 'u32[144,128]{1,0:T(1,128)}', space=vmem, size = 0x12000, scoped, tag = 'internal scratch']
  %s0 = inlined_call_operand.vmem [shape: f32[1024,128], index: 0, kind: input, shape index: {}]
  %s1 = inlined_call_operand.vmem [shape: f32[1,128], index: 1, kind: input, shape index: {}]
  %s2 = inlined_call_operand.vmem [shape: f32[1,128], index: 2, kind: input, shape index: {}]
  %s3 = inlined_call_operand.vmem [shape: bf16[1024,128], index: 3, kind: output, shape index: {}]
  %s4 = sld [smem:[#allocation0]]
  $region45: #{resblock_v2_forward.5} parent=0
    _
  %s6 = ssub.s32 1, %s4
  %s7 = scalar_select 0, %s6, %s4
  loop: start=0, step=1, limit=4
  $region2: #{resblock_v2_forward.5} parent=0 // loop_pre_header
    _
  $region3: #{resblock_v2_forward.5} parent=0 // loop_header
    %s9 = sphi 0, %s13
    %p10 = scmp.ge.s32.totalorder %s9, 4
    %s19 = sphi 0, %s21
    %s22 = sphi 0, %s19
    %s23 = sphi 0, %s22
    %s39 = sphi 0, %s23
    %s43 = sphi 0, %s43
    %s45 = sphi 0, %s43
    %s46 = sphi 0, %s45
    %s60 = sphi 0, %s46
    %s64 = sphi 0, %s64
    %s66 = sphi 0, %s64
    %s67 = sphi 0, %s66
    %s81 = sphi 0, %s67
    %s87 = sphi 0, %s89
    %s90 = sphi 0, %s87
    %s91 = sphi 0, %s90
    %s107 = sphi 0, %s91
  $region4: #{resblock_v2_forward.5} parent=0 // loop_header_branch
    %12 = sbr.rel (%p10) target = $region8
  $region5: #{resblock_v2_forward.5} parent=0 // loop_body
    %s14 = ssub.s32 %s9, 1
    %s15 = ssub.s32 %s9, 2
    %s16 = sadd.s32 %s9, 1
    %s17 = ssub.s32 %s9, %s16
    %p18 = scmp.eq.s32.totalorder %s17, 0
    %s20 = sadd.s32 %s19, 1
    %s21 = scalar_select %p18, %s19, %s20
    %p24 = pneg %p18
    %p25 = scmp.eq.s32.totalorder %s9, 1
    %p26 = por %p24, %p25
    %p27 = scmp.ne.s32.totalorder %s19, %s22
    %p28 = scmp.eq.s32.totalorder %s9, 0
    %p29 = por %p27, %p28
    %p30 = scmp.ne.s32.totalorder %s19, %s22
    %p31 = scmp.eq.s32.totalorder %s14, 1
    %p32 = por %p30, %p31
    %p33 = scmp.ne.s32.totalorder %s22, %s23
    %p34 = scmp.eq.s32.totalorder %s14, 0
    %p35 = por %p33, %p34
    %p36 = scmp.ne.s32.totalorder %s22, %s23
    %p37 = scmp.eq.s32.totalorder %s15, 1
    %p38 = por %p36, %p37
    %p40 = scmp.ne.s32.totalorder %s23, %s39
    %p41 = scmp.eq.s32.totalorder %s15, 0
    %p42 = por %p40, %p41
    %s44 = sadd.s32 %s43, 1
    %p47 = scmp.eq.s32.totalorder %s9, 1
    %p48 = scmp.ne.s32.totalorder %s43, %s45
    %p49 = scmp.eq.s32.totalorder %s9, 0
    %p50 = por %p48, %p49
    %p51 = scmp.ne.s32.totalorder %s43, %s45
    %p52 = scmp.eq.s32.totalorder %s14, 1
    %p53 = por %p51, %p52
    %p54 = scmp.ne.s32.totalorder %s45, %s46
    %p55 = scmp.eq.s32.totalorder %s14, 0
    %p56 = por %p54, %p55
    %p57 = scmp.ne.s32.totalorder %s45, %s46
    %p58 = scmp.eq.s32.totalorder %s15, 1
    %p59 = por %p57, %p58
    %p61 = scmp.ne.s32.totalorder %s46, %s60
    %p62 = scmp.eq.s32.totalorder %s15, 0
    %p63 = por %p61, %p62
    %s65 = sadd.s32 %s64, 1
    %p68 = scmp.eq.s32.totalorder %s9, 1
    %p69 = scmp.ne.s32.totalorder %s64, %s66
    %p70 = scmp.eq.s32.totalorder %s9, 0
    %p71 = por %p69, %p70
    %p72 = scmp.ne.s32.totalorder %s64, %s66
    %p73 = scmp.eq.s32.totalorder %s14, 1
    %p74 = por %p72, %p73
    %p75 = scmp.ne.s32.totalorder %s66, %s67
    %p76 = scmp.eq.s32.totalorder %s14, 0
    %p77 = por %p75, %p76
    %p78 = scmp.ne.s32.totalorder %s66, %s67
    %p79 = scmp.eq.s32.totalorder %s15, 1
    %p80 = por %p78, %p79
    %p82 = scmp.ne.s32.totalorder %s67, %s81
    %p83 = scmp.eq.s32.totalorder %s15, 0
    %p84 = por %p82, %p83
    %s85 = ssub.s32 %s9, %s16
    %p86 = scmp.eq.s32.totalorder %s85, 0
    %s88 = sadd.s32 %s87, 1
    %s89 = scalar_select %p86, %s87, %s88
    %p92 = pneg %p86
    %p93 = scmp.eq.s32.totalorder %s9, 1
    %p94 = por %p92, %p93
    %p95 = scmp.ne.s32.totalorder %s87, %s90
    %p96 = scmp.eq.s32.totalorder %s9, 0
    %p97 = por %p95, %p96
    %p98 = scmp.ne.s32.totalorder %s87, %s90
    %p99 = scmp.eq.s32.totalorder %s14, 1
    %p100 = por %p98, %p99
    %p101 = scmp.ne.s32.totalorder %s90, %s91
    %p102 = scmp.eq.s32.totalorder %s14, 0
    %p103 = por %p101, %p102
    %p104 = scmp.ne.s32.totalorder %s90, %s91
    %p105 = scmp.eq.s32.totalorder %s15, 1
    %p106 = por %p104, %p105
    %p108 = scmp.ne.s32.totalorder %s91, %s107
    %p109 = scmp.eq.s32.totalorder %s15, 0
    %p110 = por %p108, %p109
    %p111 = scmp.le.s32.totalorder 1, %s9
    %p112 = scmp.lt.s32.totalorder %s9, 3
    %p113 = pnand %p111, %p112
    %p114 = pneg %p113
    // Predicated region
    $region9: #{resblock_v2_forward.5} parent=5 // pred_check
      _
    $region10: #{resblock_v2_forward.5} parent=5 // pred_check_branch
      %116 = sbr.rel (%p113) target = $region12
    $region11: #{resblock_v2_forward.5} parent=5 // pred_region
      %s117 = ssub.s32 %s9, 1
      // Predicated region
      $region13: #{resblock_v2_forward.5} parent=11 // pred_check
        %p118 = pneg %p56
      $region14: #{resblock_v2_forward.5} parent=11 // pred_check_branch
        %120 = sbr.rel (%p118) target = $region16
      $region15: #{resblock_v2_forward.5} parent=11 // pred_region
        _
      $region16: #{resblock_v2_forward.5} parent=11 // pred_fallthru
        _
      // Predicated region
      $region17: #{resblock_v2_forward.5} parent=11 // pred_check
        %p121 = pneg %p77
      $region18: #{resblock_v2_forward.5} parent=11 // pred_check_branch
        %123 = sbr.rel (%p121) target = $region20
      $region19: #{resblock_v2_forward.5} parent=11 // pred_region
        _
      $region20: #{resblock_v2_forward.5} parent=11 // pred_fallthru
        _
    $region12: #{resblock_v2_forward.5} parent=5 // pred_fallthru
      _
    %p124 = scmp.lt.s32.totalorder %s9, 2
    // Predicated region
    $region21: #{resblock_v2_forward.5} parent=5 // pred_check
      %p125 = pneg %p124
    $region22: #{resblock_v2_forward.5} parent=5 // pred_check_branch
      %127 = sbr.rel (%p125) target = $region24
    $region23: #{resblock_v2_forward.5} parent=5 // pred_region
      // Predicated region
      $region25: #{resblock_v2_forward.5} parent=23 // pred_check
        %p128 = pneg %p29
      $region26: #{resblock_v2_forward.5} parent=23 // pred_check_branch
        %130 = sbr.rel (%p128) target = $region28
      $region27: #{resblock_v2_forward.5} parent=23 // pred_region
        %s131 = smul.u32 64, %s9
        %p132 = scmp.lt.s32.totalorder %s131, 127
        %s133 = scalar_select %p132, %s131, 127
        %s134 = smul.addr %s133, 8
        %s135 = scalar_lea.vmem %s0, %s134
        %s136 = smul.u32 64, %s9
      $region28: #{resblock_v2_forward.5} parent=23 // pred_fallthru
        _
    $region24: #{resblock_v2_forward.5} parent=5 // pred_fallthru
      _
    %p137 = scmp.le.s32.totalorder 1, %s9
    %p138 = scmp.lt.s32.totalorder %s9, 3
    %p139 = pnand %p137, %p138
    %p140 = pneg %p139
    // Predicated region
    $region29: #{resblock_v2_forward.5} parent=5 // pred_check
      _
    $region30: #{resblock_v2_forward.5} parent=5 // pred_check_branch
      %142 = sbr.rel (%p139) target = $region32
    $region31: #{resblock_v2_forward.5} parent=5 // pred_region
      %s143 = ssub.s32 %s9, 1
      %s144 = smul.u32 64, %s14
      %p145 = scmp.lt.s32.totalorder %s144, 127
      %s146 = scalar_select %p145, %s144, 127
      %s147 = smul.addr %s146, 8
      %s148 = scalar_lea.vmem %s0, %s147
      %p149 = pneg %p35
      %p150 = pneg %p32
      %p151 = pneg %p56
      %p152 = pneg %p53
      %p153 = pneg %p77
      %p154 = pneg %p74
      %p155 = pneg %p103
      %p156 = pneg %p100
      %s157 = smul.u32 64, %s14
      %p158 = scmp.lt.s32.totalorder %s157, 127
      %s159 = scalar_select %p158, %s157, 127
      %s160 = smul.addr %s159, 4
      %s161 = scalar_lea.vmem %s3, %s160
      %s162 = smul.u32 64, %s14
      %p163 = scmp.lt.s32.totalorder %s162, 127
      %s164 = scalar_select %p163, %s162, 127
      %s165 = smul.addr %s164, 8
      %s166 = scalar_lea.vmem %s0, %s165
      %s167 = smul.u32 64, %s14
      %s168 = smul.u32 64, %s14
      %p169 = scmp.lt.s32.totalorder %s168, 127
      %s170 = scalar_select %p169, %s168, 127
      %s171 = smul.addr %s170, 4
      %s172 = scalar_lea.vmem %s3, %s171
      %s173 = smul.u32 64, %s14
      %v174 = vld [vmem:[%s166] sm:$0xff]
      %v175 = vld [vmem:[%s166 + $0x8] sm:$0xff]
      %v176 = vld [vmem:[%s166 + $0x10] sm:$0xff]
      %v177 = vld [vmem:[%s166 + $0x18] sm:$0xff]
      %v178 = vld [vmem:[%s166 + $0x20] sm:$0xff]
      %v179 = vld [vmem:[%s166 + $0x28] sm:$0xff]
      %v180 = vld [vmem:[%s166 + $0x30] sm:$0xff]
      %v181 = vld [vmem:[%s166 + $0x38] sm:$0xff]
      %v182 = vld [vmem:[%s166 + $0x40] sm:$0xff]
      %v183 = vld [vmem:[%s166 + $0x48] sm:$0xff]
      %v184 = vld [vmem:[%s166 + $0x50] sm:$0xff]
      %v185 = vld [vmem:[%s166 + $0x58] sm:$0xff]
      %v186 = vld [vmem:[%s166 + $0x60] sm:$0xff]
      %v187 = vld [vmem:[%s166 + $0x68] sm:$0xff]
      %v188 = vld [vmem:[%s166 + $0x70] sm:$0xff]
      %v189 = vld [vmem:[%s166 + $0x78] sm:$0xff]
      %v190 = vld [vmem:[%s166 + $0x80] sm:$0xff]
      %v191 = vld [vmem:[%s166 + $0x88] sm:$0xff]
      %v192 = vld [vmem:[%s166 + $0x90] sm:$0xff]
      %v193 = vld [vmem:[%s166 + $0x98] sm:$0xff]
      %v194 = vld [vmem:[%s166 + $0xa0] sm:$0xff]
      %v195 = vld [vmem:[%s166 + $0xa8] sm:$0xff]
      %v196 = vld [vmem:[%s166 + $0xb0] sm:$0xff]
      %v197 = vld [vmem:[%s166 + $0xb8] sm:$0xff]
      %v198 = vld [vmem:[%s166 + $0xc0] sm:$0xff]
      %v199 = vld [vmem:[%s166 + $0xc8] sm:$0xff]
      %v200 = vld [vmem:[%s166 + $0xd0] sm:$0xff]
      %v201 = vld [vmem:[%s166 + $0xd8] sm:$0xff]
      %v202 = vld [vmem:[%s166 + $0xe0] sm:$0xff]
      %v203 = vld [vmem:[%s166 + $0xe8] sm:$0xff]
      %v204 = vld [vmem:[%s166 + $0xf0] sm:$0xff]
      %v205 = vld [vmem:[%s166 + $0xf8] sm:$0xff]
      %v206 = vld [vmem:[%s166 + $0x100] sm:$0xff]
      %v207 = vld [vmem:[%s166 + $0x108] sm:$0xff]
      %v208 = vld [vmem:[%s166 + $0x110] sm:$0xff]
      %v209 = vld [vmem:[%s166 + $0x118] sm:$0xff]
      %v210 = vld [vmem:[%s166 + $0x120] sm:$0xff]
      %v211 = vld [vmem:[%s166 + $0x128] sm:$0xff]
      %v212 = vld [vmem:[%s166 + $0x130] sm:$0xff]
      %v213 = vld [vmem:[%s166 + $0x138] sm:$0xff]
      %v214 = vld [vmem:[%s166 + $0x140] sm:$0xff]
      %v215 = vld [vmem:[%s166 + $0x148] sm:$0xff]
      %v216 = vld [vmem:[%s166 + $0x150] sm:$0xff]
      %v217 = vld [vmem:[%s166 + $0x158] sm:$0xff]
      %v218 = vld [vmem:[%s166 + $0x160] sm:$0xff]
      %v219 = vld [vmem:[%s166 + $0x168] sm:$0xff]
      %v220 = vld [vmem:[%s166 + $0x170] sm:$0xff]
      %v221 = vld [vmem:[%s166 + $0x178] sm:$0xff]
      %v222 = vld [vmem:[%s166 + $0x180] sm:$0xff]
      %v223 = vld [vmem:[%s166 + $0x188] sm:$0xff]
      %v224 = vld [vmem:[%s166 + $0x190] sm:$0xff]
      %v225 = vld [vmem:[%s166 + $0x198] sm:$0xff]
      %v226 = vld [vmem:[%s166 + $0x1a0] sm:$0xff]
      %v227 = vld [vmem:[%s166 + $0x1a8] sm:$0xff]
      %v228 = vld [vmem:[%s166 + $0x1b0] sm:$0xff]
      %v229 = vld [vmem:[%s166 + $0x1b8] sm:$0xff]
      %v230 = vld [vmem:[%s166 + $0x1c0] sm:$0xff]
      %v231 = vld [vmem:[%s166 + $0x1c8] sm:$0xff]
      %v232 = vld [vmem:[%s166 + $0x1d0] sm:$0xff]
      %v233 = vld [vmem:[%s166 + $0x1d8] sm:$0xff]
      %v234 = vld [vmem:[%s166 + $0x1e0] sm:$0xff]
      %v235 = vld [vmem:[%s166 + $0x1e8] sm:$0xff]
      %v236 = vld [vmem:[%s166 + $0x1f0] sm:$0xff]
      %v237 = vld [vmem:[%s166 + $0x1f8] sm:$0xff]
      %v238 = vld [vmem:[%s1] sm:$0x1]
      %v240 = vlaneseq
      %v241 = vshrl.u32 %v240, 7
      %v242 = vsub.s32 0, %v241
      %v243 = vrot.slane %v238, %v242
      %v245 = vmul.f32 %v174, %v243
      %v246 = vmul.f32 %v175, %v243
      %v247 = vmul.f32 %v176, %v243
      %v248 = vmul.f32 %v177, %v243
      %v249 = vmul.f32 %v178, %v243
      %v250 = vmul.f32 %v179, %v243
      %v251 = vmul.f32 %v180, %v243
      %v252 = vmul.f32 %v181, %v243
      %v253 = vmul.f32 %v182, %v243
      %v254 = vmul.f32 %v183, %v243
      %v255 = vmul.f32 %v184, %v243
      %v256 = vmul.f32 %v185, %v243
      %v257 = vmul.f32 %v186, %v243
      %v258 = vmul.f32 %v187, %v243
      %v259 = vmul.f32 %v188, %v243
      %v260 = vmul.f32 %v189, %v243
      %v261 = vmul.f32 %v190, %v243
      %v262 = vmul.f32 %v191, %v243
      %v263 = vmul.f32 %v192, %v243
      %v264 = vmul.f32 %v193, %v243
      %v265 = vmul.f32 %v194, %v243
      %v266 = vmul.f32 %v195, %v243
      %v267 = vmul.f32 %v196, %v243
      %v268 = vmul.f32 %v197, %v243
      %v269 = vmul.f32 %v198, %v243
      %v270 = vmul.f32 %v199, %v243
      %v271 = vmul.f32 %v200, %v243
      %v272 = vmul.f32 %v201, %v243
      %v273 = vmul.f32 %v202, %v243
      %v274 = vmul.f32 %v203, %v243
      %v275 = vmul.f32 %v204, %v243
      %v276 = vmul.f32 %v205, %v243
      %v277 = vmul.f32 %v206, %v243
      %v278 = vmul.f32 %v207, %v243
      %v279 = vmul.f32 %v208, %v243
      %v280 = vmul.f32 %v209, %v243
      %v281 = vmul.f32 %v210, %v243
      %v282 = vmul.f32 %v211, %v243
      %v283 = vmul.f32 %v212, %v243
      %v284 = vmul.f32 %v213, %v243
      %v285 = vmul.f32 %v214, %v243
      %v286 = vmul.f32 %v215, %v243
      %v287 = vmul.f32 %v216, %v243
      %v288 = vmul.f32 %v217, %v243
      %v289 = vmul.f32 %v218, %v243
      %v290 = vmul.f32 %v219, %v243
      %v291 = vmul.f32 %v220, %v243
      %v292 = vmul.f32 %v221, %v243
      %v293 = vmul.f32 %v222, %v243
      %v294 = vmul.f32 %v223, %v243
      %v295 = vmul.f32 %v224, %v243
      %v296 = vmul.f32 %v225, %v243
      %v297 = vmul.f32 %v226, %v243
      %v298 = vmul.f32 %v227, %v243
      %v299 = vmul.f32 %v228, %v243
      %v300 = vmul.f32 %v229, %v243
      %v301 = vmul.f32 %v230, %v243
      %v302 = vmul.f32 %v231, %v243
      %v303 = vmul.f32 %v232, %v243
      %v304 = vmul.f32 %v233, %v243
      %v305 = vmul.f32 %v234, %v243
      %v306 = vmul.f32 %v235, %v243
      %v307 = vmul.f32 %v236, %v243
      %v308 = vmul.f32 %v237, %v243
      %v309 = vld [vmem:[%s2] sm:$0x1]
      %v311 = vlaneseq
      %v312 = vshrl.u32 %v311, 7
      %v313 = vsub.s32 0, %v312
      %v314 = vrot.slane %v309, %v313
      %v316 = vadd.f32 %v245, %v314
      %v317 = vadd.f32 %v246, %v314
      %v318 = vadd.f32 %v247, %v314
      %v319 = vadd.f32 %v248, %v314
      %v320 = vadd.f32 %v249, %v314
      %v321 = vadd.f32 %v250, %v314
      %v322 = vadd.f32 %v251, %v314
      %v323 = vadd.f32 %v252, %v314
      %v324 = vadd.f32 %v253, %v314
      %v325 = vadd.f32 %v254, %v314
      %v326 = vadd.f32 %v255, %v314
      %v327 = vadd.f32 %v256, %v314
      %v328 = vadd.f32 %v257, %v314
      %v329 = vadd.f32 %v258, %v314
      %v330 = vadd.f32 %v259, %v314
      %v331 = vadd.f32 %v260, %v314
      %v332 = vadd.f32 %v261, %v314
      %v333 = vadd.f32 %v262, %v314
      %v334 = vadd.f32 %v263, %v314
      %v335 = vadd.f32 %v264, %v314
      %v336 = vadd.f32 %v265, %v314
      %v337 = vadd.f32 %v266, %v314
      %v338 = vadd.f32 %v267, %v314
      %v339 = vadd.f32 %v268, %v314
      %v340 = vadd.f32 %v269, %v314
      %v341 = vadd.f32 %v270, %v314
      %v342 = vadd.f32 %v271, %v314
      %v343 = vadd.f32 %v272, %v314
      %v344 = vadd.f32 %v273, %v314
      %v345 = vadd.f32 %v274, %v314
      %v346 = vadd.f32 %v275, %v314
      %v347 = vadd.f32 %v276, %v314
      %v348 = vadd.f32 %v277, %v314
      %v349 = vadd.f32 %v278, %v314
      %v350 = vadd.f32 %v279, %v314
      %v351 = vadd.f32 %v280, %v314
      %v352 = vadd.f32 %v281, %v314
      %v353 = vadd.f32 %v282, %v314
      %v354 = vadd.f32 %v283, %v314
      %v355 = vadd.f32 %v284, %v314
      %v356 = vadd.f32 %v285, %v314
      %v357 = vadd.f32 %v286, %v314
      %v358 = vadd.f32 %v287, %v314
      %v359 = vadd.f32 %v288, %v314
      %v360 = vadd.f32 %v289, %v314
      %v361 = vadd.f32 %v290, %v314
      %v362 = vadd.f32 %v291, %v314
      %v363 = vadd.f32 %v292, %v314
      %v364 = vadd.f32 %v293, %v314
      %v365 = vadd.f32 %v294, %v314
      %v366 = vadd.f32 %v295, %v314
      %v367 = vadd.f32 %v296, %v314
      %v368 = vadd.f32 %v297, %v314
      %v369 = vadd.f32 %v298, %v314
      %v370 = vadd.f32 %v299, %v314
      %v371 = vadd.f32 %v300, %v314
      %v372 = vadd.f32 %v301, %v314
      %v373 = vadd.f32 %v302, %v314
      %v374 = vadd.f32 %v303, %v314
      %v375 = vadd.f32 %v304, %v314
      %v376 = vadd.f32 %v305, %v314
      %v377 = vadd.f32 %v306, %v314
      %v378 = vadd.f32 %v307, %v314
      %v379 = vadd.f32 %v308, %v314
      %v380 = vmax.f32 %v316, 0.0
      %v381 = vmax.f32 %v317, 0.0
      %v382 = vmax.f32 %v318, 0.0
      %v383 = vmax.f32 %v319, 0.0
      %v384 = vmax.f32 %v320, 0.0
      %v385 = vmax.f32 %v321, 0.0
      %v386 = vmax.f32 %v322, 0.0
      %v387 = vmax.f32 %v323, 0.0
      %v388 = vmax.f32 %v324, 0.0
      %v389 = vmax.f32 %v325, 0.0
      %v390 = vmax.f32 %v326, 0.0
      %v391 = vmax.f32 %v327, 0.0
      %v392 = vmax.f32 %v328, 0.0
      %v393 = vmax.f32 %v329, 0.0
      %v394 = vmax.f32 %v330, 0.0
      %v395 = vmax.f32 %v331, 0.0
      %v396 = vmax.f32 %v332, 0.0
      %v397 = vmax.f32 %v333, 0.0
      %v398 = vmax.f32 %v334, 0.0
      %v399 = vmax.f32 %v335, 0.0
      %v400 = vmax.f32 %v336, 0.0
      %v401 = vmax.f32 %v337, 0.0
      %v402 = vmax.f32 %v338, 0.0
      %v403 = vmax.f32 %v339, 0.0
      %v404 = vmax.f32 %v340, 0.0
      %v405 = vmax.f32 %v341, 0.0
      %v406 = vmax.f32 %v342, 0.0
      %v407 = vmax.f32 %v343, 0.0
      %v408 = vmax.f32 %v344, 0.0
      %v409 = vmax.f32 %v345, 0.0
      %v410 = vmax.f32 %v346, 0.0
      %v411 = vmax.f32 %v347, 0.0
      %v412 = vmax.f32 %v348, 0.0
      %v413 = vmax.f32 %v349, 0.0
      %v414 = vmax.f32 %v350, 0.0
      %v415 = vmax.f32 %v351, 0.0
      %v416 = vmax.f32 %v352, 0.0
      %v417 = vmax.f32 %v353, 0.0
      %v418 = vmax.f32 %v354, 0.0
      %v419 = vmax.f32 %v355, 0.0
      %v420 = vmax.f32 %v356, 0.0
      %v421 = vmax.f32 %v357, 0.0
      %v422 = vmax.f32 %v358, 0.0
      %v423 = vmax.f32 %v359, 0.0
      %v424 = vmax.f32 %v360, 0.0
      %v425 = vmax.f32 %v361, 0.0
      %v426 = vmax.f32 %v362, 0.0
      %v427 = vmax.f32 %v363, 0.0
      %v428 = vmax.f32 %v364, 0.0
      %v429 = vmax.f32 %v365, 0.0
      %v430 = vmax.f32 %v366, 0.0
      %v431 = vmax.f32 %v367, 0.0
      %v432 = vmax.f32 %v368, 0.0
      %v433 = vmax.f32 %v369, 0.0
      %v434 = vmax.f32 %v370, 0.0
      %v435 = vmax.f32 %v371, 0.0
      %v436 = vmax.f32 %v372, 0.0
      %v437 = vmax.f32 %v373, 0.0
      %v438 = vmax.f32 %v374, 0.0
      %v439 = vmax.f32 %v375, 0.0
      %v440 = vmax.f32 %v376, 0.0
      %v441 = vmax.f32 %v377, 0.0
      %v442 = vmax.f32 %v378, 0.0
      %v443 = vmax.f32 %v379, 0.0
      %v444 = vpack.c.bf16 %v381, %v380
      %v445 = vpack.c.bf16 %v383, %v382
      %v446 = vpack.c.bf16 %v385, %v384
      %v447 = vpack.c.bf16 %v387, %v386
      %v448 = vpack.c.bf16 %v389, %v388
      %v449 = vpack.c.bf16 %v391, %v390
      %v450 = vpack.c.bf16 %v393, %v392
      %v451 = vpack.c.bf16 %v395, %v394
      %v452 = vpack.c.bf16 %v397, %v396
      %v453 = vpack.c.bf16 %v399, %v398
      %v454 = vpack.c.bf16 %v401, %v400
      %v455 = vpack.c.bf16 %v403, %v402
      %v456 = vpack.c.bf16 %v405, %v404
      %v457 = vpack.c.bf16 %v407, %v406
      %v458 = vpack.c.bf16 %v409, %v408
      %v459 = vpack.c.bf16 %v411, %v410
      %v460 = vpack.c.bf16 %v413, %v412
      %v461 = vpack.c.bf16 %v415, %v414
      %v462 = vpack.c.bf16 %v417, %v416
      %v463 = vpack.c.bf16 %v419, %v418
      %v464 = vpack.c.bf16 %v421, %v420
      %v465 = vpack.c.bf16 %v423, %v422
      %v466 = vpack.c.bf16 %v425, %v424
      %v467 = vpack.c.bf16 %v427, %v426
      %v468 = vpack.c.bf16 %v429, %v428
      %v469 = vpack.c.bf16 %v431, %v430
      %v470 = vpack.c.bf16 %v433, %v432
      %v471 = vpack.c.bf16 %v435, %v434
      %v472 = vpack.c.bf16 %v437, %v436
      %v473 = vpack.c.bf16 %v439, %v438
      %v474 = vpack.c.bf16 %v441, %v440
      %v475 = vpack.c.bf16 %v443, %v442
      %v508 = vunpack.c.l.b16 %v444
      %v509 = vunpack.c.h.b16 %v444
      %v510 = vunpack.c.l.b16 %v445
      %v511 = vunpack.c.h.b16 %v445
      %v512 = vunpack.c.l.b16 %v446
      %v513 = vunpack.c.h.b16 %v446
      %v514 = vunpack.c.l.b16 %v447
      %v515 = vunpack.c.h.b16 %v447
      %v516 = vunpack.c.l.b16 %v448
      %v517 = vunpack.c.h.b16 %v448
      %v518 = vunpack.c.l.b16 %v449
      %v519 = vunpack.c.h.b16 %v449
      %v520 = vunpack.c.l.b16 %v450
      %v521 = vunpack.c.h.b16 %v450
      %v522 = vunpack.c.l.b16 %v451
      %v523 = vunpack.c.h.b16 %v451
      %v524 = vunpack.c.l.b16 %v452
      %v525 = vunpack.c.h.b16 %v452
      %v526 = vunpack.c.l.b16 %v453
      %v527 = vunpack.c.h.b16 %v453
      %v528 = vunpack.c.l.b16 %v454
      %v529 = vunpack.c.h.b16 %v454
      %v530 = vunpack.c.l.b16 %v455
      %v531 = vunpack.c.h.b16 %v455
      %v532 = vunpack.c.l.b16 %v456
      %v533 = vunpack.c.h.b16 %v456
      %v534 = vunpack.c.l.b16 %v457
      %v535 = vunpack.c.h.b16 %v457
      %v536 = vunpack.c.l.b16 %v458
      %v537 = vunpack.c.h.b16 %v458
      %v538 = vunpack.c.l.b16 %v459
      %v539 = vunpack.c.h.b16 %v459
      %v540 = vunpack.c.l.b16 %v460
      %v541 = vunpack.c.h.b16 %v460
      %v542 = vunpack.c.l.b16 %v461
      %v543 = vunpack.c.h.b16 %v461
      %v544 = vunpack.c.l.b16 %v462
      %v545 = vunpack.c.h.b16 %v462
      %v546 = vunpack.c.l.b16 %v463
      %v547 = vunpack.c.h.b16 %v463
      %v548 = vunpack.c.l.b16 %v464
      %v549 = vunpack.c.h.b16 %v464
      %v550 = vunpack.c.l.b16 %v465
      %v551 = vunpack.c.h.b16 %v465
      %v552 = vunpack.c.l.b16 %v466
      %v553 = vunpack.c.h.b16 %v466
      %v554 = vunpack.c.l.b16 %v467
      %v555 = vunpack.c.h.b16 %v467
      %v556 = vunpack.c.l.b16 %v468
      %v557 = vunpack.c.h.b16 %v468
      %v558 = vunpack.c.l.b16 %v469
      %v559 = vunpack.c.h.b16 %v469
      %v560 = vunpack.c.l.b16 %v470
      %v561 = vunpack.c.h.b16 %v470
      %v562 = vunpack.c.l.b16 %v471
      %v563 = vunpack.c.h.b16 %v471
      %v564 = vunpack.c.l.b16 %v472
      %v565 = vunpack.c.h.b16 %v472
      %v566 = vunpack.c.l.b16 %v473
      %v567 = vunpack.c.h.b16 %v473
      %v568 = vunpack.c.l.b16 %v474
      %v569 = vunpack.c.h.b16 %v474
      %v570 = vunpack.c.l.b16 %v475
      %v571 = vunpack.c.h.b16 %v475
      %v572 = vpack.c.b16 %v508, %v508
      %v573 = vpack.c.b16 %v509, %v509
      %v574 = vpack.c.b16 %v510, %v510
      %v575 = vpack.c.b16 %v511, %v511
      %v576 = vpack.c.b16 %v512, %v512
      %v577 = vpack.c.b16 %v513, %v513
      %v578 = vpack.c.b16 %v514, %v514
      %v579 = vpack.c.b16 %v515, %v515
      %v580 = vpack.c.b16 %v516, %v516
      %v581 = vpack.c.b16 %v517, %v517
      %v582 = vpack.c.b16 %v518, %v518
      %v583 = vpack.c.b16 %v519, %v519
      %v584 = vpack.c.b16 %v520, %v520
      %v585 = vpack.c.b16 %v521, %v521
      %v586 = vpack.c.b16 %v522, %v522
      %v587 = vpack.c.b16 %v523, %v523
      %v588 = vpack.c.b16 %v524, %v524
      %v589 = vpack.c.b16 %v525, %v525
      %v590 = vpack.c.b16 %v526, %v526
      %v591 = vpack.c.b16 %v527, %v527
      %v592 = vpack.c.b16 %v528, %v528
      %v593 = vpack.c.b16 %v529, %v529
      %v594 = vpack.c.b16 %v530, %v530
      %v595 = vpack.c.b16 %v531, %v531
      %v596 = vpack.c.b16 %v532, %v532
      %v597 = vpack.c.b16 %v533, %v533
      %v598 = vpack.c.b16 %v534, %v534
      %v599 = vpack.c.b16 %v535, %v535
      %v600 = vpack.c.b16 %v536, %v536
      %v601 = vpack.c.b16 %v537, %v537
      %v602 = vpack.c.b16 %v538, %v538
      %v603 = vpack.c.b16 %v539, %v539
      %v604 = vpack.c.b16 %v540, %v540
      %v605 = vpack.c.b16 %v541, %v541
      %v606 = vpack.c.b16 %v542, %v542
      %v607 = vpack.c.b16 %v543, %v543
      %v608 = vpack.c.b16 %v544, %v544
      %v609 = vpack.c.b16 %v545, %v545
      %v610 = vpack.c.b16 %v546, %v546
      %v611 = vpack.c.b16 %v547, %v547
      %v612 = vpack.c.b16 %v548, %v548
      %v613 = vpack.c.b16 %v549, %v549
      %v614 = vpack.c.b16 %v550, %v550
      %v615 = vpack.c.b16 %v551, %v551
      %v616 = vpack.c.b16 %v552, %v552
      %v617 = vpack.c.b16 %v553, %v553
      %v618 = vpack.c.b16 %v554, %v554
      %v619 = vpack.c.b16 %v555, %v555
      %v620 = vpack.c.b16 %v556, %v556
      %v621 = vpack.c.b16 %v557, %v557
      %v622 = vpack.c.b16 %v558, %v558
      %v623 = vpack.c.b16 %v559, %v559
      %v624 = vpack.c.b16 %v560, %v560
      %v625 = vpack.c.b16 %v561, %v561
      %v626 = vpack.c.b16 %v562, %v562
      %v627 = vpack.c.b16 %v563, %v563
      %v628 = vpack.c.b16 %v564, %v564
      %v629 = vpack.c.b16 %v565, %v565
      %v630 = vpack.c.b16 %v566, %v566
      %v631 = vpack.c.b16 %v567, %v567
      %v632 = vpack.c.b16 %v568, %v568
      %v633 = vpack.c.b16 %v569, %v569
      %v634 = vpack.c.b16 %v570, %v570
      %v635 = vpack.c.b16 %v571, %v571
      %700 = vst [vmem:[%s172] sm:$0xf] %v572
      %701 = vst [vmem:[%s172 + $0x4] sm:$0xf] %v573
      %702 = vst [vmem:[%s172 + $0x8] sm:$0xf] %v574
      %703 = vst [vmem:[%s172 + $0xc] sm:$0xf] %v575
      %704 = vst [vmem:[%s172 + $0x10] sm:$0xf] %v576
      %705 = vst [vmem:[%s172 + $0x14] sm:$0xf] %v577
      %706 = vst [vmem:[%s172 + $0x18] sm:$0xf] %v578
      %707 = vst [vmem:[%s172 + $0x1c] sm:$0xf] %v579
      %708 = vst [vmem:[%s172 + $0x20] sm:$0xf] %v580
      %709 = vst [vmem:[%s172 + $0x24] sm:$0xf] %v581
      %710 = vst [vmem:[%s172 + $0x28] sm:$0xf] %v582
      %711 = vst [vmem:[%s172 + $0x2c] sm:$0xf] %v583
      %712 = vst [vmem:[%s172 + $0x30] sm:$0xf] %v584
      %713 = vst [vmem:[%s172 + $0x34] sm:$0xf] %v585
      %714 = vst [vmem:[%s172 + $0x38] sm:$0xf] %v586
      %715 = vst [vmem:[%s172 + $0x3c] sm:$0xf] %v587
      %716 = vst [vmem:[%s172 + $0x40] sm:$0xf] %v588
      %717 = vst [vmem:[%s172 + $0x44] sm:$0xf] %v589
      %718 = vst [vmem:[%s172 + $0x48] sm:$0xf] %v590
      %719 = vst [vmem:[%s172 + $0x4c] sm:$0xf] %v591
      %720 = vst [vmem:[%s172 + $0x50] sm:$0xf] %v592
      %721 = vst [vmem:[%s172 + $0x54] sm:$0xf] %v593
      %722 = vst [vmem:[%s172 + $0x58] sm:$0xf] %v594
      %723 = vst [vmem:[%s172 + $0x5c] sm:$0xf] %v595
      %724 = vst [vmem:[%s172 + $0x60] sm:$0xf] %v596
      %725 = vst [vmem:[%s172 + $0x64] sm:$0xf] %v597
      %726 = vst [vmem:[%s172 + $0x68] sm:$0xf] %v598
      %727 = vst [vmem:[%s172 + $0x6c] sm:$0xf] %v599
      %728 = vst [vmem:[%s172 + $0x70] sm:$0xf] %v600
      %729 = vst [vmem:[%s172 + $0x74] sm:$0xf] %v601
      %730 = vst [vmem:[%s172 + $0x78] sm:$0xf] %v602
      %731 = vst [vmem:[%s172 + $0x7c] sm:$0xf] %v603
      %732 = vst [vmem:[%s172 + $0x80] sm:$0xf] %v604
      %733 = vst [vmem:[%s172 + $0x84] sm:$0xf] %v605
      %734 = vst [vmem:[%s172 + $0x88] sm:$0xf] %v606
      %735 = vst [vmem:[%s172 + $0x8c] sm:$0xf] %v607
      %736 = vst [vmem:[%s172 + $0x90] sm:$0xf] %v608
      %737 = vst [vmem:[%s172 + $0x94] sm:$0xf] %v609
      %738 = vst [vmem:[%s172 + $0x98] sm:$0xf] %v610
      %739 = vst [vmem:[%s172 + $0x9c] sm:$0xf] %v611
      %740 = vst [vmem:[%s172 + $0xa0] sm:$0xf] %v612
      %741 = vst [vmem:[%s172 + $0xa4] sm:$0xf] %v613
      %742 = vst [vmem:[%s172 + $0xa8] sm:$0xf] %v614
      %743 = vst [vmem:[%s172 + $0xac] sm:$0xf] %v615
      %744 = vst [vmem:[%s172 + $0xb0] sm:$0xf] %v616
      %745 = vst [vmem:[%s172 + $0xb4] sm:$0xf] %v617
      %746 = vst [vmem:[%s172 + $0xb8] sm:$0xf] %v618
      %747 = vst [vmem:[%s172 + $0xbc] sm:$0xf] %v619
      %748 = vst [vmem:[%s172 + $0xc0] sm:$0xf] %v620
      %749 = vst [vmem:[%s172 + $0xc4] sm:$0xf] %v621
      %750 = vst [vmem:[%s172 + $0xc8] sm:$0xf] %v622
      %751 = vst [vmem:[%s172 + $0xcc] sm:$0xf] %v623
      %752 = vst [vmem:[%s172 + $0xd0] sm:$0xf] %v624
      %753 = vst [vmem:[%s172 + $0xd4] sm:$0xf] %v625
      %754 = vst [vmem:[%s172 + $0xd8] sm:$0xf] %v626
      %755 = vst [vmem:[%s172 + $0xdc] sm:$0xf] %v627
      %756 = vst [vmem:[%s172 + $0xe0] sm:$0xf] %v628
      %757 = vst [vmem:[%s172 + $0xe4] sm:$0xf] %v629
      %758 = vst [vmem:[%s172 + $0xe8] sm:$0xf] %v630
      %759 = vst [vmem:[%s172 + $0xec] sm:$0xf] %v631
      %760 = vst [vmem:[%s172 + $0xf0] sm:$0xf] %v632
      %761 = vst [vmem:[%s172 + $0xf4] sm:$0xf] %v633
      %762 = vst [vmem:[%s172 + $0xf8] sm:$0xf] %v634
      %763 = vst [vmem:[%s172 + $0xfc] sm:$0xf] %v635
      %s764 = smul.u32 64, %s14
      %p765 = scmp.lt.s32.totalorder %s764, 127
      %s766 = scalar_select %p765, %s764, 127
      %s767 = smul.addr %s766, 4
      %s768 = scalar_lea.vmem %s3, %s767
      // Predicated region
      $region33: #{resblock_v2_forward.5} parent=31 // pred_check
        %p769 = pneg %p100
      $region34: #{resblock_v2_forward.5} parent=31 // pred_check_branch
        %771 = sbr.rel (%p769) target = $region36
      $region35: #{resblock_v2_forward.5} parent=31 // pred_region
        %s772 = smul.u32 64, %s14
      $region36: #{resblock_v2_forward.5} parent=31 // pred_fallthru
        _
    $region32: #{resblock_v2_forward.5} parent=5 // pred_fallthru
      _
    %p773 = scmp.le.s32.totalorder 2, %s9
    // Predicated region
    $region37: #{resblock_v2_forward.5} parent=5 // pred_check
      %p774 = pneg %p773
    $region38: #{resblock_v2_forward.5} parent=5 // pred_check_branch
      %776 = sbr.rel (%p774) target = $region40
    $region39: #{resblock_v2_forward.5} parent=5 // pred_region
      %s777 = ssub.s32 %s9, 2
      // Predicated region
      $region41: #{resblock_v2_forward.5} parent=39 // pred_check
        %p778 = pneg %p106
      $region42: #{resblock_v2_forward.5} parent=39 // pred_check_branch
        %780 = sbr.rel (%p778) target = $region44
      $region43: #{resblock_v2_forward.5} parent=39 // pred_region
        %s781 = smul.u32 64, %s15
        %p782 = scmp.lt.s32.totalorder %s781, 127
        %s783 = scalar_select %p782, %s781, 127
        %s784 = smul.addr %s783, 4
        %s785 = scalar_lea.vmem %s3, %s784
      $region44: #{resblock_v2_forward.5} parent=39 // pred_fallthru
        _
    $region40: #{resblock_v2_forward.5} parent=5 // pred_fallthru
      _
  $region6: #{resblock_v2_forward.5} parent=0 // loop_footer
    %s13 = sadd.s32 1, %s9
  $region7: #{resblock_v2_forward.5} parent=0 // loop_footer_branch
    %8 = sbr.rel target = $region3
  $region8: #{resblock_v2_forward.5} parent=0 // loop_exit
    _

// kernel: resblock_v2_forward.4
$region0: #{resblock_v2_forward.4}
  #allocation0 [shape = 'u32[]', space=smem, size = 0x4, offset = 0x4, fixed_abs, tag = 'smem constant byte address 0x4 - core index']
  #allocation1 [shape = 'u32[144,128]{1,0:T(1,128)}', space=vmem, size = 0x12000, scoped, tag = 'internal scratch']
  %s0 = inlined_call_operand.vmem [shape: bf16[1024,128], index: 0, kind: input, shape index: {}]
  %s1 = inlined_call_operand.vmem [shape: bf16[128,128], index: 1, kind: input, shape index: {}]
  %s2 = inlined_call_operand.vmem [shape: f32[1024,128], index: 2, kind: output, shape index: {0}]
  %s3 = inlined_call_operand.vmem [shape: f32[2,1,128], index: 3, kind: output, shape index: {1}]
  %s4 = inlined_call_operand.vmem [shape: f32[2,1,128], index: 4, kind: output, shape index: {2}]
  %5 = xla_tuple %s2, %s3, %s4
  %s6 = sld [smem:[#allocation0]]
  $region57: #{resblock_v2_forward.4} parent=0
    _
  %s8 = ssub.s32 1, %s6
  %s9 = scalar_select 0, %s8, %s6
  loop: start=0, step=1, limit=4
  $region2: #{resblock_v2_forward.4} parent=0 // loop_pre_header
    _
  $region3: #{resblock_v2_forward.4} parent=0 // loop_header
    %s11 = sphi 0, %s15
    %p12 = scmp.ge.s32.totalorder %s11, 4
    %s21 = sphi 0, %s23
    %s24 = sphi 0, %s21
    %s25 = sphi 0, %s24
    %s41 = sphi 0, %s25
    %s45 = sphi 0, %s45
    %s47 = sphi 0, %s45
    %s48 = sphi 0, %s47
    %s62 = sphi 0, %s48
    %s68 = sphi 0, %s70
    %s71 = sphi 0, %s68
    %s72 = sphi 0, %s71
    %s88 = sphi 0, %s72
    %s94 = sphi 0, %s96
    %s97 = sphi 0, %s94
    %s98 = sphi 0, %s97
    %s114 = sphi 0, %s98
    %s120 = sphi 0, %s122
    %s123 = sphi 0, %s120
    %s124 = sphi 0, %s123
    %s140 = sphi 0, %s124
  $region4: #{resblock_v2_forward.4} parent=0 // loop_header_branch
    %14 = sbr.rel (%p12) target = $region8
  $region5: #{resblock_v2_forward.4} parent=0 // loop_body
    %s16 = ssub.s32 %s11, 1
    %s17 = ssub.s32 %s11, 2
    %s18 = sadd.s32 %s11, 1
    %s19 = ssub.s32 %s11, %s18
    %p20 = scmp.eq.s32.totalorder %s19, 0
    %s22 = sadd.s32 %s21, 1
    %s23 = scalar_select %p20, %s21, %s22
    %p26 = pneg %p20
    %p27 = scmp.eq.s32.totalorder %s11, 1
    %p28 = por %p26, %p27
    %p29 = scmp.ne.s32.totalorder %s21, %s24
    %p30 = scmp.eq.s32.totalorder %s11, 0
    %p31 = por %p29, %p30
    %p32 = scmp.ne.s32.totalorder %s21, %s24
    %p33 = scmp.eq.s32.totalorder %s16, 1
    %p34 = por %p32, %p33
    %p35 = scmp.ne.s32.totalorder %s24, %s25
    %p36 = scmp.eq.s32.totalorder %s16, 0
    %p37 = por %p35, %p36
    %p38 = scmp.ne.s32.totalorder %s24, %s25
    %p39 = scmp.eq.s32.totalorder %s17, 1
    %p40 = por %p38, %p39
    %p42 = scmp.ne.s32.totalorder %s25, %s41
    %p43 = scmp.eq.s32.totalorder %s17, 0
    %p44 = por %p42, %p43
    %s46 = sadd.s32 %s45, 1
    %p49 = scmp.eq.s32.totalorder %s11, 1
    %p50 = scmp.ne.s32.totalorder %s45, %s47
    %p51 = scmp.eq.s32.totalorder %s11, 0
    %p52 = por %p50, %p51
    %p53 = scmp.ne.s32.totalorder %s45, %s47
    %p54 = scmp.eq.s32.totalorder %s16, 1
    %p55 = por %p53, %p54
    %p56 = scmp.ne.s32.totalorder %s47, %s48
    %p57 = scmp.eq.s32.totalorder %s16, 0
    %p58 = por %p56, %p57
    %p59 = scmp.ne.s32.totalorder %s47, %s48
    %p60 = scmp.eq.s32.totalorder %s17, 1
    %p61 = por %p59, %p60
    %p63 = scmp.ne.s32.totalorder %s48, %s62
    %p64 = scmp.eq.s32.totalorder %s17, 0
    %p65 = por %p63, %p64
    %s66 = ssub.s32 %s11, %s18
    %p67 = scmp.eq.s32.totalorder %s66, 0
    %s69 = sadd.s32 %s68, 1
    %s70 = scalar_select %p67, %s68, %s69
    %p73 = pneg %p67
    %p74 = scmp.eq.s32.totalorder %s11, 1
    %p75 = por %p73, %p74
    %p76 = scmp.ne.s32.totalorder %s68, %s71
    %p77 = scmp.eq.s32.totalorder %s11, 0
    %p78 = por %p76, %p77
    %p79 = scmp.ne.s32.totalorder %s68, %s71
    %p80 = scmp.eq.s32.totalorder %s16, 1
    %p81 = por %p79, %p80
    %p82 = scmp.ne.s32.totalorder %s71, %s72
    %p83 = scmp.eq.s32.totalorder %s16, 0
    %p84 = por %p82, %p83
    %p85 = scmp.ne.s32.totalorder %s71, %s72
    %p86 = scmp.eq.s32.totalorder %s17, 1
    %p87 = por %p85, %p86
    %p89 = scmp.ne.s32.totalorder %s72, %s88
    %p90 = scmp.eq.s32.totalorder %s17, 0
    %p91 = por %p89, %p90
    %s92 = ssub.s32 %s11, %s18
    %p93 = scmp.eq.s32.totalorder %s92, 0
    %s95 = sadd.s32 %s94, 1
    %s96 = scalar_select %p93, %s94, %s95
    %p99 = pneg %p93
    %p100 = scmp.eq.s32.totalorder %s11, 1
    %p101 = por %p99, %p100
    %p102 = scmp.ne.s32.totalorder %s94, %s97
    %p103 = scmp.eq.s32.totalorder %s11, 0
    %p104 = por %p102, %p103
    %p105 = scmp.ne.s32.totalorder %s94, %s97
    %p106 = scmp.eq.s32.totalorder %s16, 1
    %p107 = por %p105, %p106
    %p108 = scmp.ne.s32.totalorder %s97, %s98
    %p109 = scmp.eq.s32.totalorder %s16, 0
    %p110 = por %p108, %p109
    %p111 = scmp.ne.s32.totalorder %s97, %s98
    %p112 = scmp.eq.s32.totalorder %s17, 1
    %p113 = por %p111, %p112
    %p115 = scmp.ne.s32.totalorder %s98, %s114
    %p116 = scmp.eq.s32.totalorder %s17, 0
    %p117 = por %p115, %p116
    %s118 = ssub.s32 %s11, %s18
    %p119 = scmp.eq.s32.totalorder %s118, 0
    %s121 = sadd.s32 %s120, 1
    %s122 = scalar_select %p119, %s120, %s121
    %p125 = pneg %p119
    %p126 = scmp.eq.s32.totalorder %s11, 1
    %p127 = por %p125, %p126
    %p128 = scmp.ne.s32.totalorder %s120, %s123
    %p129 = scmp.eq.s32.totalorder %s11, 0
    %p130 = por %p128, %p129
    %p131 = scmp.ne.s32.totalorder %s120, %s123
    %p132 = scmp.eq.s32.totalorder %s16, 1
    %p133 = por %p131, %p132
    %p134 = scmp.ne.s32.totalorder %s123, %s124
    %p135 = scmp.eq.s32.totalorder %s16, 0
    %p136 = por %p134, %p135
    %p137 = scmp.ne.s32.totalorder %s123, %s124
    %p138 = scmp.eq.s32.totalorder %s17, 1
    %p139 = por %p137, %p138
    %p141 = scmp.ne.s32.totalorder %s124, %s140
    %p142 = scmp.eq.s32.totalorder %s17, 0
    %p143 = por %p141, %p142
    %p144 = scmp.le.s32.totalorder 1, %s11
    %p145 = scmp.lt.s32.totalorder %s11, 3
    %p146 = pnand %p144, %p145
    %p147 = pneg %p146
    // Predicated region
    $region9: #{resblock_v2_forward.4} parent=5 // pred_check
      _
    $region10: #{resblock_v2_forward.4} parent=5 // pred_check_branch
      %149 = sbr.rel (%p146) target = $region12
    $region11: #{resblock_v2_forward.4} parent=5 // pred_region
      %s150 = ssub.s32 %s11, 1
      // Predicated region
      $region13: #{resblock_v2_forward.4} parent=11 // pred_check
        %p151 = pneg %p58
      $region14: #{resblock_v2_forward.4} parent=11 // pred_check_branch
        %153 = sbr.rel (%p151) target = $region16
      $region15: #{resblock_v2_forward.4} parent=11 // pred_region
        _
      $region16: #{resblock_v2_forward.4} parent=11 // pred_fallthru
        _
    $region12: #{resblock_v2_forward.4} parent=5 // pred_fallthru
      _
    %p154 = scmp.lt.s32.totalorder %s11, 2
    // Predicated region
    $region17: #{resblock_v2_forward.4} parent=5 // pred_check
      %p155 = pneg %p154
    $region18: #{resblock_v2_forward.4} parent=5 // pred_check_branch
      %157 = sbr.rel (%p155) target = $region20
    $region19: #{resblock_v2_forward.4} parent=5 // pred_region
      // Predicated region
      $region21: #{resblock_v2_forward.4} parent=19 // pred_check
        %p158 = pneg %p31
      $region22: #{resblock_v2_forward.4} parent=19 // pred_check_branch
        %160 = sbr.rel (%p158) target = $region24
      $region23: #{resblock_v2_forward.4} parent=19 // pred_region
        %s161 = smul.u32 64, %s11
        %p162 = scmp.lt.s32.totalorder %s161, 127
        %s163 = scalar_select %p162, %s161, 127
        %s164 = smul.addr %s163, 4
        %s165 = scalar_lea.vmem %s0, %s164
        %s166 = smul.u32 64, %s11
      $region24: #{resblock_v2_forward.4} parent=19 // pred_fallthru
        _
    $region20: #{resblock_v2_forward.4} parent=5 // pred_fallthru
      _
    %p167 = scmp.le.s32.totalorder 1, %s11
    %p168 = scmp.lt.s32.totalorder %s11, 3
    %p169 = pnand %p167, %p168
    %p170 = pneg %p169
    // Predicated region
    $region25: #{resblock_v2_forward.4} parent=5 // pred_check
      _
    $region26: #{resblock_v2_forward.4} parent=5 // pred_check_branch
      %172 = sbr.rel (%p169) target = $region28
    $region27: #{resblock_v2_forward.4} parent=5 // pred_region
      %s173 = ssub.s32 %s11, 1
      %s174 = smul.u32 64, %s16
      %p175 = scmp.lt.s32.totalorder %s174, 127
      %s176 = scalar_select %p175, %s174, 127
      %s177 = smul.addr %s176, 4
      %s178 = scalar_lea.vmem %s0, %s177
      %p179 = pneg %p37
      %p180 = pneg %p34
      %p181 = pneg %p58
      %p182 = pneg %p55
      %p183 = pneg %p84
      %p184 = pneg %p81
      %s185 = smul.u32 64, %s16
      %p186 = scmp.lt.s32.totalorder %s185, 127
      %s187 = scalar_select %p186, %s185, 127
      %s188 = smul.addr %s187, 8
      %s189 = scalar_lea.vmem %s2, %s188
      %p190 = pneg %p110
      %p191 = pneg %p107
      %p192 = scmp.lt.s32.totalorder %s16, 1
      %s193 = scalar_select %p192, %s16, 1
      %s194 = scalar_lea.vmem %s3, %s193
      %p195 = pneg %p136
      %p196 = pneg %p133
      %p197 = scmp.lt.s32.totalorder %s16, 1
      %s198 = scalar_select %p197, %s16, 1
      %s199 = scalar_lea.vmem %s4, %s198
      %s200 = smul.u32 64, %s16
      %p201 = scmp.lt.s32.totalorder %s200, 127
      %s202 = scalar_select %p201, %s200, 127
      %s203 = smul.addr %s202, 4
      %s204 = scalar_lea.vmem %s0, %s203
      %s205 = smul.u32 64, %s16
      %s206 = smul.u32 64, %s16
      %p207 = scmp.lt.s32.totalorder %s206, 127
      %s208 = scalar_select %p207, %s206, 127
      %s209 = smul.addr %s208, 8
      %s210 = scalar_lea.vmem %s2, %s209
      %s211 = smul.u32 64, %s16
      %p212 = scmp.lt.s32.totalorder %s16, 1
      %s213 = scalar_select %p212, %s16, 1
      %s214 = scalar_lea.vmem %s3, %s213
      %p215 = scmp.lt.s32.totalorder %s16, 1
      %s216 = scalar_select %p215, %s16, 1
      %s217 = scalar_lea.vmem %s4, %s216
      %v219 = vld [vmem:[%s204] sm:$0xf]
      %v220 = vld [vmem:[%s204 + $0x4] sm:$0xf]
      %v221 = vld [vmem:[%s204 + $0x8] sm:$0xf]
      %v222 = vld [vmem:[%s204 + $0xc] sm:$0xf]
      %v223 = vld [vmem:[%s204 + $0x10] sm:$0xf]
      %v224 = vld [vmem:[%s204 + $0x14] sm:$0xf]
      %v225 = vld [vmem:[%s204 + $0x18] sm:$0xf]
      %v226 = vld [vmem:[%s204 + $0x1c] sm:$0xf]
      %v227 = vld [vmem:[%s204 + $0x20] sm:$0xf]
      %v228 = vld [vmem:[%s204 + $0x24] sm:$0xf]
      %v229 = vld [vmem:[%s204 + $0x28] sm:$0xf]
      %v230 = vld [vmem:[%s204 + $0x2c] sm:$0xf]
      %v231 = vld [vmem:[%s204 + $0x30] sm:$0xf]
      %v232 = vld [vmem:[%s204 + $0x34] sm:$0xf]
      %v233 = vld [vmem:[%s204 + $0x38] sm:$0xf]
      %v234 = vld [vmem:[%s204 + $0x3c] sm:$0xf]
      %v235 = vld [vmem:[%s204 + $0x40] sm:$0xf]
      %v236 = vld [vmem:[%s204 + $0x44] sm:$0xf]
      %v237 = vld [vmem:[%s204 + $0x48] sm:$0xf]
      %v238 = vld [vmem:[%s204 + $0x4c] sm:$0xf]
      %v239 = vld [vmem:[%s204 + $0x50] sm:$0xf]
      %v240 = vld [vmem:[%s204 + $0x54] sm:$0xf]
      %v241 = vld [vmem:[%s204 + $0x58] sm:$0xf]
      %v242 = vld [vmem:[%s204 + $0x5c] sm:$0xf]
      %v243 = vld [vmem:[%s204 + $0x60] sm:$0xf]
      %v244 = vld [vmem:[%s204 + $0x64] sm:$0xf]
      %v245 = vld [vmem:[%s204 + $0x68] sm:$0xf]
      %v246 = vld [vmem:[%s204 + $0x6c] sm:$0xf]
      %v247 = vld [vmem:[%s204 + $0x70] sm:$0xf]
      %v248 = vld [vmem:[%s204 + $0x74] sm:$0xf]
      %v249 = vld [vmem:[%s204 + $0x78] sm:$0xf]
      %v250 = vld [vmem:[%s204 + $0x7c] sm:$0xf]
      %v251 = vld [vmem:[%s204 + $0x80] sm:$0xf]
      %v252 = vld [vmem:[%s204 + $0x84] sm:$0xf]
      %v253 = vld [vmem:[%s204 + $0x88] sm:$0xf]
      %v254 = vld [vmem:[%s204 + $0x8c] sm:$0xf]
      %v255 = vld [vmem:[%s204 + $0x90] sm:$0xf]
      %v256 = vld [vmem:[%s204 + $0x94] sm:$0xf]
      %v257 = vld [vmem:[%s204 + $0x98] sm:$0xf]
      %v258 = vld [vmem:[%s204 + $0x9c] sm:$0xf]
      %v259 = vld [vmem:[%s204 + $0xa0] sm:$0xf]
      %v260 = vld [vmem:[%s204 + $0xa4] sm:$0xf]
      %v261 = vld [vmem:[%s204 + $0xa8] sm:$0xf]
      %v262 = vld [vmem:[%s204 + $0xac] sm:$0xf]
      %v263 = vld [vmem:[%s204 + $0xb0] sm:$0xf]
      %v264 = vld [vmem:[%s204 + $0xb4] sm:$0xf]
      %v265 = vld [vmem:[%s204 + $0xb8] sm:$0xf]
      %v266 = vld [vmem:[%s204 + $0xbc] sm:$0xf]
      %v267 = vld [vmem:[%s204 + $0xc0] sm:$0xf]
      %v268 = vld [vmem:[%s204 + $0xc4] sm:$0xf]
      %v269 = vld [vmem:[%s204 + $0xc8] sm:$0xf]
      %v270 = vld [vmem:[%s204 + $0xcc] sm:$0xf]
      %v271 = vld [vmem:[%s204 + $0xd0] sm:$0xf]
      %v272 = vld [vmem:[%s204 + $0xd4] sm:$0xf]
      %v273 = vld [vmem:[%s204 + $0xd8] sm:$0xf]
      %v274 = vld [vmem:[%s204 + $0xdc] sm:$0xf]
      %v275 = vld [vmem:[%s204 + $0xe0] sm:$0xf]
      %v276 = vld [vmem:[%s204 + $0xe4] sm:$0xf]
      %v277 = vld [vmem:[%s204 + $0xe8] sm:$0xf]
      %v278 = vld [vmem:[%s204 + $0xec] sm:$0xf]
      %v279 = vld [vmem:[%s204 + $0xf0] sm:$0xf]
      %v280 = vld [vmem:[%s204 + $0xf4] sm:$0xf]
      %v281 = vld [vmem:[%s204 + $0xf8] sm:$0xf]
      %v282 = vld [vmem:[%s204 + $0xfc] sm:$0xf]
      %v283 = vld [vmem:[%s1] sm:$0xf]
      %v284 = vld [vmem:[%s1 + $0x4] sm:$0xf]
      %v285 = vld [vmem:[%s1 + $0x8] sm:$0xf]
      %v286 = vld [vmem:[%s1 + $0xc] sm:$0xf]
      %v287 = vld [vmem:[%s1 + $0x10] sm:$0xf]
      %v288 = vld [vmem:[%s1 + $0x14] sm:$0xf]
      %v289 = vld [vmem:[%s1 + $0x18] sm:$0xf]
      %v290 = vld [vmem:[%s1 + $0x1c] sm:$0xf]
      %v291 = vld [vmem:[%s1 + $0x20] sm:$0xf]
      %v292 = vld [vmem:[%s1 + $0x24] sm:$0xf]
      %v293 = vld [vmem:[%s1 + $0x28] sm:$0xf]
      %v294 = vld [vmem:[%s1 + $0x2c] sm:$0xf]
      %v295 = vld [vmem:[%s1 + $0x30] sm:$0xf]
      %v296 = vld [vmem:[%s1 + $0x34] sm:$0xf]
      %v297 = vld [vmem:[%s1 + $0x38] sm:$0xf]
      %v298 = vld [vmem:[%s1 + $0x3c] sm:$0xf]
      %v363 = vunpack.c.l.b16 %v219
      %v364 = vunpack.c.l.b16 %v220
      %v365 = vunpack.c.l.b16 %v221
      %v366 = vunpack.c.l.b16 %v222
      %v367 = vunpack.c.l.b16 %v223
      %v368 = vunpack.c.l.b16 %v224
      %v369 = vunpack.c.l.b16 %v225
      %v370 = vunpack.c.l.b16 %v226
      %v371 = vunpack.c.l.b16 %v227
      %v372 = vunpack.c.l.b16 %v228
      %v373 = vunpack.c.l.b16 %v229
      %v374 = vunpack.c.l.b16 %v230
      %v375 = vunpack.c.l.b16 %v231
      %v376 = vunpack.c.l.b16 %v232
      %v377 = vunpack.c.l.b16 %v233
      %v378 = vunpack.c.l.b16 %v234
      %v379 = vunpack.c.l.b16 %v235
      %v380 = vunpack.c.l.b16 %v236
      %v381 = vunpack.c.l.b16 %v237
      %v382 = vunpack.c.l.b16 %v238
      %v383 = vunpack.c.l.b16 %v239
      %v384 = vunpack.c.l.b16 %v240
      %v385 = vunpack.c.l.b16 %v241
      %v386 = vunpack.c.l.b16 %v242
      %v387 = vunpack.c.l.b16 %v243
      %v388 = vunpack.c.l.b16 %v244
      %v389 = vunpack.c.l.b16 %v245
      %v390 = vunpack.c.l.b16 %v246
      %v391 = vunpack.c.l.b16 %v247
      %v392 = vunpack.c.l.b16 %v248
      %v393 = vunpack.c.l.b16 %v249
      %v394 = vunpack.c.l.b16 %v250
      %v395 = vunpack.c.l.b16 %v251
      %v396 = vunpack.c.l.b16 %v252
      %v397 = vunpack.c.l.b16 %v253
      %v398 = vunpack.c.l.b16 %v254
      %v399 = vunpack.c.l.b16 %v255
      %v400 = vunpack.c.l.b16 %v256
      %v401 = vunpack.c.l.b16 %v257
      %v402 = vunpack.c.l.b16 %v258
      %v403 = vunpack.c.l.b16 %v259
      %v404 = vunpack.c.l.b16 %v260
      %v405 = vunpack.c.l.b16 %v261
      %v406 = vunpack.c.l.b16 %v262
      %v407 = vunpack.c.l.b16 %v263
      %v408 = vunpack.c.l.b16 %v264
      %v409 = vunpack.c.l.b16 %v265
      %v410 = vunpack.c.l.b16 %v266
      %v411 = vunpack.c.l.b16 %v267
      %v412 = vunpack.c.l.b16 %v268
      %v413 = vunpack.c.l.b16 %v269
      %v414 = vunpack.c.l.b16 %v270
      %v415 = vunpack.c.l.b16 %v271
      %v416 = vunpack.c.l.b16 %v272
      %v417 = vunpack.c.l.b16 %v273
      %v418 = vunpack.c.l.b16 %v274
      %v419 = vunpack.c.l.b16 %v275
      %v420 = vunpack.c.l.b16 %v276
      %v421 = vunpack.c.l.b16 %v277
      %v422 = vunpack.c.l.b16 %v278
      %v423 = vunpack.c.l.b16 %v279
      %v424 = vunpack.c.l.b16 %v280
      %v425 = vunpack.c.l.b16 %v281
      %v426 = vunpack.c.l.b16 %v282
      %v427 = vpack.c.b16 %v364, %v363
      %v428 = vpack.c.b16 %v366, %v365
      %v429 = vpack.c.b16 %v368, %v367
      %v430 = vpack.c.b16 %v370, %v369
      %v431 = vpack.c.b16 %v372, %v371
      %v432 = vpack.c.b16 %v374, %v373
      %v433 = vpack.c.b16 %v376, %v375
      %v434 = vpack.c.b16 %v378, %v377
      %v435 = vpack.c.b16 %v380, %v379
      %v436 = vpack.c.b16 %v382, %v381
      %v437 = vpack.c.b16 %v384, %v383
      %v438 = vpack.c.b16 %v386, %v385
      %v439 = vpack.c.b16 %v388, %v387
      %v440 = vpack.c.b16 %v390, %v389
      %v441 = vpack.c.b16 %v392, %v391
      %v442 = vpack.c.b16 %v394, %v393
      %v443 = vpack.c.b16 %v396, %v395
      %v444 = vpack.c.b16 %v398, %v397
      %v445 = vpack.c.b16 %v400, %v399
      %v446 = vpack.c.b16 %v402, %v401
      %v447 = vpack.c.b16 %v404, %v403
      %v448 = vpack.c.b16 %v406, %v405
      %v449 = vpack.c.b16 %v408, %v407
      %v450 = vpack.c.b16 %v410, %v409
      %v451 = vpack.c.b16 %v412, %v411
      %v452 = vpack.c.b16 %v414, %v413
      %v453 = vpack.c.b16 %v416, %v415
      %v454 = vpack.c.b16 %v418, %v417
      %v455 = vpack.c.b16 %v420, %v419
      %v456 = vpack.c.b16 %v422, %v421
      %v457 = vpack.c.b16 %v424, %v423
      %v458 = vpack.c.b16 %v426, %v425
      %v507 = vunpack.c.l.b16 %v283
      %v508 = vunpack.c.l.b16 %v284
      %v509 = vunpack.c.l.b16 %v285
      %v510 = vunpack.c.l.b16 %v286
      %v511 = vunpack.c.l.b16 %v287
      %v512 = vunpack.c.l.b16 %v288
      %v513 = vunpack.c.l.b16 %v289
      %v514 = vunpack.c.l.b16 %v290
      %v515 = vunpack.c.l.b16 %v291
      %v516 = vunpack.c.l.b16 %v292
      %v517 = vunpack.c.l.b16 %v293
      %v518 = vunpack.c.l.b16 %v294
      %v519 = vunpack.c.l.b16 %v295
      %v520 = vunpack.c.l.b16 %v296
      %v521 = vunpack.c.l.b16 %v297
      %v522 = vunpack.c.l.b16 %v298
      %v523 = vpack.c.b16 %v508, %v507
      %v524 = vpack.c.b16 %v510, %v509
      %v525 = vpack.c.b16 %v512, %v511
      %v526 = vpack.c.b16 %v514, %v513
      %v527 = vpack.c.b16 %v516, %v515
      %v528 = vpack.c.b16 %v518, %v517
      %v529 = vpack.c.b16 %v520, %v519
      %v530 = vpack.c.b16 %v522, %v521
      %539 = vmatprep.subr.bf16.mxu0 0
      %540 = vmatpush1.bf16.msra.mxu0 %v523
      %541 = vmatprep.subr.bf16.mxu0 0
      %542 = vmatpush1.bf16.msra.mxu0 %v524
      %543 = vmatprep.subr.bf16.mxu0 0
      %544 = vmatpush1.bf16.msra.mxu0 %v525
      %545 = vmatprep.subr.bf16.mxu0 0
      %546 = vmatpush1.bf16.msra.mxu0 %v526
      %547 = vmatprep.subr.bf16.mxu0 0
      %548 = vmatpush1.bf16.msra.mxu0 %v527
      %549 = vmatprep.subr.bf16.mxu0 0
      %550 = vmatpush1.bf16.msra.mxu0 %v528
      %551 = vmatprep.subr.bf16.mxu0 0
      %552 = vmatpush1.bf16.msra.mxu0 %v529
      %553 = vmatprep.subr.bf16.mxu0 0
      %554 = vmatpush1.bf16.msra.mxu0 %v530
      %555 = vmatprep.subr.bf16.mxu0 0
      %556 = vmatpush1.bf16.msra.mxu0 0
      %557 = vmatprep.subr.bf16.mxu0 0
      %558 = vmatpush1.bf16.msra.mxu0 0
      %559 = vmatprep.subr.bf16.mxu0 0
      %560 = vmatpush1.bf16.msra.mxu0 0
      %561 = vmatprep.subr.bf16.mxu0 0
      %562 = vmatpush1.bf16.msra.mxu0 0
      %563 = vmatprep.subr.bf16.mxu0 0
      %564 = vmatpush1.bf16.msra.mxu0 0
      %565 = vmatprep.subr.bf16.mxu0 0
      %566 = vmatpush1.bf16.msra.mxu0 0
      %567 = vmatprep.subr.bf16.mxu0 0
      %568 = vmatpush1.bf16.msra.mxu0 0
      %569 = vmatprep.subr.bf16.mxu0 0
      %570 = vmatpush1.bf16.msra.mxu0 0
      %571 = vmatprep.mubr.bf16.mxu0 0
      %572 = vmatmul.mubr.bf16.gmra.mrb[0].mxu0 %v427
      %v573 = vpop.f32.mrb[0].mxu0
      %v574 = vadd.f32 0.0, %v573
      %v575 = vpop.f32.mrb[0].mxu0
      %v576 = vpop.f32.mrb[0].mxu0
      %v577 = vadd.f32 0.0, %v576
      %v578 = vpop.f32.mrb[0].mxu0
      %579 = vmatprep.mubr.bf16.mxu0 0
      %580 = vmatmul.mubr.bf16.gmra.mrb[0].mxu0 %v428
      %v581 = vpop.f32.mrb[0].mxu0
      %v582 = vadd.f32 0.0, %v581
      %v583 = vpop.f32.mrb[0].mxu0
      %v584 = vpop.f32.mrb[0].mxu0
      %v585 = vadd.f32 0.0, %v584
      %v586 = vpop.f32.mrb[0].mxu0
      %587 = vmatprep.mubr.bf16.mxu0 0
      %588 = vmatmul.mubr.bf16.gmra.mrb[0].mxu0 %v429
      %v589 = vpop.f32.mrb[0].mxu0
      %v590 = vadd.f32 0.0, %v589
      %v591 = vpop.f32.mrb[0].mxu0
      %v592 = vpop.f32.mrb[0].mxu0
      %v593 = vadd.f32 0.0, %v592
      %v594 = vpop.f32.mrb[0].mxu0
      %595 = vmatprep.mubr.bf16.mxu0 0
      %596 = vmatmul.mubr.bf16.gmra.mrb[0].mxu0 %v430
      %v597 = vpop.f32.mrb[0].mxu0
      %v598 = vadd.f32 0.0, %v597
      %v599 = vpop.f32.mrb[0].mxu0
      %v600 = vpop.f32.mrb[0].mxu0
      %v601 = vadd.f32 0.0, %v600
      %v602 = vpop.f32.mrb[0].mxu0
      %603 = vmatprep.mubr.bf16.mxu0 0
      %604 = vmatmul.mubr.bf16.gmra.mrb[0].mxu0 %v431
      %v605 = vpop.f32.mrb[0].mxu0
      %v606 = vadd.f32 0.0, %v605
      %v607 = vpop.f32.mrb[0].mxu0
      %v608 = vpop.f32.mrb[0].mxu0
      %v609 = vadd.f32 0.0, %v608
      %v610 = vpop.f32.mrb[0].mxu0
      %611 = vmatprep.mubr.bf16.mxu0 0
      %612 = vmatmul.mubr.bf16.gmra.mrb[0].mxu0 %v432
      %v613 = vpop.f32.mrb[0].mxu0
      %v614 = vadd.f32 0.0, %v613
      %v615 = vpop.f32.mrb[0].mxu0
      %v616 = vpop.f32.mrb[0].mxu0
      %v617 = vadd.f32 0.0, %v616
      %v618 = vpop.f32.mrb[0].mxu0
      %619 = vmatprep.mubr.bf16.mxu0 0
      %620 = vmatmul.mubr.bf16.gmra.mrb[0].mxu0 %v433
      %v621 = vpop.f32.mrb[0].mxu0
      %v622 = vadd.f32 0.0, %v621
      %v623 = vpop.f32.mrb[0].mxu0
      %v624 = vpop.f32.mrb[0].mxu0
      %v625 = vadd.f32 0.0, %v624
      %v626 = vpop.f32.mrb[0].mxu0
      %627 = vmatprep.mubr.bf16.mxu0 0
      %628 = vmatmul.mubr.bf16.gmra.mrb[0].mxu0 %v434
      %v629 = vpop.f32.mrb[0].mxu0
      %v630 = vadd.f32 0.0, %v629
      %v631 = vpop.f32.mrb[0].mxu0
      %v632 = vpop.f32.mrb[0].mxu0
      %v633 = vadd.f32 0.0, %v632
      %v634 = vpop.f32.mrb[0].mxu0
      %635 = vmatprep.mubr.bf16.mxu0 0
      %636 = vmatmul.mubr.bf16.gmra.mrb[0].mxu0 %v435
      %v637 = vpop.f32.mrb[0].mxu0
      %v638 = vadd.f32 0.0, %v637
      %v639 = vpop.f32.mrb[0].mxu0
      %v640 = vpop.f32.mrb[0].mxu0
      %v641 = vadd.f32 0.0, %v640
      %v642 = vpop.f32.mrb[0].mxu0
      %643 = vmatprep.mubr.bf16.mxu0 0
      %644 = vmatmul.mubr.bf16.gmra.mrb[0].mxu0 %v436
      %v645 = vpop.f32.mrb[0].mxu0
      %v646 = vadd.f32 0.0, %v645
      %v647 = vpop.f32.mrb[0].mxu0
      %v648 = vpop.f32.mrb[0].mxu0
      %v649 = vadd.f32 0.0, %v648
      %v650 = vpop.f32.mrb[0].mxu0
      %651 = vmatprep.mubr.bf16.mxu0 0
      %652 = vmatmul.mubr.bf16.gmra.mrb[0].mxu0 %v437
      %v653 = vpop.f32.mrb[0].mxu0
      %v654 = vadd.f32 0.0, %v653
      %v655 = vpop.f32.mrb[0].mxu0
      %v656 = vpop.f32.mrb[0].mxu0
      %v657 = vadd.f32 0.0, %v656
      %v658 = vpop.f32.mrb[0].mxu0
      %659 = vmatprep.mubr.bf16.mxu0 0
      %660 = vmatmul.mubr.bf16.gmra.mrb[0].mxu0 %v438
      %v661 = vpop.f32.mrb[0].mxu0
      %v662 = vadd.f32 0.0, %v661
      %v663 = vpop.f32.mrb[0].mxu0
      %v664 = vpop.f32.mrb[0].mxu0
      %v665 = vadd.f32 0.0, %v664
      %v666 = vpop.f32.mrb[0].mxu0
      %667 = vmatprep.mubr.bf16.mxu0 0
      %668 = vmatmul.mubr.bf16.gmra.mrb[0].mxu0 %v439
      %v669 = vpop.f32.mrb[0].mxu0
      %v670 = vadd.f32 0.0, %v669
      %v671 = vpop.f32.mrb[0].mxu0
      %v672 = vpop.f32.mrb[0].mxu0
      %v673 = vadd.f32 0.0, %v672
      %v674 = vpop.f32.mrb[0].mxu0
      %675 = vmatprep.mubr.bf16.mxu0 0
      %676 = vmatmul.mubr.bf16.gmra.mrb[0].mxu0 %v440
      %v677 = vpop.f32.mrb[0].mxu0
      %v678 = vadd.f32 0.0, %v677
      %v679 = vpop.f32.mrb[0].mxu0
      %v680 = vpop.f32.mrb[0].mxu0
      %v681 = vadd.f32 0.0, %v680
      %v682 = vpop.f32.mrb[0].mxu0
      %683 = vmatprep.mubr.bf16.mxu0 0
      %684 = vmatmul.mubr.bf16.gmra.mrb[0].mxu0 %v441
      %v685 = vpop.f32.mrb[0].mxu0
      %v686 = vadd.f32 0.0, %v685
      %v687 = vpop.f32.mrb[0].mxu0
      %v688 = vpop.f32.mrb[0].mxu0
      %v689 = vadd.f32 0.0, %v688
      %v690 = vpop.f32.mrb[0].mxu0
      %691 = vmatprep.mubr.bf16.mxu0 0
      %692 = vmatmul.mubr.bf16.gmra.mrb[0].mxu0 %v442
      %v693 = vpop.f32.mrb[0].mxu0
      %v694 = vadd.f32 0.0, %v693
      %v695 = vpop.f32.mrb[0].mxu0
      %v696 = vpop.f32.mrb[0].mxu0
      %v697 = vadd.f32 0.0, %v696
      %v698 = vpop.f32.mrb[0].mxu0
      %699 = vmatprep.mubr.bf16.mxu0 0
      %700 = vmatmul.mubr.bf16.gmra.mrb[0].mxu0 %v443
      %v701 = vpop.f32.mrb[0].mxu0
      %v702 = vadd.f32 0.0, %v701
      %v703 = vpop.f32.mrb[0].mxu0
      %v704 = vpop.f32.mrb[0].mxu0
      %v705 = vadd.f32 0.0, %v704
      %v706 = vpop.f32.mrb[0].mxu0
      %707 = vmatprep.mubr.bf16.mxu0 0
      %708 = vmatmul.mubr.bf16.gmra.mrb[0].mxu0 %v444
      %v709 = vpop.f32.mrb[0].mxu0
      %v710 = vadd.f32 0.0, %v709
      %v711 = vpop.f32.mrb[0].mxu0
      %v712 = vpop.f32.mrb[0].mxu0
      %v713 = vadd.f32 0.0, %v712
      %v714 = vpop.f32.mrb[0].mxu0
      %715 = vmatprep.mubr.bf16.mxu0 0
      %716 = vmatmul.mubr.bf16.gmra.mrb[0].mxu0 %v445
      %v717 = vpop.f32.mrb[0].mxu0
      %v718 = vadd.f32 0.0, %v717
      %v719 = vpop.f32.mrb[0].mxu0
      %v720 = vpop.f32.mrb[0].mxu0
      %v721 = vadd.f32 0.0, %v720
      %v722 = vpop.f32.mrb[0].mxu0
      %723 = vmatprep.mubr.bf16.mxu0 0
      %724 = vmatmul.mubr.bf16.gmra.mrb[0].mxu0 %v446
      %v725 = vpop.f32.mrb[0].mxu0
      %v726 = vadd.f32 0.0, %v725
      %v727 = vpop.f32.mrb[0].mxu0
      %v728 = vpop.f32.mrb[0].mxu0
      %v729 = vadd.f32 0.0, %v728
      %v730 = vpop.f32.mrb[0].mxu0
      %731 = vmatprep.mubr.bf16.mxu0 0
      %732 = vmatmul.mubr.bf16.gmra.mrb[0].mxu0 %v447
      %v733 = vpop.f32.mrb[0].mxu0
      %v734 = vadd.f32 0.0, %v733
      %v735 = vpop.f32.mrb[0].mxu0
      %v736 = vpop.f32.mrb[0].mxu0
      %v737 = vadd.f32 0.0, %v736
      %v738 = vpop.f32.mrb[0].mxu0
      %739 = vmatprep.mubr.bf16.mxu0 0
      %740 = vmatmul.mubr.bf16.gmra.mrb[0].mxu0 %v448
      %v741 = vpop.f32.mrb[0].mxu0
      %v742 = vadd.f32 0.0, %v741
      %v743 = vpop.f32.mrb[0].mxu0
      %v744 = vpop.f32.mrb[0].mxu0
      %v745 = vadd.f32 0.0, %v744
      %v746 = vpop.f32.mrb[0].mxu0
      %747 = vmatprep.mubr.bf16.mxu0 0
      %748 = vmatmul.mubr.bf16.gmra.mrb[0].mxu0 %v449
      %v749 = vpop.f32.mrb[0].mxu0
      %v750 = vadd.f32 0.0, %v749
      %v751 = vpop.f32.mrb[0].mxu0
      %v752 = vpop.f32.mrb[0].mxu0
      %v753 = vadd.f32 0.0, %v752
      %v754 = vpop.f32.mrb[0].mxu0
      %755 = vmatprep.mubr.bf16.mxu0 0
      %756 = vmatmul.mubr.bf16.gmra.mrb[0].mxu0 %v450
      %v757 = vpop.f32.mrb[0].mxu0
      %v758 = vadd.f32 0.0, %v757
      %v759 = vpop.f32.mrb[0].mxu0
      %v760 = vpop.f32.mrb[0].mxu0
      %v761 = vadd.f32 0.0, %v760
      %v762 = vpop.f32.mrb[0].mxu0
      %763 = vmatprep.mubr.bf16.mxu0 0
      %764 = vmatmul.mubr.bf16.gmra.mrb[0].mxu0 %v451
      %v765 = vpop.f32.mrb[0].mxu0
      %v766 = vadd.f32 0.0, %v765
      %v767 = vpop.f32.mrb[0].mxu0
      %v768 = vpop.f32.mrb[0].mxu0
      %v769 = vadd.f32 0.0, %v768
      %v770 = vpop.f32.mrb[0].mxu0
      %771 = vmatprep.mubr.bf16.mxu0 0
      %772 = vmatmul.mubr.bf16.gmra.mrb[0].mxu0 %v452
      %v773 = vpop.f32.mrb[0].mxu0
      %v774 = vadd.f32 0.0, %v773
      %v775 = vpop.f32.mrb[0].mxu0
      %v776 = vpop.f32.mrb[0].mxu0
      %v777 = vadd.f32 0.0, %v776
      %v778 = vpop.f32.mrb[0].mxu0
      %779 = vmatprep.mubr.bf16.mxu0 0
      %780 = vmatmul.mubr.bf16.gmra.mrb[0].mxu0 %v453
      %v781 = vpop.f32.mrb[0].mxu0
      %v782 = vadd.f32 0.0, %v781
      %v783 = vpop.f32.mrb[0].mxu0
      %v784 = vpop.f32.mrb[0].mxu0
      %v785 = vadd.f32 0.0, %v784
      %v786 = vpop.f32.mrb[0].mxu0
      %787 = vmatprep.mubr.bf16.mxu0 0
      %788 = vmatmul.mubr.bf16.gmra.mrb[0].mxu0 %v454
      %v789 = vpop.f32.mrb[0].mxu0
      %v790 = vadd.f32 0.0, %v789
      %v791 = vpop.f32.mrb[0].mxu0
      %v792 = vpop.f32.mrb[0].mxu0
      %v793 = vadd.f32 0.0, %v792
      %v794 = vpop.f32.mrb[0].mxu0
      %795 = vmatprep.mubr.bf16.mxu0 0
      %796 = vmatmul.mubr.bf16.gmra.mrb[0].mxu0 %v455
      %v797 = vpop.f32.mrb[0].mxu0
      %v798 = vadd.f32 0.0, %v797
      %v799 = vpop.f32.mrb[0].mxu0
      %v800 = vpop.f32.mrb[0].mxu0
      %v801 = vadd.f32 0.0, %v800
      %v802 = vpop.f32.mrb[0].mxu0
      %803 = vmatprep.mubr.bf16.mxu0 0
      %804 = vmatmul.mubr.bf16.gmra.mrb[0].mxu0 %v456
      %v805 = vpop.f32.mrb[0].mxu0
      %v806 = vadd.f32 0.0, %v805
      %v807 = vpop.f32.mrb[0].mxu0
      %v808 = vpop.f32.mrb[0].mxu0
      %v809 = vadd.f32 0.0, %v808
      %v810 = vpop.f32.mrb[0].mxu0
      %811 = vmatprep.mubr.bf16.mxu0 0
      %812 = vmatmul.mubr.bf16.gmra.mrb[0].mxu0 %v457
      %v813 = vpop.f32.mrb[0].mxu0
      %v814 = vadd.f32 0.0, %v813
      %v815 = vpop.f32.mrb[0].mxu0
      %v816 = vpop.f32.mrb[0].mxu0
      %v817 = vadd.f32 0.0, %v816
      %v818 = vpop.f32.mrb[0].mxu0
      %819 = vmatprep.mubr.bf16.mxu0 0
      %820 = vmatmul.mubr.bf16.gmra.mrb[0].mxu0 %v458
      %v821 = vpop.f32.mrb[0].mxu0
      %v822 = vadd.f32 0.0, %v821
      %v823 = vpop.f32.mrb[0].mxu0
      %v824 = vpop.f32.mrb[0].mxu0
      %v825 = vadd.f32 0.0, %v824
      %v826 = vpop.f32.mrb[0].mxu0
      %827 = vdwg.mxu0
      %828 = vst [vmem:[%s210] sm:$0xff] %v574
      %829 = vst [vmem:[%s210 + $0x8] sm:$0xff] %v577
      %830 = vst [vmem:[%s210 + $0x10] sm:$0xff] %v582
      %831 = vst [vmem:[%s210 + $0x18] sm:$0xff] %v585
      %832 = vst [vmem:[%s210 + $0x20] sm:$0xff] %v590
      %833 = vst [vmem:[%s210 + $0x28] sm:$0xff] %v593
      %834 = vst [vmem:[%s210 + $0x30] sm:$0xff] %v598
      %835 = vst [vmem:[%s210 + $0x38] sm:$0xff] %v601
      %836 = vst [vmem:[%s210 + $0x40] sm:$0xff] %v606
      %837 = vst [vmem:[%s210 + $0x48] sm:$0xff] %v609
      %838 = vst [vmem:[%s210 + $0x50] sm:$0xff] %v614
      %839 = vst [vmem:[%s210 + $0x58] sm:$0xff] %v617
      %840 = vst [vmem:[%s210 + $0x60] sm:$0xff] %v622
      %841 = vst [vmem:[%s210 + $0x68] sm:$0xff] %v625
      %842 = vst [vmem:[%s210 + $0x70] sm:$0xff] %v630
      %843 = vst [vmem:[%s210 + $0x78] sm:$0xff] %v633
      %844 = vst [vmem:[%s210 + $0x80] sm:$0xff] %v638
      %845 = vst [vmem:[%s210 + $0x88] sm:$0xff] %v641
      %846 = vst [vmem:[%s210 + $0x90] sm:$0xff] %v646
      %847 = vst [vmem:[%s210 + $0x98] sm:$0xff] %v649
      %848 = vst [vmem:[%s210 + $0xa0] sm:$0xff] %v654
      %849 = vst [vmem:[%s210 + $0xa8] sm:$0xff] %v657
      %850 = vst [vmem:[%s210 + $0xb0] sm:$0xff] %v662
      %851 = vst [vmem:[%s210 + $0xb8] sm:$0xff] %v665
      %852 = vst [vmem:[%s210 + $0xc0] sm:$0xff] %v670
      %853 = vst [vmem:[%s210 + $0xc8] sm:$0xff] %v673
      %854 = vst [vmem:[%s210 + $0xd0] sm:$0xff] %v678
      %855 = vst [vmem:[%s210 + $0xd8] sm:$0xff] %v681
      %856 = vst [vmem:[%s210 + $0xe0] sm:$0xff] %v686
      %857 = vst [vmem:[%s210 + $0xe8] sm:$0xff] %v689
      %858 = vst [vmem:[%s210 + $0xf0] sm:$0xff] %v694
      %859 = vst [vmem:[%s210 + $0xf8] sm:$0xff] %v697
      %860 = vst [vmem:[%s210 + $0x100] sm:$0xff] %v702
      %861 = vst [vmem:[%s210 + $0x108] sm:$0xff] %v705
      %862 = vst [vmem:[%s210 + $0x110] sm:$0xff] %v710
      %863 = vst [vmem:[%s210 + $0x118] sm:$0xff] %v713
      %864 = vst [vmem:[%s210 + $0x120] sm:$0xff] %v718
      %865 = vst [vmem:[%s210 + $0x128] sm:$0xff] %v721
      %866 = vst [vmem:[%s210 + $0x130] sm:$0xff] %v726
      %867 = vst [vmem:[%s210 + $0x138] sm:$0xff] %v729
      %868 = vst [vmem:[%s210 + $0x140] sm:$0xff] %v734
      %869 = vst [vmem:[%s210 + $0x148] sm:$0xff] %v737
      %870 = vst [vmem:[%s210 + $0x150] sm:$0xff] %v742
      %871 = vst [vmem:[%s210 + $0x158] sm:$0xff] %v745
      %872 = vst [vmem:[%s210 + $0x160] sm:$0xff] %v750
      %873 = vst [vmem:[%s210 + $0x168] sm:$0xff] %v753
      %874 = vst [vmem:[%s210 + $0x170] sm:$0xff] %v758
      %875 = vst [vmem:[%s210 + $0x178] sm:$0xff] %v761
      %876 = vst [vmem:[%s210 + $0x180] sm:$0xff] %v766
      %877 = vst [vmem:[%s210 + $0x188] sm:$0xff] %v769
      %878 = vst [vmem:[%s210 + $0x190] sm:$0xff] %v774
      %879 = vst [vmem:[%s210 + $0x198] sm:$0xff] %v777
      %880 = vst [vmem:[%s210 + $0x1a0] sm:$0xff] %v782
      %881 = vst [vmem:[%s210 + $0x1a8] sm:$0xff] %v785
      %882 = vst [vmem:[%s210 + $0x1b0] sm:$0xff] %v790
      %883 = vst [vmem:[%s210 + $0x1b8] sm:$0xff] %v793
      %884 = vst [vmem:[%s210 + $0x1c0] sm:$0xff] %v798
      %885 = vst [vmem:[%s210 + $0x1c8] sm:$0xff] %v801
      %886 = vst [vmem:[%s210 + $0x1d0] sm:$0xff] %v806
      %887 = vst [vmem:[%s210 + $0x1d8] sm:$0xff] %v809
      %888 = vst [vmem:[%s210 + $0x1e0] sm:$0xff] %v814
      %889 = vst [vmem:[%s210 + $0x1e8] sm:$0xff] %v817
      %890 = vst [vmem:[%s210 + $0x1f0] sm:$0xff] %v822
      %891 = vst [vmem:[%s210 + $0x1f8] sm:$0xff] %v825
      %v892 = vadd.f32 %v574, %v577
      %v893 = vadd.f32 %v892, %v582
      %v894 = vadd.f32 %v893, %v585
      %v895 = vadd.f32 %v894, %v590
      %v896 = vadd.f32 %v895, %v593
      %v897 = vadd.f32 %v896, %v598
      %v898 = vadd.f32 %v897, %v601
      %v899 = vadd.f32 %v898, %v606
      %v900 = vadd.f32 %v899, %v609
      %v901 = vadd.f32 %v900, %v614
      %v902 = vadd.f32 %v901, %v617
      %v903 = vadd.f32 %v902, %v622
      %v904 = vadd.f32 %v903, %v625
      %v905 = vadd.f32 %v904, %v630
      %v906 = vadd.f32 %v905, %v633
      %v907 = vadd.f32 %v906, %v638
      %v908 = vadd.f32 %v907, %v641
      %v909 = vadd.f32 %v908, %v646
      %v910 = vadd.f32 %v909, %v649
      %v911 = vadd.f32 %v910, %v654
      %v912 = vadd.f32 %v911, %v657
      %v913 = vadd.f32 %v912, %v662
      %v914 = vadd.f32 %v913, %v665
      %v915 = vadd.f32 %v914, %v670
      %v916 = vadd.f32 %v915, %v673
      %v917 = vadd.f32 %v916, %v678
      %v918 = vadd.f32 %v917, %v681
      %v919 = vadd.f32 %v918, %v686
      %v920 = vadd.f32 %v919, %v689
      %v921 = vadd.f32 %v920, %v694
      %v922 = vadd.f32 %v921, %v697
      %v923 = vadd.f32 %v922, %v702
      %v924 = vadd.f32 %v923, %v705
      %v925 = vadd.f32 %v924, %v710
      %v926 = vadd.f32 %v925, %v713
      %v927 = vadd.f32 %v926, %v718
      %v928 = vadd.f32 %v927, %v721
      %v929 = vadd.f32 %v928, %v726
      %v930 = vadd.f32 %v929, %v729
      %v931 = vadd.f32 %v930, %v734
      %v932 = vadd.f32 %v931, %v737
      %v933 = vadd.f32 %v932, %v742
      %v934 = vadd.f32 %v933, %v745
      %v935 = vadd.f32 %v934, %v750
      %v936 = vadd.f32 %v935, %v753
      %v937 = vadd.f32 %v936, %v758
      %v938 = vadd.f32 %v937, %v761
      %v939 = vadd.f32 %v938, %v766
      %v940 = vadd.f32 %v939, %v769
      %v941 = vadd.f32 %v940, %v774
      %v942 = vadd.f32 %v941, %v777
      %v943 = vadd.f32 %v942, %v782
      %v944 = vadd.f32 %v943, %v785
      %v945 = vadd.f32 %v944, %v790
      %v946 = vadd.f32 %v945, %v793
      %v947 = vadd.f32 %v946, %v798
      %v948 = vadd.f32 %v947, %v801
      %v949 = vadd.f32 %v948, %v806
      %v950 = vadd.f32 %v949, %v809
      %v951 = vadd.f32 %v950, %v814
      %v952 = vadd.f32 %v951, %v817
      %v953 = vadd.f32 %v952, %v822
      %v954 = vadd.f32 %v953, %v825
      %v955 = vrot.slane %v954, 4
      %v956 = vadd.f32 %v954, %v955
      %v957 = vrot.slane %v956, 2
      %v958 = vadd.f32 %v956, %v957
      %v959 = vrot.slane %v958, 1
      %v960 = vadd.f32 %v958, %v959
      %961 = vst [vmem:[%s214] sm:$0x1] %v960
      %v962 = vmul.f32 %v574, %v574
      %v963 = vmul.f32 %v577, %v577
      %v964 = vmul.f32 %v582, %v582
      %v965 = vmul.f32 %v585, %v585
      %v966 = vmul.f32 %v590, %v590
      %v967 = vmul.f32 %v593, %v593
      %v968 = vmul.f32 %v598, %v598
      %v969 = vmul.f32 %v601, %v601
      %v970 = vmul.f32 %v606, %v606
      %v971 = vmul.f32 %v609, %v609
      %v972 = vmul.f32 %v614, %v614
      %v973 = vmul.f32 %v617, %v617
      %v974 = vmul.f32 %v622, %v622
      %v975 = vmul.f32 %v625, %v625
      %v976 = vmul.f32 %v630, %v630
      %v977 = vmul.f32 %v633, %v633
      %v978 = vmul.f32 %v638, %v638
      %v979 = vmul.f32 %v641, %v641
      %v980 = vmul.f32 %v646, %v646
      %v981 = vmul.f32 %v649, %v649
      %v982 = vmul.f32 %v654, %v654
      %v983 = vmul.f32 %v657, %v657
      %v984 = vmul.f32 %v662, %v662
      %v985 = vmul.f32 %v665, %v665
      %v986 = vmul.f32 %v670, %v670
      %v987 = vmul.f32 %v673, %v673
      %v988 = vmul.f32 %v678, %v678
      %v989 = vmul.f32 %v681, %v681
      %v990 = vmul.f32 %v686, %v686
      %v991 = vmul.f32 %v689, %v689
      %v992 = vmul.f32 %v694, %v694
      %v993 = vmul.f32 %v697, %v697
      %v994 = vmul.f32 %v702, %v702
      %v995 = vmul.f32 %v705, %v705
      %v996 = vmul.f32 %v710, %v710
      %v997 = vmul.f32 %v713, %v713
      %v998 = vmul.f32 %v718, %v718
      %v999 = vmul.f32 %v721, %v721
      %v1000 = vmul.f32 %v726, %v726
      %v1001 = vmul.f32 %v729, %v729
      %v1002 = vmul.f32 %v734, %v734
      %v1003 = vmul.f32 %v737, %v737
      %v1004 = vmul.f32 %v742, %v742
      %v1005 = vmul.f32 %v745, %v745
      %v1006 = vmul.f32 %v750, %v750
      %v1007 = vmul.f32 %v753, %v753
      %v1008 = vmul.f32 %v758, %v758
      %v1009 = vmul.f32 %v761, %v761
      %v1010 = vmul.f32 %v766, %v766
      %v1011 = vmul.f32 %v769, %v769
      %v1012 = vmul.f32 %v774, %v774
      %v1013 = vmul.f32 %v777, %v777
      %v1014 = vmul.f32 %v782, %v782
      %v1015 = vmul.f32 %v785, %v785
      %v1016 = vmul.f32 %v790, %v790
      %v1017 = vmul.f32 %v793, %v793
      %v1018 = vmul.f32 %v798, %v798
      %v1019 = vmul.f32 %v801, %v801
      %v1020 = vmul.f32 %v806, %v806
      %v1021 = vmul.f32 %v809, %v809
      %v1022 = vmul.f32 %v814, %v814
      %v1023 = vmul.f32 %v817, %v817
      %v1024 = vmul.f32 %v822, %v822
      %v1025 = vmul.f32 %v825, %v825
      %v1026 = vadd.f32 %v962, %v963
      %v1027 = vadd.f32 %v1026, %v964
      %v1028 = vadd.f32 %v1027, %v965
      %v1029 = vadd.f32 %v1028, %v966
      %v1030 = vadd.f32 %v1029, %v967
      %v1031 = vadd.f32 %v1030, %v968
      %v1032 = vadd.f32 %v1031, %v969
      %v1033 = vadd.f32 %v1032, %v970
      %v1034 = vadd.f32 %v1033, %v971
      %v1035 = vadd.f32 %v1034, %v972
      %v1036 = vadd.f32 %v1035, %v973
      %v1037 = vadd.f32 %v1036, %v974
      %v1038 = vadd.f32 %v1037, %v975
      %v1039 = vadd.f32 %v1038, %v976
      %v1040 = vadd.f32 %v1039, %v977
      %v1041 = vadd.f32 %v1040, %v978
      %v1042 = vadd.f32 %v1041, %v979
      %v1043 = vadd.f32 %v1042, %v980
      %v1044 = vadd.f32 %v1043, %v981
      %v1045 = vadd.f32 %v1044, %v982
      %v1046 = vadd.f32 %v1045, %v983
      %v1047 = vadd.f32 %v1046, %v984
      %v1048 = vadd.f32 %v1047, %v985
      %v1049 = vadd.f32 %v1048, %v986
      %v1050 = vadd.f32 %v1049, %v987
      %v1051 = vadd.f32 %v1050, %v988
      %v1052 = vadd.f32 %v1051, %v989
      %v1053 = vadd.f32 %v1052, %v990
      %v1054 = vadd.f32 %v1053, %v991
      %v1055 = vadd.f32 %v1054, %v992
      %v1056 = vadd.f32 %v1055, %v993
      %v1057 = vadd.f32 %v1056, %v994
      %v1058 = vadd.f32 %v1057, %v995
      %v1059 = vadd.f32 %v1058, %v996
      %v1060 = vadd.f32 %v1059, %v997
      %v1061 = vadd.f32 %v1060, %v998
      %v1062 = vadd.f32 %v1061, %v999
      %v1063 = vadd.f32 %v1062, %v1000
      %v1064 = vadd.f32 %v1063, %v1001
      %v1065 = vadd.f32 %v1064, %v1002
      %v1066 = vadd.f32 %v1065, %v1003
      %v1067 = vadd.f32 %v1066, %v1004
      %v1068 = vadd.f32 %v1067, %v1005
      %v1069 = vadd.f32 %v1068, %v1006
      %v1070 = vadd.f32 %v1069, %v1007
      %v1071 = vadd.f32 %v1070, %v1008
      %v1072 = vadd.f32 %v1071, %v1009
      %v1073 = vadd.f32 %v1072, %v1010
      %v1074 = vadd.f32 %v1073, %v1011
      %v1075 = vadd.f32 %v1074, %v1012
      %v1076 = vadd.f32 %v1075, %v1013
      %v1077 = vadd.f32 %v1076, %v1014
      %v1078 = vadd.f32 %v1077, %v1015
      %v1079 = vadd.f32 %v1078, %v1016
      %v1080 = vadd.f32 %v1079, %v1017
      %v1081 = vadd.f32 %v1080, %v1018
      %v1082 = vadd.f32 %v1081, %v1019
      %v1083 = vadd.f32 %v1082, %v1020
      %v1084 = vadd.f32 %v1083, %v1021
      %v1085 = vadd.f32 %v1084, %v1022
      %v1086 = vadd.f32 %v1085, %v1023
      %v1087 = vadd.f32 %v1086, %v1024
      %v1088 = vadd.f32 %v1087, %v1025
      %v1089 = vrot.slane %v1088, 4
      %v1090 = vadd.f32 %v1088, %v1089
      %v1091 = vrot.slane %v1090, 2
      %v1092 = vadd.f32 %v1090, %v1091
      %v1093 = vrot.slane %v1092, 1
      %v1094 = vadd.f32 %v1092, %v1093
      %1095 = vst [vmem:[%s217] sm:$0x1] %v1094
      %s1096 = smul.u32 64, %s16
      %p1097 = scmp.lt.s32.totalorder %s1096, 127
      %s1098 = scalar_select %p1097, %s1096, 127
      %s1099 = smul.addr %s1098, 8
      %s1100 = scalar_lea.vmem %s2, %s1099
      %p1101 = scmp.lt.s32.totalorder %s16, 1
      %s1102 = scalar_select %p1101, %s16, 1
      %s1103 = scalar_lea.vmem %s3, %s1102
      %p1104 = scmp.lt.s32.totalorder %s16, 1
      %s1105 = scalar_select %p1104, %s16, 1
      %s1106 = scalar_lea.vmem %s4, %s1105
      // Predicated region
      $region29: #{resblock_v2_forward.4} parent=27 // pred_check
        %p1107 = pneg %p81
      $region30: #{resblock_v2_forward.4} parent=27 // pred_check_branch
        %1109 = sbr.rel (%p1107) target = $region32
      $region31: #{resblock_v2_forward.4} parent=27 // pred_region
        %s1110 = smul.u32 64, %s16
      $region32: #{resblock_v2_forward.4} parent=27 // pred_fallthru
        _
      // Predicated region
      $region33: #{resblock_v2_forward.4} parent=27 // pred_check
        %p1111 = pneg %p107
      $region34: #{resblock_v2_forward.4} parent=27 // pred_check_branch
        %1113 = sbr.rel (%p1111) target = $region36
      $region35: #{resblock_v2_forward.4} parent=27 // pred_region
        _
      $region36: #{resblock_v2_forward.4} parent=27 // pred_fallthru
        _
      // Predicated region
      $region37: #{resblock_v2_forward.4} parent=27 // pred_check
        %p1114 = pneg %p133
      $region38: #{resblock_v2_forward.4} parent=27 // pred_check_branch
        %1116 = sbr.rel (%p1114) target = $region40
      $region39: #{resblock_v2_forward.4} parent=27 // pred_region
        _
      $region40: #{resblock_v2_forward.4} parent=27 // pred_fallthru
        _
    $region28: #{resblock_v2_forward.4} parent=5 // pred_fallthru
      _
    %p1117 = scmp.le.s32.totalorder 2, %s11
    // Predicated region
    $region41: #{resblock_v2_forward.4} parent=5 // pred_check
      %p1118 = pneg %p1117
    $region42: #{resblock_v2_forward.4} parent=5 // pred_check_branch
      %1120 = sbr.rel (%p1118) target = $region44
    $region43: #{resblock_v2_forward.4} parent=5 // pred_region
      %s1121 = ssub.s32 %s11, 2
      // Predicated region
      $region45: #{resblock_v2_forward.4} parent=43 // pred_check
        %p1122 = pneg %p87
      $region46: #{resblock_v2_forward.4} parent=43 // pred_check_branch
        %1124 = sbr.rel (%p1122) target = $region48
      $region47: #{resblock_v2_forward.4} parent=43 // pred_region
        %s1125 = smul.u32 64, %s17
        %p1126 = scmp.lt.s32.totalorder %s1125, 127
        %s1127 = scalar_select %p1126, %s1125, 127
        %s1128 = smul.addr %s1127, 8
        %s1129 = scalar_lea.vmem %s2, %s1128
      $region48: #{resblock_v2_forward.4} parent=43 // pred_fallthru
        _
      // Predicated region
      $region49: #{resblock_v2_forward.4} parent=43 // pred_check
        %p1130 = pneg %p113
      $region50: #{resblock_v2_forward.4} parent=43 // pred_check_branch
        %1132 = sbr.rel (%p1130) target = $region52
      $region51: #{resblock_v2_forward.4} parent=43 // pred_region
        %p1133 = scmp.lt.s32.totalorder %s17, 1
        %s1134 = scalar_select %p1133, %s17, 1
        %s1135 = scalar_lea.vmem %s3, %s1134
      $region52: #{resblock_v2_forward.4} parent=43 // pred_fallthru
        _
      // Predicated region
      $region53: #{resblock_v2_forward.4} parent=43 // pred_check
        %p1136 = pneg %p139
      $region54: #{resblock_v2_forward.4} parent=43 // pred_check_branch
        %1138 = sbr.rel (%p1136) target = $region56
      $region55: #{resblock_v2_forward.4} parent=43 // pred_region
        %p1139 = scmp.lt.s32.totalorder %s17, 1
        %s1140 = scalar_select %p1139, %s17, 1
        %s1141 = scalar_lea.vmem %s4, %s1140
      $region56: #{resblock_v2_forward.4} parent=43 // pred_fallthru
        _
    $region44: #{resblock_v2_forward.4} parent=5 // pred_fallthru
      _
  $region6: #{resblock_v2_forward.4} parent=0 // loop_footer
    %s15 = sadd.s32 1, %s11
  $region7: #{resblock_v2_forward.4} parent=0 // loop_footer_branch
    %10 = sbr.rel target = $region3
  $region8: #{resblock_v2_forward.4} parent=0 // loop_exit
    _

// kernel: resblock_v2_forward.6
$region0: #{resblock_v2_forward.6}
  #allocation0 [shape = 'u32[]', space=smem, size = 0x4, offset = 0x4, fixed_abs, tag = 'smem constant byte address 0x4 - core index']
  #allocation1 [shape = 'u32[144,128]{1,0:T(1,128)}', space=vmem, size = 0x12000, scoped, tag = 'internal scratch']
  %s0 = inlined_call_operand.vmem [shape: bf16[1024,256], index: 0, kind: input, shape index: {}]
  %s1 = inlined_call_operand.vmem [shape: bf16[256,128], index: 1, kind: input, shape index: {}]
  %s2 = inlined_call_operand.vmem [shape: f32[1024,128], index: 2, kind: output, shape index: {0}]
  %s3 = inlined_call_operand.vmem [shape: f32[2,1,128], index: 3, kind: output, shape index: {1}]
  %s4 = inlined_call_operand.vmem [shape: f32[2,1,128], index: 4, kind: output, shape index: {2}]
  %5 = xla_tuple %s2, %s3, %s4
  %s6 = sld [smem:[#allocation0]]
  $region57: #{resblock_v2_forward.6} parent=0
    _
  %s8 = ssub.s32 1, %s6
  %s9 = scalar_select 0, %s8, %s6
  loop: start=0, step=1, limit=4
  $region2: #{resblock_v2_forward.6} parent=0 // loop_pre_header
    _
  $region3: #{resblock_v2_forward.6} parent=0 // loop_header
    %s11 = sphi 0, %s15
    %p12 = scmp.ge.s32.totalorder %s11, 4
    %s21 = sphi 0, %s23
    %s24 = sphi 0, %s21
    %s25 = sphi 0, %s24
    %s41 = sphi 0, %s25
    %s45 = sphi 0, %s45
    %s47 = sphi 0, %s45
    %s48 = sphi 0, %s47
    %s62 = sphi 0, %s48
    %s68 = sphi 0, %s70
    %s71 = sphi 0, %s68
    %s72 = sphi 0, %s71
    %s88 = sphi 0, %s72
    %s94 = sphi 0, %s96
    %s97 = sphi 0, %s94
    %s98 = sphi 0, %s97
    %s114 = sphi 0, %s98
    %s120 = sphi 0, %s122
    %s123 = sphi 0, %s120
    %s124 = sphi 0, %s123
    %s140 = sphi 0, %s124
  $region4: #{resblock_v2_forward.6} parent=0 // loop_header_branch
    %14 = sbr.rel (%p12) target = $region8
  $region5: #{resblock_v2_forward.6} parent=0 // loop_body
    %s16 = ssub.s32 %s11, 1
    %s17 = ssub.s32 %s11, 2
    %s18 = sadd.s32 %s11, 1
    %s19 = ssub.s32 %s11, %s18
    %p20 = scmp.eq.s32.totalorder %s19, 0
    %s22 = sadd.s32 %s21, 1
    %s23 = scalar_select %p20, %s21, %s22
    %p26 = pneg %p20
    %p27 = scmp.eq.s32.totalorder %s11, 1
    %p28 = por %p26, %p27
    %p29 = scmp.ne.s32.totalorder %s21, %s24
    %p30 = scmp.eq.s32.totalorder %s11, 0
    %p31 = por %p29, %p30
    %p32 = scmp.ne.s32.totalorder %s21, %s24
    %p33 = scmp.eq.s32.totalorder %s16, 1
    %p34 = por %p32, %p33
    %p35 = scmp.ne.s32.totalorder %s24, %s25
    %p36 = scmp.eq.s32.totalorder %s16, 0
    %p37 = por %p35, %p36
    %p38 = scmp.ne.s32.totalorder %s24, %s25
    %p39 = scmp.eq.s32.totalorder %s17, 1
    %p40 = por %p38, %p39
    %p42 = scmp.ne.s32.totalorder %s25, %s41
    %p43 = scmp.eq.s32.totalorder %s17, 0
    %p44 = por %p42, %p43
    %s46 = sadd.s32 %s45, 1
    %p49 = scmp.eq.s32.totalorder %s11, 1
    %p50 = scmp.ne.s32.totalorder %s45, %s47
    %p51 = scmp.eq.s32.totalorder %s11, 0
    %p52 = por %p50, %p51
    %p53 = scmp.ne.s32.totalorder %s45, %s47
    %p54 = scmp.eq.s32.totalorder %s16, 1
    %p55 = por %p53, %p54
    %p56 = scmp.ne.s32.totalorder %s47, %s48
    %p57 = scmp.eq.s32.totalorder %s16, 0
    %p58 = por %p56, %p57
    %p59 = scmp.ne.s32.totalorder %s47, %s48
    %p60 = scmp.eq.s32.totalorder %s17, 1
    %p61 = por %p59, %p60
    %p63 = scmp.ne.s32.totalorder %s48, %s62
    %p64 = scmp.eq.s32.totalorder %s17, 0
    %p65 = por %p63, %p64
    %s66 = ssub.s32 %s11, %s18
    %p67 = scmp.eq.s32.totalorder %s66, 0
    %s69 = sadd.s32 %s68, 1
    %s70 = scalar_select %p67, %s68, %s69
    %p73 = pneg %p67
    %p74 = scmp.eq.s32.totalorder %s11, 1
    %p75 = por %p73, %p74
    %p76 = scmp.ne.s32.totalorder %s68, %s71
    %p77 = scmp.eq.s32.totalorder %s11, 0
    %p78 = por %p76, %p77
    %p79 = scmp.ne.s32.totalorder %s68, %s71
    %p80 = scmp.eq.s32.totalorder %s16, 1
    %p81 = por %p79, %p80
    %p82 = scmp.ne.s32.totalorder %s71, %s72
    %p83 = scmp.eq.s32.totalorder %s16, 0
    %p84 = por %p82, %p83
    %p85 = scmp.ne.s32.totalorder %s71, %s72
    %p86 = scmp.eq.s32.totalorder %s17, 1
    %p87 = por %p85, %p86
    %p89 = scmp.ne.s32.totalorder %s72, %s88
    %p90 = scmp.eq.s32.totalorder %s17, 0
    %p91 = por %p89, %p90
    %s92 = ssub.s32 %s11, %s18
    %p93 = scmp.eq.s32.totalorder %s92, 0
    %s95 = sadd.s32 %s94, 1
    %s96 = scalar_select %p93, %s94, %s95
    %p99 = pneg %p93
    %p100 = scmp.eq.s32.totalorder %s11, 1
    %p101 = por %p99, %p100
    %p102 = scmp.ne.s32.totalorder %s94, %s97
    %p103 = scmp.eq.s32.totalorder %s11, 0
    %p104 = por %p102, %p103
    %p105 = scmp.ne.s32.totalorder %s94, %s97
    %p106 = scmp.eq.s32.totalorder %s16, 1
    %p107 = por %p105, %p106
    %p108 = scmp.ne.s32.totalorder %s97, %s98
    %p109 = scmp.eq.s32.totalorder %s16, 0
    %p110 = por %p108, %p109
    %p111 = scmp.ne.s32.totalorder %s97, %s98
    %p112 = scmp.eq.s32.totalorder %s17, 1
    %p113 = por %p111, %p112
    %p115 = scmp.ne.s32.totalorder %s98, %s114
    %p116 = scmp.eq.s32.totalorder %s17, 0
    %p117 = por %p115, %p116
    %s118 = ssub.s32 %s11, %s18
    %p119 = scmp.eq.s32.totalorder %s118, 0
    %s121 = sadd.s32 %s120, 1
    %s122 = scalar_select %p119, %s120, %s121
    %p125 = pneg %p119
    %p126 = scmp.eq.s32.totalorder %s11, 1
    %p127 = por %p125, %p126
    %p128 = scmp.ne.s32.totalorder %s120, %s123
    %p129 = scmp.eq.s32.totalorder %s11, 0
    %p130 = por %p128, %p129
    %p131 = scmp.ne.s32.totalorder %s120, %s123
    %p132 = scmp.eq.s32.totalorder %s16, 1
    %p133 = por %p131, %p132
    %p134 = scmp.ne.s32.totalorder %s123, %s124
    %p135 = scmp.eq.s32.totalorder %s16, 0
    %p136 = por %p134, %p135
    %p137 = scmp.ne.s32.totalorder %s123, %s124
    %p138 = scmp.eq.s32.totalorder %s17, 1
    %p139 = por %p137, %p138
    %p141 = scmp.ne.s32.totalorder %s124, %s140
    %p142 = scmp.eq.s32.totalorder %s17, 0
    %p143 = por %p141, %p142
    %p144 = scmp.le.s32.totalorder 1, %s11
    %p145 = scmp.lt.s32.totalorder %s11, 3
    %p146 = pnand %p144, %p145
    %p147 = pneg %p146
    // Predicated region
    $region9: #{resblock_v2_forward.6} parent=5 // pred_check
      _
    $region10: #{resblock_v2_forward.6} parent=5 // pred_check_branch
      %149 = sbr.rel (%p146) target = $region12
    $region11: #{resblock_v2_forward.6} parent=5 // pred_region
      %s150 = ssub.s32 %s11, 1
      // Predicated region
      $region13: #{resblock_v2_forward.6} parent=11 // pred_check
        %p151 = pneg %p58
      $region14: #{resblock_v2_forward.6} parent=11 // pred_check_branch
        %153 = sbr.rel (%p151) target = $region16
      $region15: #{resblock_v2_forward.6} parent=11 // pred_region
        _
      $region16: #{resblock_v2_forward.6} parent=11 // pred_fallthru
        _
    $region12: #{resblock_v2_forward.6} parent=5 // pred_fallthru
      _
    %p154 = scmp.lt.s32.totalorder %s11, 2
    // Predicated region
    $region17: #{resblock_v2_forward.6} parent=5 // pred_check
      %p155 = pneg %p154
    $region18: #{resblock_v2_forward.6} parent=5 // pred_check_branch
      %157 = sbr.rel (%p155) target = $region20
    $region19: #{resblock_v2_forward.6} parent=5 // pred_region
      // Predicated region
      $region21: #{resblock_v2_forward.6} parent=19 // pred_check
        %p158 = pneg %p31
      $region22: #{resblock_v2_forward.6} parent=19 // pred_check_branch
        %160 = sbr.rel (%p158) target = $region24
      $region23: #{resblock_v2_forward.6} parent=19 // pred_region
        %s161 = smul.u32 64, %s11
        %p162 = scmp.lt.s32.totalorder %s161, 127
        %s163 = scalar_select %p162, %s161, 127
        %s164 = smul.addr %s163, 2
        %s165 = smul.addr %s164, 4
        %s166 = scalar_lea.vmem %s0, %s165
        %s167 = smul.u32 64, %s11
      $region24: #{resblock_v2_forward.6} parent=19 // pred_fallthru
        _
    $region20: #{resblock_v2_forward.6} parent=5 // pred_fallthru
      _
    %p168 = scmp.le.s32.totalorder 1, %s11
    %p169 = scmp.lt.s32.totalorder %s11, 3
    %p170 = pnand %p168, %p169
    %p171 = pneg %p170
    // Predicated region
    $region25: #{resblock_v2_forward.6} parent=5 // pred_check
      _
    $region26: #{resblock_v2_forward.6} parent=5 // pred_check_branch
      %173 = sbr.rel (%p170) target = $region28
    $region27: #{resblock_v2_forward.6} parent=5 // pred_region
      %s174 = ssub.s32 %s11, 1
      %s175 = smul.u32 64, %s16
      %p176 = scmp.lt.s32.totalorder %s175, 127
      %s177 = scalar_select %p176, %s175, 127
      %s178 = smul.addr %s177, 2
      %s179 = smul.addr %s178, 4
      %s180 = scalar_lea.vmem %s0, %s179
      %p181 = pneg %p37
      %p182 = pneg %p34
      %p183 = pneg %p58
      %p184 = pneg %p55
      %p185 = pneg %p84
      %p186 = pneg %p81
      %s187 = smul.u32 64, %s16
      %p188 = scmp.lt.s32.totalorder %s187, 127
      %s189 = scalar_select %p188, %s187, 127
      %s190 = smul.addr %s189, 8
      %s191 = scalar_lea.vmem %s2, %s190
      %p192 = pneg %p110
      %p193 = pneg %p107
      %p194 = scmp.lt.s32.totalorder %s16, 1
      %s195 = scalar_select %p194, %s16, 1
      %s196 = scalar_lea.vmem %s3, %s195
      %p197 = pneg %p136
      %p198 = pneg %p133
      %p199 = scmp.lt.s32.totalorder %s16, 1
      %s200 = scalar_select %p199, %s16, 1
      %s201 = scalar_lea.vmem %s4, %s200
      %s202 = smul.u32 64, %s16
      %p203 = scmp.lt.s32.totalorder %s202, 127
      %s204 = scalar_select %p203, %s202, 127
      %s205 = smul.addr %s204, 2
      %s206 = smul.addr %s205, 4
      %s207 = scalar_lea.vmem %s0, %s206
      %s208 = smul.u32 64, %s16
      %s209 = smul.u32 64, %s16
      %p210 = scmp.lt.s32.totalorder %s209, 127
      %s211 = scalar_select %p210, %s209, 127
      %s212 = smul.addr %s211, 8
      %s213 = scalar_lea.vmem %s2, %s212
      %s214 = smul.u32 64, %s16
      %p215 = scmp.lt.s32.totalorder %s16, 1
      %s216 = scalar_select %p215, %s16, 1
      %s217 = scalar_lea.vmem %s3, %s216
      %p218 = scmp.lt.s32.totalorder %s16, 1
      %s219 = scalar_select %p218, %s16, 1
      %s220 = scalar_lea.vmem %s4, %s219
      %v222 = vld [vmem:[%s207] sm:$0xff]
      %v223 = vld [vmem:[%s207 + $0x8] sm:$0xff]
      %v224 = vld [vmem:[%s207 + $0x10] sm:$0xff]
      %v225 = vld [vmem:[%s207 + $0x18] sm:$0xff]
      %v226 = vld [vmem:[%s207 + $0x20] sm:$0xff]
      %v227 = vld [vmem:[%s207 + $0x28] sm:$0xff]
      %v228 = vld [vmem:[%s207 + $0x30] sm:$0xff]
      %v229 = vld [vmem:[%s207 + $0x38] sm:$0xff]
      %v230 = vld [vmem:[%s207 + $0x40] sm:$0xff]
      %v231 = vld [vmem:[%s207 + $0x48] sm:$0xff]
      %v232 = vld [vmem:[%s207 + $0x50] sm:$0xff]
      %v233 = vld [vmem:[%s207 + $0x58] sm:$0xff]
      %v234 = vld [vmem:[%s207 + $0x60] sm:$0xff]
      %v235 = vld [vmem:[%s207 + $0x68] sm:$0xff]
      %v236 = vld [vmem:[%s207 + $0x70] sm:$0xff]
      %v237 = vld [vmem:[%s207 + $0x78] sm:$0xff]
      %v238 = vld [vmem:[%s207 + $0x80] sm:$0xff]
      %v239 = vld [vmem:[%s207 + $0x88] sm:$0xff]
      %v240 = vld [vmem:[%s207 + $0x90] sm:$0xff]
      %v241 = vld [vmem:[%s207 + $0x98] sm:$0xff]
      %v242 = vld [vmem:[%s207 + $0xa0] sm:$0xff]
      %v243 = vld [vmem:[%s207 + $0xa8] sm:$0xff]
      %v244 = vld [vmem:[%s207 + $0xb0] sm:$0xff]
      %v245 = vld [vmem:[%s207 + $0xb8] sm:$0xff]
      %v246 = vld [vmem:[%s207 + $0xc0] sm:$0xff]
      %v247 = vld [vmem:[%s207 + $0xc8] sm:$0xff]
      %v248 = vld [vmem:[%s207 + $0xd0] sm:$0xff]
      %v249 = vld [vmem:[%s207 + $0xd8] sm:$0xff]
      %v250 = vld [vmem:[%s207 + $0xe0] sm:$0xff]
      %v251 = vld [vmem:[%s207 + $0xe8] sm:$0xff]
      %v252 = vld [vmem:[%s207 + $0xf0] sm:$0xff]
      %v253 = vld [vmem:[%s207 + $0xf8] sm:$0xff]
      %v254 = vld [vmem:[%s207 + $0x100] sm:$0xff]
      %v255 = vld [vmem:[%s207 + $0x108] sm:$0xff]
      %v256 = vld [vmem:[%s207 + $0x110] sm:$0xff]
      %v257 = vld [vmem:[%s207 + $0x118] sm:$0xff]
      %v258 = vld [vmem:[%s207 + $0x120] sm:$0xff]
      %v259 = vld [vmem:[%s207 + $0x128] sm:$0xff]
      %v260 = vld [vmem:[%s207 + $0x130] sm:$0xff]
      %v261 = vld [vmem:[%s207 + $0x138] sm:$0xff]
      %v262 = vld [vmem:[%s207 + $0x140] sm:$0xff]
      %v263 = vld [vmem:[%s207 + $0x148] sm:$0xff]
      %v264 = vld [vmem:[%s207 + $0x150] sm:$0xff]
      %v265 = vld [vmem:[%s207 + $0x158] sm:$0xff]
      %v266 = vld [vmem:[%s207 + $0x160] sm:$0xff]
      %v267 = vld [vmem:[%s207 + $0x168] sm:$0xff]
      %v268 = vld [vmem:[%s207 + $0x170] sm:$0xff]
      %v269 = vld [vmem:[%s207 + $0x178] sm:$0xff]
      %v270 = vld [vmem:[%s207 + $0x180] sm:$0xff]
      %v271 = vld [vmem:[%s207 + $0x188] sm:$0xff]
      %v272 = vld [vmem:[%s207 + $0x190] sm:$0xff]
      %v273 = vld [vmem:[%s207 + $0x198] sm:$0xff]
      %v274 = vld [vmem:[%s207 + $0x1a0] sm:$0xff]
      %v275 = vld [vmem:[%s207 + $0x1a8] sm:$0xff]
      %v276 = vld [vmem:[%s207 + $0x1b0] sm:$0xff]
      %v277 = vld [vmem:[%s207 + $0x1b8] sm:$0xff]
      %v278 = vld [vmem:[%s207 + $0x1c0] sm:$0xff]
      %v279 = vld [vmem:[%s207 + $0x1c8] sm:$0xff]
      %v280 = vld [vmem:[%s207 + $0x1d0] sm:$0xff]
      %v281 = vld [vmem:[%s207 + $0x1d8] sm:$0xff]
      %v282 = vld [vmem:[%s207 + $0x1e0] sm:$0xff]
      %v283 = vld [vmem:[%s207 + $0x1e8] sm:$0xff]
      %v284 = vld [vmem:[%s207 + $0x1f0] sm:$0xff]
      %v285 = vld [vmem:[%s207 + $0x1f8] sm:$0xff]
      %v286 = vld [vmem:[%s1] sm:$0xf]
      %v287 = vld [vmem:[%s1 + $0x4] sm:$0xf]
      %v288 = vld [vmem:[%s1 + $0x8] sm:$0xf]
      %v289 = vld [vmem:[%s1 + $0xc] sm:$0xf]
      %v290 = vld [vmem:[%s1 + $0x10] sm:$0xf]
      %v291 = vld [vmem:[%s1 + $0x14] sm:$0xf]
      %v292 = vld [vmem:[%s1 + $0x18] sm:$0xf]
      %v293 = vld [vmem:[%s1 + $0x1c] sm:$0xf]
      %v294 = vld [vmem:[%s1 + $0x20] sm:$0xf]
      %v295 = vld [vmem:[%s1 + $0x24] sm:$0xf]
      %v296 = vld [vmem:[%s1 + $0x28] sm:$0xf]
      %v297 = vld [vmem:[%s1 + $0x2c] sm:$0xf]
      %v298 = vld [vmem:[%s1 + $0x30] sm:$0xf]
      %v299 = vld [vmem:[%s1 + $0x34] sm:$0xf]
      %v300 = vld [vmem:[%s1 + $0x38] sm:$0xf]
      %v301 = vld [vmem:[%s1 + $0x3c] sm:$0xf]
      %v302 = vld [vmem:[%s1 + $0x40] sm:$0xf]
      %v303 = vld [vmem:[%s1 + $0x44] sm:$0xf]
      %v304 = vld [vmem:[%s1 + $0x48] sm:$0xf]
      %v305 = vld [vmem:[%s1 + $0x4c] sm:$0xf]
      %v306 = vld [vmem:[%s1 + $0x50] sm:$0xf]
      %v307 = vld [vmem:[%s1 + $0x54] sm:$0xf]
      %v308 = vld [vmem:[%s1 + $0x58] sm:$0xf]
      %v309 = vld [vmem:[%s1 + $0x5c] sm:$0xf]
      %v310 = vld [vmem:[%s1 + $0x60] sm:$0xf]
      %v311 = vld [vmem:[%s1 + $0x64] sm:$0xf]
      %v312 = vld [vmem:[%s1 + $0x68] sm:$0xf]
      %v313 = vld [vmem:[%s1 + $0x6c] sm:$0xf]
      %v314 = vld [vmem:[%s1 + $0x70] sm:$0xf]
      %v315 = vld [vmem:[%s1 + $0x74] sm:$0xf]
      %v316 = vld [vmem:[%s1 + $0x78] sm:$0xf]
      %v317 = vld [vmem:[%s1 + $0x7c] sm:$0xf]
      %v382 = vunpack.c.l.b16 %v222
      %v383 = vunpack.c.h.b16 %v222
      %v384 = vunpack.c.l.b16 %v223
      %v385 = vunpack.c.h.b16 %v223
      %v386 = vunpack.c.l.b16 %v224
      %v387 = vunpack.c.h.b16 %v224
      %v388 = vunpack.c.l.b16 %v225
      %v389 = vunpack.c.h.b16 %v225
      %v390 = vunpack.c.l.b16 %v226
      %v391 = vunpack.c.h.b16 %v226
      %v392 = vunpack.c.l.b16 %v227
      %v393 = vunpack.c.h.b16 %v227
      %v394 = vunpack.c.l.b16 %v228
      %v395 = vunpack.c.h.b16 %v228
      %v396 = vunpack.c.l.b16 %v229
      %v397 = vunpack.c.h.b16 %v229
      %v398 = vunpack.c.l.b16 %v230
      %v399 = vunpack.c.h.b16 %v230
      %v400 = vunpack.c.l.b16 %v231
      %v401 = vunpack.c.h.b16 %v231
      %v402 = vunpack.c.l.b16 %v232
      %v403 = vunpack.c.h.b16 %v232
      %v404 = vunpack.c.l.b16 %v233
      %v405 = vunpack.c.h.b16 %v233
      %v406 = vunpack.c.l.b16 %v234
      %v407 = vunpack.c.h.b16 %v234
      %v408 = vunpack.c.l.b16 %v235
      %v409 = vunpack.c.h.b16 %v235
      %v410 = vunpack.c.l.b16 %v236
      %v411 = vunpack.c.h.b16 %v236
      %v412 = vunpack.c.l.b16 %v237
      %v413 = vunpack.c.h.b16 %v237
      %v414 = vunpack.c.l.b16 %v238
      %v415 = vunpack.c.h.b16 %v238
      %v416 = vunpack.c.l.b16 %v239
      %v417 = vunpack.c.h.b16 %v239
      %v418 = vunpack.c.l.b16 %v240
      %v419 = vunpack.c.h.b16 %v240
      %v420 = vunpack.c.l.b16 %v241
      %v421 = vunpack.c.h.b16 %v241
      %v422 = vunpack.c.l.b16 %v242
      %v423 = vunpack.c.h.b16 %v242
      %v424 = vunpack.c.l.b16 %v243
      %v425 = vunpack.c.h.b16 %v243
      %v426 = vunpack.c.l.b16 %v244
      %v427 = vunpack.c.h.b16 %v244
      %v428 = vunpack.c.l.b16 %v245
      %v429 = vunpack.c.h.b16 %v245
      %v430 = vunpack.c.l.b16 %v246
      %v431 = vunpack.c.h.b16 %v246
      %v432 = vunpack.c.l.b16 %v247
      %v433 = vunpack.c.h.b16 %v247
      %v434 = vunpack.c.l.b16 %v248
      %v435 = vunpack.c.h.b16 %v248
      %v436 = vunpack.c.l.b16 %v249
      %v437 = vunpack.c.h.b16 %v249
      %v438 = vunpack.c.l.b16 %v250
      %v439 = vunpack.c.h.b16 %v250
      %v440 = vunpack.c.l.b16 %v251
      %v441 = vunpack.c.h.b16 %v251
      %v442 = vunpack.c.l.b16 %v252
      %v443 = vunpack.c.h.b16 %v252
      %v444 = vunpack.c.l.b16 %v253
      %v445 = vunpack.c.h.b16 %v253
      %v446 = vunpack.c.l.b16 %v254
      %v447 = vunpack.c.h.b16 %v254
      %v448 = vunpack.c.l.b16 %v255
      %v449 = vunpack.c.h.b16 %v255
      %v450 = vunpack.c.l.b16 %v256
      %v451 = vunpack.c.h.b16 %v256
      %v452 = vunpack.c.l.b16 %v257
      %v453 = vunpack.c.h.b16 %v257
      %v454 = vunpack.c.l.b16 %v258
      %v455 = vunpack.c.h.b16 %v258
      %v456 = vunpack.c.l.b16 %v259
      %v457 = vunpack.c.h.b16 %v259
      %v458 = vunpack.c.l.b16 %v260
      %v459 = vunpack.c.h.b16 %v260
      %v460 = vunpack.c.l.b16 %v261
      %v461 = vunpack.c.h.b16 %v261
      %v462 = vunpack.c.l.b16 %v262
      %v463 = vunpack.c.h.b16 %v262
      %v464 = vunpack.c.l.b16 %v263
      %v465 = vunpack.c.h.b16 %v263
      %v466 = vunpack.c.l.b16 %v264
      %v467 = vunpack.c.h.b16 %v264
      %v468 = vunpack.c.l.b16 %v265
      %v469 = vunpack.c.h.b16 %v265
      %v470 = vunpack.c.l.b16 %v266
      %v471 = vunpack.c.h.b16 %v266
      %v472 = vunpack.c.l.b16 %v267
      %v473 = vunpack.c.h.b16 %v267
      %v474 = vunpack.c.l.b16 %v268
      %v475 = vunpack.c.h.b16 %v268
      %v476 = vunpack.c.l.b16 %v269
      %v477 = vunpack.c.h.b16 %v269
      %v478 = vunpack.c.l.b16 %v270
      %v479 = vunpack.c.h.b16 %v270
      %v480 = vunpack.c.l.b16 %v271
      %v481 = vunpack.c.h.b16 %v271
      %v482 = vunpack.c.l.b16 %v272
      %v483 = vunpack.c.h.b16 %v272
      %v484 = vunpack.c.l.b16 %v273
      %v485 = vunpack.c.h.b16 %v273
      %v486 = vunpack.c.l.b16 %v274
      %v487 = vunpack.c.h.b16 %v274
      %v488 = vunpack.c.l.b16 %v275
      %v489 = vunpack.c.h.b16 %v275
      %v490 = vunpack.c.l.b16 %v276
      %v491 = vunpack.c.h.b16 %v276
      %v492 = vunpack.c.l.b16 %v277
      %v493 = vunpack.c.h.b16 %v277
      %v494 = vunpack.c.l.b16 %v278
      %v495 = vunpack.c.h.b16 %v278
      %v496 = vunpack.c.l.b16 %v279
      %v497 = vunpack.c.h.b16 %v279
      %v498 = vunpack.c.l.b16 %v280
      %v499 = vunpack.c.h.b16 %v280
      %v500 = vunpack.c.l.b16 %v281
      %v501 = vunpack.c.h.b16 %v281
      %v502 = vunpack.c.l.b16 %v282
      %v503 = vunpack.c.h.b16 %v282
      %v504 = vunpack.c.l.b16 %v283
      %v505 = vunpack.c.h.b16 %v283
      %v506 = vunpack.c.l.b16 %v284
      %v507 = vunpack.c.h.b16 %v284
      %v508 = vunpack.c.l.b16 %v285
      %v509 = vunpack.c.h.b16 %v285
      %v510 = vpack.c.b16 %v384, %v382
      %v511 = vpack.c.b16 %v385, %v383
      %v512 = vpack.c.b16 %v388, %v386
      %v513 = vpack.c.b16 %v389, %v387
      %v514 = vpack.c.b16 %v392, %v390
      %v515 = vpack.c.b16 %v393, %v391
      %v516 = vpack.c.b16 %v396, %v394
      %v517 = vpack.c.b16 %v397, %v395
      %v518 = vpack.c.b16 %v400, %v398
      %v519 = vpack.c.b16 %v401, %v399
      %v520 = vpack.c.b16 %v404, %v402
      %v521 = vpack.c.b16 %v405, %v403
      %v522 = vpack.c.b16 %v408, %v406
      %v523 = vpack.c.b16 %v409, %v407
      %v524 = vpack.c.b16 %v412, %v410
      %v525 = vpack.c.b16 %v413, %v411
      %v526 = vpack.c.b16 %v416, %v414
      %v527 = vpack.c.b16 %v417, %v415
      %v528 = vpack.c.b16 %v420, %v418
      %v529 = vpack.c.b16 %v421, %v419
      %v530 = vpack.c.b16 %v424, %v422
      %v531 = vpack.c.b16 %v425, %v423
      %v532 = vpack.c.b16 %v428, %v426
      %v533 = vpack.c.b16 %v429, %v427
      %v534 = vpack.c.b16 %v432, %v430
      %v535 = vpack.c.b16 %v433, %v431
      %v536 = vpack.c.b16 %v436, %v434
      %v537 = vpack.c.b16 %v437, %v435
      %v538 = vpack.c.b16 %v440, %v438
      %v539 = vpack.c.b16 %v441, %v439
      %v540 = vpack.c.b16 %v444, %v442
      %v541 = vpack.c.b16 %v445, %v443
      %v542 = vpack.c.b16 %v448, %v446
      %v543 = vpack.c.b16 %v449, %v447
      %v544 = vpack.c.b16 %v452, %v450
      %v545 = vpack.c.b16 %v453, %v451
      %v546 = vpack.c.b16 %v456, %v454
      %v547 = vpack.c.b16 %v457, %v455
      %v548 = vpack.c.b16 %v460, %v458
      %v549 = vpack.c.b16 %v461, %v459
      %v550 = vpack.c.b16 %v464, %v462
      %v551 = vpack.c.b16 %v465, %v463
      %v552 = vpack.c.b16 %v468, %v466
      %v553 = vpack.c.b16 %v469, %v467
      %v554 = vpack.c.b16 %v472, %v470
      %v555 = vpack.c.b16 %v473, %v471
      %v556 = vpack.c.b16 %v476, %v474
      %v557 = vpack.c.b16 %v477, %v475
      %v558 = vpack.c.b16 %v480, %v478
      %v559 = vpack.c.b16 %v481, %v479
      %v560 = vpack.c.b16 %v484, %v482
      %v561 = vpack.c.b16 %v485, %v483
      %v562 = vpack.c.b16 %v488, %v486
      %v563 = vpack.c.b16 %v489, %v487
      %v564 = vpack.c.b16 %v492, %v490
      %v565 = vpack.c.b16 %v493, %v491
      %v566 = vpack.c.b16 %v496, %v494
      %v567 = vpack.c.b16 %v497, %v495
      %v568 = vpack.c.b16 %v500, %v498
      %v569 = vpack.c.b16 %v501, %v499
      %v570 = vpack.c.b16 %v504, %v502
      %v571 = vpack.c.b16 %v505, %v503
      %v572 = vpack.c.b16 %v508, %v506
      %v573 = vpack.c.b16 %v509, %v507
      %v670 = vunpack.c.l.b16 %v286
      %v671 = vunpack.c.l.b16 %v287
      %v672 = vunpack.c.l.b16 %v288
      %v673 = vunpack.c.l.b16 %v289
      %v674 = vunpack.c.l.b16 %v290
      %v675 = vunpack.c.l.b16 %v291
      %v676 = vunpack.c.l.b16 %v292
      %v677 = vunpack.c.l.b16 %v293
      %v678 = vunpack.c.l.b16 %v294
      %v679 = vunpack.c.l.b16 %v295
      %v680 = vunpack.c.l.b16 %v296
      %v681 = vunpack.c.l.b16 %v297
      %v682 = vunpack.c.l.b16 %v298
      %v683 = vunpack.c.l.b16 %v299
      %v684 = vunpack.c.l.b16 %v300
      %v685 = vunpack.c.l.b16 %v301
      %v686 = vunpack.c.l.b16 %v302
      %v687 = vunpack.c.l.b16 %v303
      %v688 = vunpack.c.l.b16 %v304
      %v689 = vunpack.c.l.b16 %v305
      %v690 = vunpack.c.l.b16 %v306
      %v691 = vunpack.c.l.b16 %v307
      %v692 = vunpack.c.l.b16 %v308
      %v693 = vunpack.c.l.b16 %v309
      %v694 = vunpack.c.l.b16 %v310
      %v695 = vunpack.c.l.b16 %v311
      %v696 = vunpack.c.l.b16 %v312
      %v697 = vunpack.c.l.b16 %v313
      %v698 = vunpack.c.l.b16 %v314
      %v699 = vunpack.c.l.b16 %v315
      %v700 = vunpack.c.l.b16 %v316
      %v701 = vunpack.c.l.b16 %v317
      %v702 = vpack.c.b16 %v671, %v670
      %v703 = vpack.c.b16 %v673, %v672
      %v704 = vpack.c.b16 %v675, %v674
      %v705 = vpack.c.b16 %v677, %v676
      %v706 = vpack.c.b16 %v679, %v678
      %v707 = vpack.c.b16 %v681, %v680
      %v708 = vpack.c.b16 %v683, %v682
      %v709 = vpack.c.b16 %v685, %v684
      %v710 = vpack.c.b16 %v687, %v686
      %v711 = vpack.c.b16 %v689, %v688
      %v712 = vpack.c.b16 %v691, %v690
      %v713 = vpack.c.b16 %v693, %v692
      %v714 = vpack.c.b16 %v695, %v694
      %v715 = vpack.c.b16 %v697, %v696
      %v716 = vpack.c.b16 %v699, %v698
      %v717 = vpack.c.b16 %v701, %v700
      %734 = vmatprep.subr.bf16.mxu0 0
      %735 = vmatpush1.bf16.msra.mxu0 %v702
      %736 = vmatprep.subr.bf16.mxu0 0
      %737 = vmatpush1.bf16.msra.mxu0 %v703
      %738 = vmatprep.subr.bf16.mxu0 0
      %739 = vmatpush1.bf16.msra.mxu0 %v704
      %740 = vmatprep.subr.bf16.mxu0 0
      %741 = vmatpush1.bf16.msra.mxu0 %v705
      %742 = vmatprep.subr.bf16.mxu0 0
      %743 = vmatpush1.bf16.msra.mxu0 %v706
      %744 = vmatprep.subr.bf16.mxu0 0
      %745 = vmatpush1.bf16.msra.mxu0 %v707
      %746 = vmatprep.subr.bf16.mxu0 0
      %747 = vmatpush1.bf16.msra.mxu0 %v708
      %748 = vmatprep.subr.bf16.mxu0 0
      %749 = vmatpush1.bf16.msra.mxu0 %v709
      %750 = vmatprep.subr.bf16.mxu0 0
      %751 = vmatpush1.bf16.msra.mxu0 %v710
      %752 = vmatprep.subr.bf16.mxu0 0
      %753 = vmatpush1.bf16.msra.mxu0 %v711
      %754 = vmatprep.subr.bf16.mxu0 0
      %755 = vmatpush1.bf16.msra.mxu0 %v712
      %756 = vmatprep.subr.bf16.mxu0 0
      %757 = vmatpush1.bf16.msra.mxu0 %v713
      %758 = vmatprep.subr.bf16.mxu0 0
      %759 = vmatpush1.bf16.msra.mxu0 %v714
      %760 = vmatprep.subr.bf16.mxu0 0
      %761 = vmatpush1.bf16.msra.mxu0 %v715
      %762 = vmatprep.subr.bf16.mxu0 0
      %763 = vmatpush1.bf16.msra.mxu0 %v716
      %764 = vmatprep.subr.bf16.mxu0 0
      %765 = vmatpush1.bf16.msra.mxu0 %v717
      %766 = vmatprep.mubr.bf16.mxu0 %v511
      %767 = vmatmul.mubr.bf16.gmra.mrb[0].mxu0 %v510
      %v768 = vpop.f32.mrb[0].mxu0
      %v769 = vadd.f32 0.0, %v768
      %v770 = vpop.f32.mrb[0].mxu0
      %v771 = vpop.f32.mrb[0].mxu0
      %v772 = vadd.f32 0.0, %v771
      %v773 = vpop.f32.mrb[0].mxu0
      %774 = vmatprep.mubr.bf16.mxu0 %v513
      %775 = vmatmul.mubr.bf16.gmra.mrb[0].mxu0 %v512
      %v776 = vpop.f32.mrb[0].mxu0
      %v777 = vadd.f32 0.0, %v776
      %v778 = vpop.f32.mrb[0].mxu0
      %v779 = vpop.f32.mrb[0].mxu0
      %v780 = vadd.f32 0.0, %v779
      %v781 = vpop.f32.mrb[0].mxu0
      %782 = vmatprep.mubr.bf16.mxu0 %v515
      %783 = vmatmul.mubr.bf16.gmra.mrb[0].mxu0 %v514
      %v784 = vpop.f32.mrb[0].mxu0
      %v785 = vadd.f32 0.0, %v784
      %v786 = vpop.f32.mrb[0].mxu0
      %v787 = vpop.f32.mrb[0].mxu0
      %v788 = vadd.f32 0.0, %v787
      %v789 = vpop.f32.mrb[0].mxu0
      %790 = vmatprep.mubr.bf16.mxu0 %v517
      %791 = vmatmul.mubr.bf16.gmra.mrb[0].mxu0 %v516
      %v792 = vpop.f32.mrb[0].mxu0
      %v793 = vadd.f32 0.0, %v792
      %v794 = vpop.f32.mrb[0].mxu0
      %v795 = vpop.f32.mrb[0].mxu0
      %v796 = vadd.f32 0.0, %v795
      %v797 = vpop.f32.mrb[0].mxu0
      %798 = vmatprep.mubr.bf16.mxu0 %v519
      %799 = vmatmul.mubr.bf16.gmra.mrb[0].mxu0 %v518
      %v800 = vpop.f32.mrb[0].mxu0
      %v801 = vadd.f32 0.0, %v800
      %v802 = vpop.f32.mrb[0].mxu0
      %v803 = vpop.f32.mrb[0].mxu0
      %v804 = vadd.f32 0.0, %v803
      %v805 = vpop.f32.mrb[0].mxu0
      %806 = vmatprep.mubr.bf16.mxu0 %v521
      %807 = vmatmul.mubr.bf16.gmra.mrb[0].mxu0 %v520
      %v808 = vpop.f32.mrb[0].mxu0
      %v809 = vadd.f32 0.0, %v808
      %v810 = vpop.f32.mrb[0].mxu0
      %v811 = vpop.f32.mrb[0].mxu0
      %v812 = vadd.f32 0.0, %v811
      %v813 = vpop.f32.mrb[0].mxu0
      %814 = vmatprep.mubr.bf16.mxu0 %v523
      %815 = vmatmul.mubr.bf16.gmra.mrb[0].mxu0 %v522
      %v816 = vpop.f32.mrb[0].mxu0
      %v817 = vadd.f32 0.0, %v816
      %v818 = vpop.f32.mrb[0].mxu0
      %v819 = vpop.f32.mrb[0].mxu0
      %v820 = vadd.f32 0.0, %v819
      %v821 = vpop.f32.mrb[0].mxu0
      %822 = vmatprep.mubr.bf16.mxu0 %v525
      %823 = vmatmul.mubr.bf16.gmra.mrb[0].mxu0 %v524
      %v824 = vpop.f32.mrb[0].mxu0
      %v825 = vadd.f32 0.0, %v824
      %v826 = vpop.f32.mrb[0].mxu0
      %v827 = vpop.f32.mrb[0].mxu0
      %v828 = vadd.f32 0.0, %v827
      %v829 = vpop.f32.mrb[0].mxu0
      %830 = vmatprep.mubr.bf16.mxu0 %v527
      %831 = vmatmul.mubr.bf16.gmra.mrb[0].mxu0 %v526
      %v832 = vpop.f32.mrb[0].mxu0
      %v833 = vadd.f32 0.0, %v832
      %v834 = vpop.f32.mrb[0].mxu0
      %v835 = vpop.f32.mrb[0].mxu0
      %v836 = vadd.f32 0.0, %v835
      %v837 = vpop.f32.mrb[0].mxu0
      %838 = vmatprep.mubr.bf16.mxu0 %v529
      %839 = vmatmul.mubr.bf16.gmra.mrb[0].mxu0 %v528
      %v840 = vpop.f32.mrb[0].mxu0
      %v841 = vadd.f32 0.0, %v840
      %v842 = vpop.f32.mrb[0].mxu0
      %v843 = vpop.f32.mrb[0].mxu0
      %v844 = vadd.f32 0.0, %v843
      %v845 = vpop.f32.mrb[0].mxu0
      %846 = vmatprep.mubr.bf16.mxu0 %v531
      %847 = vmatmul.mubr.bf16.gmra.mrb[0].mxu0 %v530
      %v848 = vpop.f32.mrb[0].mxu0
      %v849 = vadd.f32 0.0, %v848
      %v850 = vpop.f32.mrb[0].mxu0
      %v851 = vpop.f32.mrb[0].mxu0
      %v852 = vadd.f32 0.0, %v851
      %v853 = vpop.f32.mrb[0].mxu0
      %854 = vmatprep.mubr.bf16.mxu0 %v533
      %855 = vmatmul.mubr.bf16.gmra.mrb[0].mxu0 %v532
      %v856 = vpop.f32.mrb[0].mxu0
      %v857 = vadd.f32 0.0, %v856
      %v858 = vpop.f32.mrb[0].mxu0
      %v859 = vpop.f32.mrb[0].mxu0
      %v860 = vadd.f32 0.0, %v859
      %v861 = vpop.f32.mrb[0].mxu0
      %862 = vmatprep.mubr.bf16.mxu0 %v535
      %863 = vmatmul.mubr.bf16.gmra.mrb[0].mxu0 %v534
      %v864 = vpop.f32.mrb[0].mxu0
      %v865 = vadd.f32 0.0, %v864
      %v866 = vpop.f32.mrb[0].mxu0
      %v867 = vpop.f32.mrb[0].mxu0
      %v868 = vadd.f32 0.0, %v867
      %v869 = vpop.f32.mrb[0].mxu0
      %870 = vmatprep.mubr.bf16.mxu0 %v537
      %871 = vmatmul.mubr.bf16.gmra.mrb[0].mxu0 %v536
      %v872 = vpop.f32.mrb[0].mxu0
      %v873 = vadd.f32 0.0, %v872
      %v874 = vpop.f32.mrb[0].mxu0
      %v875 = vpop.f32.mrb[0].mxu0
      %v876 = vadd.f32 0.0, %v875
      %v877 = vpop.f32.mrb[0].mxu0
      %878 = vmatprep.mubr.bf16.mxu0 %v539
      %879 = vmatmul.mubr.bf16.gmra.mrb[0].mxu0 %v538
      %v880 = vpop.f32.mrb[0].mxu0
      %v881 = vadd.f32 0.0, %v880
      %v882 = vpop.f32.mrb[0].mxu0
      %v883 = vpop.f32.mrb[0].mxu0
      %v884 = vadd.f32 0.0, %v883
      %v885 = vpop.f32.mrb[0].mxu0
      %886 = vmatprep.mubr.bf16.mxu0 %v541
      %887 = vmatmul.mubr.bf16.gmra.mrb[0].mxu0 %v540
      %v888 = vpop.f32.mrb[0].mxu0
      %v889 = vadd.f32 0.0, %v888
      %v890 = vpop.f32.mrb[0].mxu0
      %v891 = vpop.f32.mrb[0].mxu0
      %v892 = vadd.f32 0.0, %v891
      %v893 = vpop.f32.mrb[0].mxu0
      %894 = vmatprep.mubr.bf16.mxu0 %v543
      %895 = vmatmul.mubr.bf16.gmra.mrb[0].mxu0 %v542
      %v896 = vpop.f32.mrb[0].mxu0
      %v897 = vadd.f32 0.0, %v896
      %v898 = vpop.f32.mrb[0].mxu0
      %v899 = vpop.f32.mrb[0].mxu0
      %v900 = vadd.f32 0.0, %v899
      %v901 = vpop.f32.mrb[0].mxu0
      %902 = vmatprep.mubr.bf16.mxu0 %v545
      %903 = vmatmul.mubr.bf16.gmra.mrb[0].mxu0 %v544
      %v904 = vpop.f32.mrb[0].mxu0
      %v905 = vadd.f32 0.0, %v904
      %v906 = vpop.f32.mrb[0].mxu0
      %v907 = vpop.f32.mrb[0].mxu0
      %v908 = vadd.f32 0.0, %v907
      %v909 = vpop.f32.mrb[0].mxu0
      %910 = vmatprep.mubr.bf16.mxu0 %v547
      %911 = vmatmul.mubr.bf16.gmra.mrb[0].mxu0 %v546
      %v912 = vpop.f32.mrb[0].mxu0
      %v913 = vadd.f32 0.0, %v912
      %v914 = vpop.f32.mrb[0].mxu0
      %v915 = vpop.f32.mrb[0].mxu0
      %v916 = vadd.f32 0.0, %v915
      %v917 = vpop.f32.mrb[0].mxu0
      %918 = vmatprep.mubr.bf16.mxu0 %v549
      %919 = vmatmul.mubr.bf16.gmra.mrb[0].mxu0 %v548
      %v920 = vpop.f32.mrb[0].mxu0
      %v921 = vadd.f32 0.0, %v920
      %v922 = vpop.f32.mrb[0].mxu0
      %v923 = vpop.f32.mrb[0].mxu0
      %v924 = vadd.f32 0.0, %v923
      %v925 = vpop.f32.mrb[0].mxu0
      %926 = vmatprep.mubr.bf16.mxu0 %v551
      %927 = vmatmul.mubr.bf16.gmra.mrb[0].mxu0 %v550
      %v928 = vpop.f32.mrb[0].mxu0
      %v929 = vadd.f32 0.0, %v928
      %v930 = vpop.f32.mrb[0].mxu0
      %v931 = vpop.f32.mrb[0].mxu0
      %v932 = vadd.f32 0.0, %v931
      %v933 = vpop.f32.mrb[0].mxu0
      %934 = vmatprep.mubr.bf16.mxu0 %v553
      %935 = vmatmul.mubr.bf16.gmra.mrb[0].mxu0 %v552
      %v936 = vpop.f32.mrb[0].mxu0
      %v937 = vadd.f32 0.0, %v936
      %v938 = vpop.f32.mrb[0].mxu0
      %v939 = vpop.f32.mrb[0].mxu0
      %v940 = vadd.f32 0.0, %v939
      %v941 = vpop.f32.mrb[0].mxu0
      %942 = vmatprep.mubr.bf16.mxu0 %v555
      %943 = vmatmul.mubr.bf16.gmra.mrb[0].mxu0 %v554
      %v944 = vpop.f32.mrb[0].mxu0
      %v945 = vadd.f32 0.0, %v944
      %v946 = vpop.f32.mrb[0].mxu0
      %v947 = vpop.f32.mrb[0].mxu0
      %v948 = vadd.f32 0.0, %v947
      %v949 = vpop.f32.mrb[0].mxu0
      %950 = vmatprep.mubr.bf16.mxu0 %v557
      %951 = vmatmul.mubr.bf16.gmra.mrb[0].mxu0 %v556
      %v952 = vpop.f32.mrb[0].mxu0
      %v953 = vadd.f32 0.0, %v952
      %v954 = vpop.f32.mrb[0].mxu0
      %v955 = vpop.f32.mrb[0].mxu0
      %v956 = vadd.f32 0.0, %v955
      %v957 = vpop.f32.mrb[0].mxu0
      %958 = vmatprep.mubr.bf16.mxu0 %v559
      %959 = vmatmul.mubr.bf16.gmra.mrb[0].mxu0 %v558
      %v960 = vpop.f32.mrb[0].mxu0
      %v961 = vadd.f32 0.0, %v960
      %v962 = vpop.f32.mrb[0].mxu0
      %v963 = vpop.f32.mrb[0].mxu0
      %v964 = vadd.f32 0.0, %v963
      %v965 = vpop.f32.mrb[0].mxu0
      %966 = vmatprep.mubr.bf16.mxu0 %v561
      %967 = vmatmul.mubr.bf16.gmra.mrb[0].mxu0 %v560
      %v968 = vpop.f32.mrb[0].mxu0
      %v969 = vadd.f32 0.0, %v968
      %v970 = vpop.f32.mrb[0].mxu0
      %v971 = vpop.f32.mrb[0].mxu0
      %v972 = vadd.f32 0.0, %v971
      %v973 = vpop.f32.mrb[0].mxu0
      %974 = vmatprep.mubr.bf16.mxu0 %v563
      %975 = vmatmul.mubr.bf16.gmra.mrb[0].mxu0 %v562
      %v976 = vpop.f32.mrb[0].mxu0
      %v977 = vadd.f32 0.0, %v976
      %v978 = vpop.f32.mrb[0].mxu0
      %v979 = vpop.f32.mrb[0].mxu0
      %v980 = vadd.f32 0.0, %v979
      %v981 = vpop.f32.mrb[0].mxu0
      %982 = vmatprep.mubr.bf16.mxu0 %v565
      %983 = vmatmul.mubr.bf16.gmra.mrb[0].mxu0 %v564
      %v984 = vpop.f32.mrb[0].mxu0
      %v985 = vadd.f32 0.0, %v984
      %v986 = vpop.f32.mrb[0].mxu0
      %v987 = vpop.f32.mrb[0].mxu0
      %v988 = vadd.f32 0.0, %v987
      %v989 = vpop.f32.mrb[0].mxu0
      %990 = vmatprep.mubr.bf16.mxu0 %v567
      %991 = vmatmul.mubr.bf16.gmra.mrb[0].mxu0 %v566
      %v992 = vpop.f32.mrb[0].mxu0
      %v993 = vadd.f32 0.0, %v992
      %v994 = vpop.f32.mrb[0].mxu0
      %v995 = vpop.f32.mrb[0].mxu0
      %v996 = vadd.f32 0.0, %v995
      %v997 = vpop.f32.mrb[0].mxu0
      %998 = vmatprep.mubr.bf16.mxu0 %v569
      %999 = vmatmul.mubr.bf16.gmra.mrb[0].mxu0 %v568
      %v1000 = vpop.f32.mrb[0].mxu0
      %v1001 = vadd.f32 0.0, %v1000
      %v1002 = vpop.f32.mrb[0].mxu0
      %v1003 = vpop.f32.mrb[0].mxu0
      %v1004 = vadd.f32 0.0, %v1003
      %v1005 = vpop.f32.mrb[0].mxu0
      %1006 = vmatprep.mubr.bf16.mxu0 %v571
      %1007 = vmatmul.mubr.bf16.gmra.mrb[0].mxu0 %v570
      %v1008 = vpop.f32.mrb[0].mxu0
      %v1009 = vadd.f32 0.0, %v1008
      %v1010 = vpop.f32.mrb[0].mxu0
      %v1011 = vpop.f32.mrb[0].mxu0
      %v1012 = vadd.f32 0.0, %v1011
      %v1013 = vpop.f32.mrb[0].mxu0
      %1014 = vmatprep.mubr.bf16.mxu0 %v573
      %1015 = vmatmul.mubr.bf16.gmra.mrb[0].mxu0 %v572
      %v1016 = vpop.f32.mrb[0].mxu0
      %v1017 = vadd.f32 0.0, %v1016
      %v1018 = vpop.f32.mrb[0].mxu0
      %v1019 = vpop.f32.mrb[0].mxu0
      %v1020 = vadd.f32 0.0, %v1019
      %v1021 = vpop.f32.mrb[0].mxu0
      %1022 = vdwg.mxu0
      %1023 = vst [vmem:[%s213] sm:$0xff] %v769
      %1024 = vst [vmem:[%s213 + $0x8] sm:$0xff] %v772
      %1025 = vst [vmem:[%s213 + $0x10] sm:$0xff] %v777
      %1026 = vst [vmem:[%s213 + $0x18] sm:$0xff] %v780
      %1027 = vst [vmem:[%s213 + $0x20] sm:$0xff] %v785
      %1028 = vst [vmem:[%s213 + $0x28] sm:$0xff] %v788
      %1029 = vst [vmem:[%s213 + $0x30] sm:$0xff] %v793
      %1030 = vst [vmem:[%s213 + $0x38] sm:$0xff] %v796
      %1031 = vst [vmem:[%s213 + $0x40] sm:$0xff] %v801
      %1032 = vst [vmem:[%s213 + $0x48] sm:$0xff] %v804
      %1033 = vst [vmem:[%s213 + $0x50] sm:$0xff] %v809
      %1034 = vst [vmem:[%s213 + $0x58] sm:$0xff] %v812
      %1035 = vst [vmem:[%s213 + $0x60] sm:$0xff] %v817
      %1036 = vst [vmem:[%s213 + $0x68] sm:$0xff] %v820
      %1037 = vst [vmem:[%s213 + $0x70] sm:$0xff] %v825
      %1038 = vst [vmem:[%s213 + $0x78] sm:$0xff] %v828
      %1039 = vst [vmem:[%s213 + $0x80] sm:$0xff] %v833
      %1040 = vst [vmem:[%s213 + $0x88] sm:$0xff] %v836
      %1041 = vst [vmem:[%s213 + $0x90] sm:$0xff] %v841
      %1042 = vst [vmem:[%s213 + $0x98] sm:$0xff] %v844
      %1043 = vst [vmem:[%s213 + $0xa0] sm:$0xff] %v849
      %1044 = vst [vmem:[%s213 + $0xa8] sm:$0xff] %v852
      %1045 = vst [vmem:[%s213 + $0xb0] sm:$0xff] %v857
      %1046 = vst [vmem:[%s213 + $0xb8] sm:$0xff] %v860
      %1047 = vst [vmem:[%s213 + $0xc0] sm:$0xff] %v865
      %1048 = vst [vmem:[%s213 + $0xc8] sm:$0xff] %v868
      %1049 = vst [vmem:[%s213 + $0xd0] sm:$0xff] %v873
      %1050 = vst [vmem:[%s213 + $0xd8] sm:$0xff] %v876
      %1051 = vst [vmem:[%s213 + $0xe0] sm:$0xff] %v881
      %1052 = vst [vmem:[%s213 + $0xe8] sm:$0xff] %v884
      %1053 = vst [vmem:[%s213 + $0xf0] sm:$0xff] %v889
      %1054 = vst [vmem:[%s213 + $0xf8] sm:$0xff] %v892
      %1055 = vst [vmem:[%s213 + $0x100] sm:$0xff] %v897
      %1056 = vst [vmem:[%s213 + $0x108] sm:$0xff] %v900
      %1057 = vst [vmem:[%s213 + $0x110] sm:$0xff] %v905
      %1058 = vst [vmem:[%s213 + $0x118] sm:$0xff] %v908
      %1059 = vst [vmem:[%s213 + $0x120] sm:$0xff] %v913
      %1060 = vst [vmem:[%s213 + $0x128] sm:$0xff] %v916
      %1061 = vst [vmem:[%s213 + $0x130] sm:$0xff] %v921
      %1062 = vst [vmem:[%s213 + $0x138] sm:$0xff] %v924
      %1063 = vst [vmem:[%s213 + $0x140] sm:$0xff] %v929
      %1064 = vst [vmem:[%s213 + $0x148] sm:$0xff] %v932
      %1065 = vst [vmem:[%s213 + $0x150] sm:$0xff] %v937
      %1066 = vst [vmem:[%s213 + $0x158] sm:$0xff] %v940
      %1067 = vst [vmem:[%s213 + $0x160] sm:$0xff] %v945
      %1068 = vst [vmem:[%s213 + $0x168] sm:$0xff] %v948
      %1069 = vst [vmem:[%s213 + $0x170] sm:$0xff] %v953
      %1070 = vst [vmem:[%s213 + $0x178] sm:$0xff] %v956
      %1071 = vst [vmem:[%s213 + $0x180] sm:$0xff] %v961
      %1072 = vst [vmem:[%s213 + $0x188] sm:$0xff] %v964
      %1073 = vst [vmem:[%s213 + $0x190] sm:$0xff] %v969
      %1074 = vst [vmem:[%s213 + $0x198] sm:$0xff] %v972
      %1075 = vst [vmem:[%s213 + $0x1a0] sm:$0xff] %v977
      %1076 = vst [vmem:[%s213 + $0x1a8] sm:$0xff] %v980
      %1077 = vst [vmem:[%s213 + $0x1b0] sm:$0xff] %v985
      %1078 = vst [vmem:[%s213 + $0x1b8] sm:$0xff] %v988
      %1079 = vst [vmem:[%s213 + $0x1c0] sm:$0xff] %v993
      %1080 = vst [vmem:[%s213 + $0x1c8] sm:$0xff] %v996
      %1081 = vst [vmem:[%s213 + $0x1d0] sm:$0xff] %v1001
      %1082 = vst [vmem:[%s213 + $0x1d8] sm:$0xff] %v1004
      %1083 = vst [vmem:[%s213 + $0x1e0] sm:$0xff] %v1009
      %1084 = vst [vmem:[%s213 + $0x1e8] sm:$0xff] %v1012
      %1085 = vst [vmem:[%s213 + $0x1f0] sm:$0xff] %v1017
      %1086 = vst [vmem:[%s213 + $0x1f8] sm:$0xff] %v1020
      %v1087 = vadd.f32 %v769, %v772
      %v1088 = vadd.f32 %v1087, %v777
      %v1089 = vadd.f32 %v1088, %v780
      %v1090 = vadd.f32 %v1089, %v785
      %v1091 = vadd.f32 %v1090, %v788
      %v1092 = vadd.f32 %v1091, %v793
      %v1093 = vadd.f32 %v1092, %v796
      %v1094 = vadd.f32 %v1093, %v801
      %v1095 = vadd.f32 %v1094, %v804
      %v1096 = vadd.f32 %v1095, %v809
      %v1097 = vadd.f32 %v1096, %v812
      %v1098 = vadd.f32 %v1097, %v817
      %v1099 = vadd.f32 %v1098, %v820
      %v1100 = vadd.f32 %v1099, %v825
      %v1101 = vadd.f32 %v1100, %v828
      %v1102 = vadd.f32 %v1101, %v833
      %v1103 = vadd.f32 %v1102, %v836
      %v1104 = vadd.f32 %v1103, %v841
      %v1105 = vadd.f32 %v1104, %v844
      %v1106 = vadd.f32 %v1105, %v849
      %v1107 = vadd.f32 %v1106, %v852
      %v1108 = vadd.f32 %v1107, %v857
      %v1109 = vadd.f32 %v1108, %v860
      %v1110 = vadd.f32 %v1109, %v865
      %v1111 = vadd.f32 %v1110, %v868
      %v1112 = vadd.f32 %v1111, %v873
      %v1113 = vadd.f32 %v1112, %v876
      %v1114 = vadd.f32 %v1113, %v881
      %v1115 = vadd.f32 %v1114, %v884
      %v1116 = vadd.f32 %v1115, %v889
      %v1117 = vadd.f32 %v1116, %v892
      %v1118 = vadd.f32 %v1117, %v897
      %v1119 = vadd.f32 %v1118, %v900
      %v1120 = vadd.f32 %v1119, %v905
      %v1121 = vadd.f32 %v1120, %v908
      %v1122 = vadd.f32 %v1121, %v913
      %v1123 = vadd.f32 %v1122, %v916
      %v1124 = vadd.f32 %v1123, %v921
      %v1125 = vadd.f32 %v1124, %v924
      %v1126 = vadd.f32 %v1125, %v929
      %v1127 = vadd.f32 %v1126, %v932
      %v1128 = vadd.f32 %v1127, %v937
      %v1129 = vadd.f32 %v1128, %v940
      %v1130 = vadd.f32 %v1129, %v945
      %v1131 = vadd.f32 %v1130, %v948
      %v1132 = vadd.f32 %v1131, %v953
      %v1133 = vadd.f32 %v1132, %v956
      %v1134 = vadd.f32 %v1133, %v961
      %v1135 = vadd.f32 %v1134, %v964
      %v1136 = vadd.f32 %v1135, %v969
      %v1137 = vadd.f32 %v1136, %v972
      %v1138 = vadd.f32 %v1137, %v977
      %v1139 = vadd.f32 %v1138, %v980
      %v1140 = vadd.f32 %v1139, %v985
      %v1141 = vadd.f32 %v1140, %v988
      %v1142 = vadd.f32 %v1141, %v993
      %v1143 = vadd.f32 %v1142, %v996
      %v1144 = vadd.f32 %v1143, %v1001
      %v1145 = vadd.f32 %v1144, %v1004
      %v1146 = vadd.f32 %v1145, %v1009
      %v1147 = vadd.f32 %v1146, %v1012
      %v1148 = vadd.f32 %v1147, %v1017
      %v1149 = vadd.f32 %v1148, %v1020
      %v1150 = vrot.slane %v1149, 4
      %v1151 = vadd.f32 %v1149, %v1150
      %v1152 = vrot.slane %v1151, 2
      %v1153 = vadd.f32 %v1151, %v1152
      %v1154 = vrot.slane %v1153, 1
      %v1155 = vadd.f32 %v1153, %v1154
      %1156 = vst [vmem:[%s217] sm:$0x1] %v1155
      %v1157 = vmul.f32 %v769, %v769
      %v1158 = vmul.f32 %v772, %v772
      %v1159 = vmul.f32 %v777, %v777
      %v1160 = vmul.f32 %v780, %v780
      %v1161 = vmul.f32 %v785, %v785
      %v1162 = vmul.f32 %v788, %v788
      %v1163 = vmul.f32 %v793, %v793
      %v1164 = vmul.f32 %v796, %v796
      %v1165 = vmul.f32 %v801, %v801
      %v1166 = vmul.f32 %v804, %v804
      %v1167 = vmul.f32 %v809, %v809
      %v1168 = vmul.f32 %v812, %v812
      %v1169 = vmul.f32 %v817, %v817
      %v1170 = vmul.f32 %v820, %v820
      %v1171 = vmul.f32 %v825, %v825
      %v1172 = vmul.f32 %v828, %v828
      %v1173 = vmul.f32 %v833, %v833
      %v1174 = vmul.f32 %v836, %v836
      %v1175 = vmul.f32 %v841, %v841
      %v1176 = vmul.f32 %v844, %v844
      %v1177 = vmul.f32 %v849, %v849
      %v1178 = vmul.f32 %v852, %v852
      %v1179 = vmul.f32 %v857, %v857
      %v1180 = vmul.f32 %v860, %v860
      %v1181 = vmul.f32 %v865, %v865
      %v1182 = vmul.f32 %v868, %v868
      %v1183 = vmul.f32 %v873, %v873
      %v1184 = vmul.f32 %v876, %v876
      %v1185 = vmul.f32 %v881, %v881
      %v1186 = vmul.f32 %v884, %v884
      %v1187 = vmul.f32 %v889, %v889
      %v1188 = vmul.f32 %v892, %v892
      %v1189 = vmul.f32 %v897, %v897
      %v1190 = vmul.f32 %v900, %v900
      %v1191 = vmul.f32 %v905, %v905
      %v1192 = vmul.f32 %v908, %v908
      %v1193 = vmul.f32 %v913, %v913
      %v1194 = vmul.f32 %v916, %v916
      %v1195 = vmul.f32 %v921, %v921
      %v1196 = vmul.f32 %v924, %v924
      %v1197 = vmul.f32 %v929, %v929
      %v1198 = vmul.f32 %v932, %v932
      %v1199 = vmul.f32 %v937, %v937
      %v1200 = vmul.f32 %v940, %v940
      %v1201 = vmul.f32 %v945, %v945
      %v1202 = vmul.f32 %v948, %v948
      %v1203 = vmul.f32 %v953, %v953
      %v1204 = vmul.f32 %v956, %v956
      %v1205 = vmul.f32 %v961, %v961
      %v1206 = vmul.f32 %v964, %v964
      %v1207 = vmul.f32 %v969, %v969
      %v1208 = vmul.f32 %v972, %v972
      %v1209 = vmul.f32 %v977, %v977
      %v1210 = vmul.f32 %v980, %v980
      %v1211 = vmul.f32 %v985, %v985
      %v1212 = vmul.f32 %v988, %v988
      %v1213 = vmul.f32 %v993, %v993
      %v1214 = vmul.f32 %v996, %v996
      %v1215 = vmul.f32 %v1001, %v1001
      %v1216 = vmul.f32 %v1004, %v1004
      %v1217 = vmul.f32 %v1009, %v1009
      %v1218 = vmul.f32 %v1012, %v1012
      %v1219 = vmul.f32 %v1017, %v1017
      %v1220 = vmul.f32 %v1020, %v1020
      %v1221 = vadd.f32 %v1157, %v1158
      %v1222 = vadd.f32 %v1221, %v1159
      %v1223 = vadd.f32 %v1222, %v1160
      %v1224 = vadd.f32 %v1223, %v1161
      %v1225 = vadd.f32 %v1224, %v1162
      %v1226 = vadd.f32 %v1225, %v1163
      %v1227 = vadd.f32 %v1226, %v1164
      %v1228 = vadd.f32 %v1227, %v1165
      %v1229 = vadd.f32 %v1228, %v1166
      %v1230 = vadd.f32 %v1229, %v1167
      %v1231 = vadd.f32 %v1230, %v1168
      %v1232 = vadd.f32 %v1231, %v1169
      %v1233 = vadd.f32 %v1232, %v1170
      %v1234 = vadd.f32 %v1233, %v1171
      %v1235 = vadd.f32 %v1234, %v1172
      %v1236 = vadd.f32 %v1235, %v1173
      %v1237 = vadd.f32 %v1236, %v1174
      %v1238 = vadd.f32 %v1237, %v1175
      %v1239 = vadd.f32 %v1238, %v1176
      %v1240 = vadd.f32 %v1239, %v1177
      %v1241 = vadd.f32 %v1240, %v1178
      %v1242 = vadd.f32 %v1241, %v1179
      %v1243 = vadd.f32 %v1242, %v1180
      %v1244 = vadd.f32 %v1243, %v1181
      %v1245 = vadd.f32 %v1244, %v1182
      %v1246 = vadd.f32 %v1245, %v1183
      %v1247 = vadd.f32 %v1246, %v1184
      %v1248 = vadd.f32 %v1247, %v1185
      %v1249 = vadd.f32 %v1248, %v1186
      %v1250 = vadd.f32 %v1249, %v1187
      %v1251 = vadd.f32 %v1250, %v1188
      %v1252 = vadd.f32 %v1251, %v1189
      %v1253 = vadd.f32 %v1252, %v1190
      %v1254 = vadd.f32 %v1253, %v1191
      %v1255 = vadd.f32 %v1254, %v1192
      %v1256 = vadd.f32 %v1255, %v1193
      %v1257 = vadd.f32 %v1256, %v1194
      %v1258 = vadd.f32 %v1257, %v1195
      %v1259 = vadd.f32 %v1258, %v1196
      %v1260 = vadd.f32 %v1259, %v1197
      %v1261 = vadd.f32 %v1260, %v1198
      %v1262 = vadd.f32 %v1261, %v1199
      %v1263 = vadd.f32 %v1262, %v1200
      %v1264 = vadd.f32 %v1263, %v1201
      %v1265 = vadd.f32 %v1264, %v1202
      %v1266 = vadd.f32 %v1265, %v1203
      %v1267 = vadd.f32 %v1266, %v1204
      %v1268 = vadd.f32 %v1267, %v1205
      %v1269 = vadd.f32 %v1268, %v1206
      %v1270 = vadd.f32 %v1269, %v1207
      %v1271 = vadd.f32 %v1270, %v1208
      %v1272 = vadd.f32 %v1271, %v1209
      %v1273 = vadd.f32 %v1272, %v1210
      %v1274 = vadd.f32 %v1273, %v1211
      %v1275 = vadd.f32 %v1274, %v1212
      %v1276 = vadd.f32 %v1275, %v1213
      %v1277 = vadd.f32 %v1276, %v1214
      %v1278 = vadd.f32 %v1277, %v1215
      %v1279 = vadd.f32 %v1278, %v1216
      %v1280 = vadd.f32 %v1279, %v1217
      %v1281 = vadd.f32 %v1280, %v1218
      %v1282 = vadd.f32 %v1281, %v1219
      %v1283 = vadd.f32 %v1282, %v1220
      %v1284 = vrot.slane %v1283, 4
      %v1285 = vadd.f32 %v1283, %v1284
      %v1286 = vrot.slane %v1285, 2
      %v1287 = vadd.f32 %v1285, %v1286
      %v1288 = vrot.slane %v1287, 1
      %v1289 = vadd.f32 %v1287, %v1288
      %1290 = vst [vmem:[%s220] sm:$0x1] %v1289
      %s1291 = smul.u32 64, %s16
      %p1292 = scmp.lt.s32.totalorder %s1291, 127
      %s1293 = scalar_select %p1292, %s1291, 127
      %s1294 = smul.addr %s1293, 8
      %s1295 = scalar_lea.vmem %s2, %s1294
      %p1296 = scmp.lt.s32.totalorder %s16, 1
      %s1297 = scalar_select %p1296, %s16, 1
      %s1298 = scalar_lea.vmem %s3, %s1297
      %p1299 = scmp.lt.s32.totalorder %s16, 1
      %s1300 = scalar_select %p1299, %s16, 1
      %s1301 = scalar_lea.vmem %s4, %s1300
      // Predicated region
      $region29: #{resblock_v2_forward.6} parent=27 // pred_check
        %p1302 = pneg %p81
      $region30: #{resblock_v2_forward.6} parent=27 // pred_check_branch
        %1304 = sbr.rel (%p1302) target = $region32
      $region31: #{resblock_v2_forward.6} parent=27 // pred_region
        %s1305 = smul.u32 64, %s16
      $region32: #{resblock_v2_forward.6} parent=27 // pred_fallthru
        _
      // Predicated region
      $region33: #{resblock_v2_forward.6} parent=27 // pred_check
        %p1306 = pneg %p107
      $region34: #{resblock_v2_forward.6} parent=27 // pred_check_branch
        %1308 = sbr.rel (%p1306) target = $region36
      $region35: #{resblock_v2_forward.6} parent=27 // pred_region
        _
      $region36: #{resblock_v2_forward.6} parent=27 // pred_fallthru
        _
      // Predicated region
      $region37: #{resblock_v2_forward.6} parent=27 // pred_check
        %p1309 = pneg %p133
      $region38: #{resblock_v2_forward.6} parent=27 // pred_check_branch
        %1311 = sbr.rel (%p1309) target = $region40
      $region39: #{resblock_v2_forward.6} parent=27 // pred_region
        _
      $region40: #{resblock_v2_forward.6} parent=27 // pred_fallthru
        _
    $region28: #{resblock_v2_forward.6} parent=5 // pred_fallthru
      _
    %p1312 = scmp.le.s32.totalorder 2, %s11
    // Predicated region
    $region41: #{resblock_v2_forward.6} parent=5 // pred_check
      %p1313 = pneg %p1312
    $region42: #{resblock_v2_forward.6} parent=5 // pred_check_branch
      %1315 = sbr.rel (%p1313) target = $region44
    $region43: #{resblock_v2_forward.6} parent=5 // pred_region
      %s1316 = ssub.s32 %s11, 2
      // Predicated region
      $region45: #{resblock_v2_forward.6} parent=43 // pred_check
        %p1317 = pneg %p87
      $region46: #{resblock_v2_forward.6} parent=43 // pred_check_branch
        %1319 = sbr.rel (%p1317) target = $region48
      $region47: #{resblock_v2_forward.6} parent=43 // pred_region
        %s1320 = smul.u32 64, %s17
        %p1321 = scmp.lt.s32.totalorder %s1320, 127
        %s1322 = scalar_select %p1321, %s1320, 127
        %s1323 = smul.addr %s1322, 8
        %s1324 = scalar_lea.vmem %s2, %s1323
      $region48: #{resblock_v2_forward.6} parent=43 // pred_fallthru
        _
      // Predicated region
      $region49: #{resblock_v2_forward.6} parent=43 // pred_check
        %p1325 = pneg %p113
      $region50: #{resblock_v2_forward.6} parent=43 // pred_check_branch
        %1327 = sbr.rel (%p1325) target = $region52
      $region51: #{resblock_v2_forward.6} parent=43 // pred_region
        %p1328 = scmp.lt.s32.totalorder %s17, 1
        %s1329 = scalar_select %p1328, %s17, 1
        %s1330 = scalar_lea.vmem %s3, %s1329
      $region52: #{resblock_v2_forward.6} parent=43 // pred_fallthru
        _
      // Predicated region
      $region53: #{resblock_v2_forward.6} parent=43 // pred_check
        %p1331 = pneg %p139
      $region54: #{resblock_v2_forward.6} parent=43 // pred_check_branch
        %1333 = sbr.rel (%p1331) target = $region56
      $region55: #{resblock_v2_forward.6} parent=43 // pred_region
        %p1334 = scmp.lt.s32.totalorder %s17, 1
        %s1335 = scalar_select %p1334, %s17, 1
        %s1336 = scalar_lea.vmem %s4, %s1335
      $region56: #{resblock_v2_forward.6} parent=43 // pred_fallthru
        _
    $region44: #{resblock_v2_forward.6} parent=5 // pred_fallthru
      _
  $region6: #{resblock_v2_forward.6} parent=0 // loop_footer
    %s15 = sadd.s32 1, %s11
  $region7: #{resblock_v2_forward.6} parent=0 // loop_footer_branch
    %10 = sbr.rel target = $region3
  $region8: #{resblock_v2_forward.6} parent=0 // loop_exit
    _

// kernel: resblock_v2_forward.7
$region0: #{resblock_v2_forward.7}
  #allocation0 [shape = 'u32[]', space=smem, size = 0x4, offset = 0x4, fixed_abs, tag = 'smem constant byte address 0x4 - core index']
  #allocation1 [shape = 'u32[144,128]{1,0:T(1,128)}', space=vmem, size = 0x12000, scoped, tag = 'internal scratch']
  %s0 = inlined_call_operand.vmem [shape: f32[2,512,128], index: 0, kind: input, shape index: {}]
  %s1 = inlined_call_operand.vmem [shape: f32[2,512,128], index: 1, kind: input, shape index: {}]
  %s2 = inlined_call_operand.vmem [shape: f32[1,1,128], index: 2, kind: input, shape index: {}]
  %s3 = inlined_call_operand.vmem [shape: f32[2,1,128], index: 3, kind: input, shape index: {}]
  %s4 = inlined_call_operand.vmem [shape: f32[2,1,128], index: 4, kind: input, shape index: {}]
  %s5 = inlined_call_operand.vmem [shape: f32[2,512,128], index: 5, kind: output, shape index: {}]
  %s6 = sld [smem:[#allocation0]]
  $region53: #{resblock_v2_forward.7} parent=0
    _
  %s8 = ssub.s32 1, %s6
  %s9 = scalar_select 0, %s8, %s6
  loop: start=0, step=1, limit=4
  $region2: #{resblock_v2_forward.7} parent=0 // loop_pre_header
    _
  $region3: #{resblock_v2_forward.7} parent=0 // loop_header
    %s11 = sphi 0, %s15
    %p12 = scmp.ge.s32.totalorder %s11, 4
    %s18 = sphi 0, %s30
    %s19 = sphi 0, %s26
    %s20 = sphi 0, %s18
    %s21 = sphi 0, %s19
    %s22 = sphi 0, %s20
    %s23 = sphi 0, %s21
    %s35 = sphi 0, %s37
    %s38 = sphi 0, %s35
    %s39 = sphi 0, %s38
    %s55 = sphi 0, %s39
    %s63 = sphi 0, %s65
    %s66 = sphi 0, %s63
    %s67 = sphi 0, %s66
    %s83 = sphi 0, %s67
    %s87 = sphi 0, %s87
    %s89 = sphi 0, %s87
    %s90 = sphi 0, %s89
    %s104 = sphi 0, %s90
    %s110 = sphi 0, %s112
    %s113 = sphi 0, %s110
    %s114 = sphi 0, %s113
    %s130 = sphi 0, %s114
    %s136 = sphi 0, %s138
    %s139 = sphi 0, %s136
    %s140 = sphi 0, %s139
    %s156 = sphi 0, %s140
    %s164 = sphi 0, %s166
    %s167 = sphi 0, %s164
    %s168 = sphi 0, %s167
    %s184 = sphi 0, %s168
  $region4: #{resblock_v2_forward.7} parent=0 // loop_header_branch
    %14 = sbr.rel (%p12) target = $region8
  $region5: #{resblock_v2_forward.7} parent=0 // loop_body
    %s16 = ssub.s32 %s11, 1
    %s17 = ssub.s32 %s11, 2
    %s24 = sadd.s32 1, %s19
    %p25 = scmp.ge.s32.totalorder %s24, 1
    %s26 = scalar_select %p25, 0, %s24
    %s27 = sadd.s32 1, %s18
    %s28 = scalar_select %p25, %s27, %s18
    %p29 = scmp.ge.s32.totalorder %s28, 2
    %s30 = scalar_select %p29, 0, %s28
    %s31 = ssub.s32 %s18, %s30
    %s32 = ssub.s32 %s19, %s26
    %s33 = sor.u32 %s31, %s32
    %p34 = scmp.eq.s32.totalorder %s33, 0
    %s36 = sadd.s32 %s35, 1
    %s37 = scalar_select %p34, %s35, %s36
    %p40 = pneg %p34
    %p41 = scmp.eq.s32.totalorder %s11, 1
    %p42 = por %p40, %p41
    %p43 = scmp.ne.s32.totalorder %s35, %s38
    %p44 = scmp.eq.s32.totalorder %s11, 0
    %p45 = por %p43, %p44
    %p46 = scmp.ne.s32.totalorder %s35, %s38
    %p47 = scmp.eq.s32.totalorder %s16, 1
    %p48 = por %p46, %p47
    %p49 = scmp.ne.s32.totalorder %s38, %s39
    %p50 = scmp.eq.s32.totalorder %s16, 0
    %p51 = por %p49, %p50
    %p52 = scmp.ne.s32.totalorder %s38, %s39
    %p53 = scmp.eq.s32.totalorder %s17, 1
    %p54 = por %p52, %p53
    %p56 = scmp.ne.s32.totalorder %s39, %s55
    %p57 = scmp.eq.s32.totalorder %s17, 0
    %p58 = por %p56, %p57
    %s59 = ssub.s32 %s18, %s30
    %s60 = ssub.s32 %s19, %s26
    %s61 = sor.u32 %s59, %s60
    %p62 = scmp.eq.s32.totalorder %s61, 0
    %s64 = sadd.s32 %s63, 1
    %s65 = scalar_select %p62, %s63, %s64
    %p68 = pneg %p62
    %p69 = scmp.eq.s32.totalorder %s11, 1
    %p70 = por %p68, %p69
    %p71 = scmp.ne.s32.totalorder %s63, %s66
    %p72 = scmp.eq.s32.totalorder %s11, 0
    %p73 = por %p71, %p72
    %p74 = scmp.ne.s32.totalorder %s63, %s66
    %p75 = scmp.eq.s32.totalorder %s16, 1
    %p76 = por %p74, %p75
    %p77 = scmp.ne.s32.totalorder %s66, %s67
    %p78 = scmp.eq.s32.totalorder %s16, 0
    %p79 = por %p77, %p78
    %p80 = scmp.ne.s32.totalorder %s66, %s67
    %p81 = scmp.eq.s32.totalorder %s17, 1
    %p82 = por %p80, %p81
    %p84 = scmp.ne.s32.totalorder %s67, %s83
    %p85 = scmp.eq.s32.totalorder %s17, 0
    %p86 = por %p84, %p85
    %s88 = sadd.s32 %s87, 1
    %p91 = scmp.eq.s32.totalorder %s11, 1
    %p92 = scmp.ne.s32.totalorder %s87, %s89
    %p93 = scmp.eq.s32.totalorder %s11, 0
    %p94 = por %p92, %p93
    %p95 = scmp.ne.s32.totalorder %s87, %s89
    %p96 = scmp.eq.s32.totalorder %s16, 1
    %p97 = por %p95, %p96
    %p98 = scmp.ne.s32.totalorder %s89, %s90
    %p99 = scmp.eq.s32.totalorder %s16, 0
    %p100 = por %p98, %p99
    %p101 = scmp.ne.s32.totalorder %s89, %s90
    %p102 = scmp.eq.s32.totalorder %s17, 1
    %p103 = por %p101, %p102
    %p105 = scmp.ne.s32.totalorder %s90, %s104
    %p106 = scmp.eq.s32.totalorder %s17, 0
    %p107 = por %p105, %p106
    %s108 = ssub.s32 %s18, %s30
    %p109 = scmp.eq.s32.totalorder %s108, 0
    %s111 = sadd.s32 %s110, 1
    %s112 = scalar_select %p109, %s110, %s111
    %p115 = pneg %p109
    %p116 = scmp.eq.s32.totalorder %s11, 1
    %p117 = por %p115, %p116
    %p118 = scmp.ne.s32.totalorder %s110, %s113
    %p119 = scmp.eq.s32.totalorder %s11, 0
    %p120 = por %p118, %p119
    %p121 = scmp.ne.s32.totalorder %s110, %s113
    %p122 = scmp.eq.s32.totalorder %s16, 1
    %p123 = por %p121, %p122
    %p124 = scmp.ne.s32.totalorder %s113, %s114
    %p125 = scmp.eq.s32.totalorder %s16, 0
    %p126 = por %p124, %p125
    %p127 = scmp.ne.s32.totalorder %s113, %s114
    %p128 = scmp.eq.s32.totalorder %s17, 1
    %p129 = por %p127, %p128
    %p131 = scmp.ne.s32.totalorder %s114, %s130
    %p132 = scmp.eq.s32.totalorder %s17, 0
    %p133 = por %p131, %p132
    %s134 = ssub.s32 %s18, %s30
    %p135 = scmp.eq.s32.totalorder %s134, 0
    %s137 = sadd.s32 %s136, 1
    %s138 = scalar_select %p135, %s136, %s137
    %p141 = pneg %p135
    %p142 = scmp.eq.s32.totalorder %s11, 1
    %p143 = por %p141, %p142
    %p144 = scmp.ne.s32.totalorder %s136, %s139
    %p145 = scmp.eq.s32.totalorder %s11, 0
    %p146 = por %p144, %p145
    %p147 = scmp.ne.s32.totalorder %s136, %s139
    %p148 = scmp.eq.s32.totalorder %s16, 1
    %p149 = por %p147, %p148
    %p150 = scmp.ne.s32.totalorder %s139, %s140
    %p151 = scmp.eq.s32.totalorder %s16, 0
    %p152 = por %p150, %p151
    %p153 = scmp.ne.s32.totalorder %s139, %s140
    %p154 = scmp.eq.s32.totalorder %s17, 1
    %p155 = por %p153, %p154
    %p157 = scmp.ne.s32.totalorder %s140, %s156
    %p158 = scmp.eq.s32.totalorder %s17, 0
    %p159 = por %p157, %p158
    %s160 = ssub.s32 %s18, %s30
    %s161 = ssub.s32 %s19, %s26
    %s162 = sor.u32 %s160, %s161
    %p163 = scmp.eq.s32.totalorder %s162, 0
    %s165 = sadd.s32 %s164, 1
    %s166 = scalar_select %p163, %s164, %s165
    %p169 = pneg %p163
    %p170 = scmp.eq.s32.totalorder %s11, 1
    %p171 = por %p169, %p170
    %p172 = scmp.ne.s32.totalorder %s164, %s167
    %p173 = scmp.eq.s32.totalorder %s11, 0
    %p174 = por %p172, %p173
    %p175 = scmp.ne.s32.totalorder %s164, %s167
    %p176 = scmp.eq.s32.totalorder %s16, 1
    %p177 = por %p175, %p176
    %p178 = scmp.ne.s32.totalorder %s167, %s168
    %p179 = scmp.eq.s32.totalorder %s16, 0
    %p180 = por %p178, %p179
    %p181 = scmp.ne.s32.totalorder %s167, %s168
    %p182 = scmp.eq.s32.totalorder %s17, 1
    %p183 = por %p181, %p182
    %p185 = scmp.ne.s32.totalorder %s168, %s184
    %p186 = scmp.eq.s32.totalorder %s17, 0
    %p187 = por %p185, %p186
    %p188 = scmp.le.s32.totalorder 1, %s11
    %p189 = scmp.lt.s32.totalorder %s11, 3
    %p190 = pnand %p188, %p189
    %p191 = pneg %p190
    // Predicated region
    $region9: #{resblock_v2_forward.7} parent=5 // pred_check
      _
    $region10: #{resblock_v2_forward.7} parent=5 // pred_check_branch
      %193 = sbr.rel (%p190) target = $region12
    $region11: #{resblock_v2_forward.7} parent=5 // pred_region
      %s194 = ssub.s32 %s11, 1
      // Predicated region
      $region13: #{resblock_v2_forward.7} parent=11 // pred_check
        %p195 = pneg %p100
      $region14: #{resblock_v2_forward.7} parent=11 // pred_check_branch
        %197 = sbr.rel (%p195) target = $region16
      $region15: #{resblock_v2_forward.7} parent=11 // pred_region
        _
      $region16: #{resblock_v2_forward.7} parent=11 // pred_fallthru
        _
    $region12: #{resblock_v2_forward.7} parent=5 // pred_fallthru
      _
    %p198 = scmp.lt.s32.totalorder %s11, 2
    // Predicated region
    $region17: #{resblock_v2_forward.7} parent=5 // pred_check
      %p199 = pneg %p198
    $region18: #{resblock_v2_forward.7} parent=5 // pred_check_branch
      %201 = sbr.rel (%p199) target = $region20
    $region19: #{resblock_v2_forward.7} parent=5 // pred_region
      // Predicated region
      $region21: #{resblock_v2_forward.7} parent=19 // pred_check
        %p202 = pneg %p45
      $region22: #{resblock_v2_forward.7} parent=19 // pred_check_branch
        %204 = sbr.rel (%p202) target = $region24
      $region23: #{resblock_v2_forward.7} parent=19 // pred_region
        %s205 = smul.u32 64, %s19
        %p206 = scmp.lt.s32.totalorder %s18, 1
        %s207 = scalar_select %p206, %s18, 1
        %p208 = scmp.lt.s32.totalorder %s205, 63
        %s209 = scalar_select %p208, %s205, 63
        %s210 = smul.addr %s207, 64
        %s211 = sadd.s32 %s209, %s210
        %s212 = smul.addr %s211, 8
        %s213 = scalar_lea.vmem %s0, %s212
        %s214 = smul.u32 64, %s19
      $region24: #{resblock_v2_forward.7} parent=19 // pred_fallthru
        _
      // Predicated region
      $region25: #{resblock_v2_forward.7} parent=19 // pred_check
        %p215 = pneg %p73
      $region26: #{resblock_v2_forward.7} parent=19 // pred_check_branch
        %217 = sbr.rel (%p215) target = $region28
      $region27: #{resblock_v2_forward.7} parent=19 // pred_region
        %s218 = smul.u32 64, %s19
        %p219 = scmp.lt.s32.totalorder %s18, 1
        %s220 = scalar_select %p219, %s18, 1
        %p221 = scmp.lt.s32.totalorder %s218, 63
        %s222 = scalar_select %p221, %s218, 63
        %s223 = smul.addr %s220, 64
        %s224 = sadd.s32 %s222, %s223
        %s225 = smul.addr %s224, 8
        %s226 = scalar_lea.vmem %s1, %s225
        %s227 = smul.u32 64, %s19
      $region28: #{resblock_v2_forward.7} parent=19 // pred_fallthru
        _
      // Predicated region
      $region29: #{resblock_v2_forward.7} parent=19 // pred_check
        %p228 = pneg %p120
      $region30: #{resblock_v2_forward.7} parent=19 // pred_check_branch
        %230 = sbr.rel (%p228) target = $region32
      $region31: #{resblock_v2_forward.7} parent=19 // pred_region
        %p231 = scmp.lt.s32.totalorder %s18, 1
        %s232 = scalar_select %p231, %s18, 1
        %s233 = scalar_lea.vmem %s3, %s232
      $region32: #{resblock_v2_forward.7} parent=19 // pred_fallthru
        _
      // Predicated region
      $region33: #{resblock_v2_forward.7} parent=19 // pred_check
        %p234 = pneg %p146
      $region34: #{resblock_v2_forward.7} parent=19 // pred_check_branch
        %236 = sbr.rel (%p234) target = $region36
      $region35: #{resblock_v2_forward.7} parent=19 // pred_region
        %p237 = scmp.lt.s32.totalorder %s18, 1
        %s238 = scalar_select %p237, %s18, 1
        %s239 = scalar_lea.vmem %s4, %s238
      $region36: #{resblock_v2_forward.7} parent=19 // pred_fallthru
        _
    $region20: #{resblock_v2_forward.7} parent=5 // pred_fallthru
      _
    %p240 = scmp.le.s32.totalorder 1, %s11
    %p241 = scmp.lt.s32.totalorder %s11, 3
    %p242 = pnand %p240, %p241
    %p243 = pneg %p242
    // Predicated region
    $region37: #{resblock_v2_forward.7} parent=5 // pred_check
      _
    $region38: #{resblock_v2_forward.7} parent=5 // pred_check_branch
      %245 = sbr.rel (%p242) target = $region40
    $region39: #{resblock_v2_forward.7} parent=5 // pred_region
      %s246 = ssub.s32 %s11, 1
      %s247 = smul.u32 64, %s21
      %p248 = scmp.lt.s32.totalorder %s20, 1
      %s249 = scalar_select %p248, %s20, 1
      %p250 = scmp.lt.s32.totalorder %s247, 63
      %s251 = scalar_select %p250, %s247, 63
      %s252 = smul.addr %s249, 64
      %s253 = sadd.s32 %s251, %s252
      %s254 = smul.addr %s253, 8
      %s255 = scalar_lea.vmem %s0, %s254
      %p256 = pneg %p51
      %p257 = pneg %p48
      %s258 = smul.u32 64, %s21
      %p259 = scmp.lt.s32.totalorder %s20, 1
      %s260 = scalar_select %p259, %s20, 1
      %p261 = scmp.lt.s32.totalorder %s258, 63
      %s262 = scalar_select %p261, %s258, 63
      %s263 = smul.addr %s260, 64
      %s264 = sadd.s32 %s262, %s263
      %s265 = smul.addr %s264, 8
      %s266 = scalar_lea.vmem %s1, %s265
      %p267 = pneg %p79
      %p268 = pneg %p76
      %p269 = pneg %p100
      %p270 = pneg %p97
      %p271 = scmp.lt.s32.totalorder %s20, 1
      %s272 = scalar_select %p271, %s20, 1
      %s273 = scalar_lea.vmem %s3, %s272
      %p274 = pneg %p126
      %p275 = pneg %p123
      %p276 = scmp.lt.s32.totalorder %s20, 1
      %s277 = scalar_select %p276, %s20, 1
      %s278 = scalar_lea.vmem %s4, %s277
      %p279 = pneg %p152
      %p280 = pneg %p149
      %p281 = pneg %p180
      %p282 = pneg %p177
      %s283 = smul.u32 64, %s21
      %p284 = scmp.lt.s32.totalorder %s20, 1
      %s285 = scalar_select %p284, %s20, 1
      %p286 = scmp.lt.s32.totalorder %s283, 63
      %s287 = scalar_select %p286, %s283, 63
      %s288 = smul.addr %s285, 64
      %s289 = sadd.s32 %s287, %s288
      %s290 = smul.addr %s289, 8
      %s291 = scalar_lea.vmem %s5, %s290
      %s292 = smul.u32 64, %s21
      %p293 = scmp.lt.s32.totalorder %s20, 1
      %s294 = scalar_select %p293, %s20, 1
      %p295 = scmp.lt.s32.totalorder %s292, 63
      %s296 = scalar_select %p295, %s292, 63
      %s297 = smul.addr %s294, 64
      %s298 = sadd.s32 %s296, %s297
      %s299 = smul.addr %s298, 8
      %s300 = scalar_lea.vmem %s0, %s299
      %s301 = smul.u32 64, %s21
      %s302 = smul.u32 64, %s21
      %p303 = scmp.lt.s32.totalorder %s20, 1
      %s304 = scalar_select %p303, %s20, 1
      %p305 = scmp.lt.s32.totalorder %s302, 63
      %s306 = scalar_select %p305, %s302, 63
      %s307 = smul.addr %s304, 64
      %s308 = sadd.s32 %s306, %s307
      %s309 = smul.addr %s308, 8
      %s310 = scalar_lea.vmem %s1, %s309
      %s311 = smul.u32 64, %s21
      %p312 = scmp.lt.s32.totalorder %s20, 1
      %s313 = scalar_select %p312, %s20, 1
      %s314 = scalar_lea.vmem %s3, %s313
      %p315 = scmp.lt.s32.totalorder %s20, 1
      %s316 = scalar_select %p315, %s20, 1
      %s317 = scalar_lea.vmem %s4, %s316
      %s318 = smul.u32 64, %s21
      %p319 = scmp.lt.s32.totalorder %s20, 1
      %s320 = scalar_select %p319, %s20, 1
      %p321 = scmp.lt.s32.totalorder %s318, 63
      %s322 = scalar_select %p321, %s318, 63
      %s323 = smul.addr %s320, 64
      %s324 = sadd.s32 %s322, %s323
      %s325 = smul.addr %s324, 8
      %s326 = scalar_lea.vmem %s5, %s325
      %s327 = smul.u32 64, %s21
      %v328 = vld [vmem:[%s300] sm:$0xff]
      %v329 = vld [vmem:[%s300 + $0x8] sm:$0xff]
      %v330 = vld [vmem:[%s300 + $0x10] sm:$0xff]
      %v331 = vld [vmem:[%s300 + $0x18] sm:$0xff]
      %v332 = vld [vmem:[%s300 + $0x20] sm:$0xff]
      %v333 = vld [vmem:[%s300 + $0x28] sm:$0xff]
      %v334 = vld [vmem:[%s300 + $0x30] sm:$0xff]
      %v335 = vld [vmem:[%s300 + $0x38] sm:$0xff]
      %v336 = vld [vmem:[%s300 + $0x40] sm:$0xff]
      %v337 = vld [vmem:[%s300 + $0x48] sm:$0xff]
      %v338 = vld [vmem:[%s300 + $0x50] sm:$0xff]
      %v339 = vld [vmem:[%s300 + $0x58] sm:$0xff]
      %v340 = vld [vmem:[%s300 + $0x60] sm:$0xff]
      %v341 = vld [vmem:[%s300 + $0x68] sm:$0xff]
      %v342 = vld [vmem:[%s300 + $0x70] sm:$0xff]
      %v343 = vld [vmem:[%s300 + $0x78] sm:$0xff]
      %v344 = vld [vmem:[%s300 + $0x80] sm:$0xff]
      %v345 = vld [vmem:[%s300 + $0x88] sm:$0xff]
      %v346 = vld [vmem:[%s300 + $0x90] sm:$0xff]
      %v347 = vld [vmem:[%s300 + $0x98] sm:$0xff]
      %v348 = vld [vmem:[%s300 + $0xa0] sm:$0xff]
      %v349 = vld [vmem:[%s300 + $0xa8] sm:$0xff]
      %v350 = vld [vmem:[%s300 + $0xb0] sm:$0xff]
      %v351 = vld [vmem:[%s300 + $0xb8] sm:$0xff]
      %v352 = vld [vmem:[%s300 + $0xc0] sm:$0xff]
      %v353 = vld [vmem:[%s300 + $0xc8] sm:$0xff]
      %v354 = vld [vmem:[%s300 + $0xd0] sm:$0xff]
      %v355 = vld [vmem:[%s300 + $0xd8] sm:$0xff]
      %v356 = vld [vmem:[%s300 + $0xe0] sm:$0xff]
      %v357 = vld [vmem:[%s300 + $0xe8] sm:$0xff]
      %v358 = vld [vmem:[%s300 + $0xf0] sm:$0xff]
      %v359 = vld [vmem:[%s300 + $0xf8] sm:$0xff]
      %v360 = vld [vmem:[%s300 + $0x100] sm:$0xff]
      %v361 = vld [vmem:[%s300 + $0x108] sm:$0xff]
      %v362 = vld [vmem:[%s300 + $0x110] sm:$0xff]
      %v363 = vld [vmem:[%s300 + $0x118] sm:$0xff]
      %v364 = vld [vmem:[%s300 + $0x120] sm:$0xff]
      %v365 = vld [vmem:[%s300 + $0x128] sm:$0xff]
      %v366 = vld [vmem:[%s300 + $0x130] sm:$0xff]
      %v367 = vld [vmem:[%s300 + $0x138] sm:$0xff]
      %v368 = vld [vmem:[%s300 + $0x140] sm:$0xff]
      %v369 = vld [vmem:[%s300 + $0x148] sm:$0xff]
      %v370 = vld [vmem:[%s300 + $0x150] sm:$0xff]
      %v371 = vld [vmem:[%s300 + $0x158] sm:$0xff]
      %v372 = vld [vmem:[%s300 + $0x160] sm:$0xff]
      %v373 = vld [vmem:[%s300 + $0x168] sm:$0xff]
      %v374 = vld [vmem:[%s300 + $0x170] sm:$0xff]
      %v375 = vld [vmem:[%s300 + $0x178] sm:$0xff]
      %v376 = vld [vmem:[%s300 + $0x180] sm:$0xff]
      %v377 = vld [vmem:[%s300 + $0x188] sm:$0xff]
      %v378 = vld [vmem:[%s300 + $0x190] sm:$0xff]
      %v379 = vld [vmem:[%s300 + $0x198] sm:$0xff]
      %v380 = vld [vmem:[%s300 + $0x1a0] sm:$0xff]
      %v381 = vld [vmem:[%s300 + $0x1a8] sm:$0xff]
      %v382 = vld [vmem:[%s300 + $0x1b0] sm:$0xff]
      %v383 = vld [vmem:[%s300 + $0x1b8] sm:$0xff]
      %v384 = vld [vmem:[%s300 + $0x1c0] sm:$0xff]
      %v385 = vld [vmem:[%s300 + $0x1c8] sm:$0xff]
      %v386 = vld [vmem:[%s300 + $0x1d0] sm:$0xff]
      %v387 = vld [vmem:[%s300 + $0x1d8] sm:$0xff]
      %v388 = vld [vmem:[%s300 + $0x1e0] sm:$0xff]
      %v389 = vld [vmem:[%s300 + $0x1e8] sm:$0xff]
      %v390 = vld [vmem:[%s300 + $0x1f0] sm:$0xff]
      %v391 = vld [vmem:[%s300 + $0x1f8] sm:$0xff]
      %v392 = vld [vmem:[%s2] sm:$0x1]
      %v394 = vlaneseq
      %v395 = vshrl.u32 %v394, 7
      %v396 = vsub.s32 0, %v395
      %v397 = vrot.slane %v392, %v396
      %v399 = vmul.f32 %v328, %v397
      %v400 = vmul.f32 %v329, %v397
      %v401 = vmul.f32 %v330, %v397
      %v402 = vmul.f32 %v331, %v397
      %v403 = vmul.f32 %v332, %v397
      %v404 = vmul.f32 %v333, %v397
      %v405 = vmul.f32 %v334, %v397
      %v406 = vmul.f32 %v335, %v397
      %v407 = vmul.f32 %v336, %v397
      %v408 = vmul.f32 %v337, %v397
      %v409 = vmul.f32 %v338, %v397
      %v410 = vmul.f32 %v339, %v397
      %v411 = vmul.f32 %v340, %v397
      %v412 = vmul.f32 %v341, %v397
      %v413 = vmul.f32 %v342, %v397
      %v414 = vmul.f32 %v343, %v397
      %v415 = vmul.f32 %v344, %v397
      %v416 = vmul.f32 %v345, %v397
      %v417 = vmul.f32 %v346, %v397
      %v418 = vmul.f32 %v347, %v397
      %v419 = vmul.f32 %v348, %v397
      %v420 = vmul.f32 %v349, %v397
      %v421 = vmul.f32 %v350, %v397
      %v422 = vmul.f32 %v351, %v397
      %v423 = vmul.f32 %v352, %v397
      %v424 = vmul.f32 %v353, %v397
      %v425 = vmul.f32 %v354, %v397
      %v426 = vmul.f32 %v355, %v397
      %v427 = vmul.f32 %v356, %v397
      %v428 = vmul.f32 %v357, %v397
      %v429 = vmul.f32 %v358, %v397
      %v430 = vmul.f32 %v359, %v397
      %v431 = vmul.f32 %v360, %v397
      %v432 = vmul.f32 %v361, %v397
      %v433 = vmul.f32 %v362, %v397
      %v434 = vmul.f32 %v363, %v397
      %v435 = vmul.f32 %v364, %v397
      %v436 = vmul.f32 %v365, %v397
      %v437 = vmul.f32 %v366, %v397
      %v438 = vmul.f32 %v367, %v397
      %v439 = vmul.f32 %v368, %v397
      %v440 = vmul.f32 %v369, %v397
      %v441 = vmul.f32 %v370, %v397
      %v442 = vmul.f32 %v371, %v397
      %v443 = vmul.f32 %v372, %v397
      %v444 = vmul.f32 %v373, %v397
      %v445 = vmul.f32 %v374, %v397
      %v446 = vmul.f32 %v375, %v397
      %v447 = vmul.f32 %v376, %v397
      %v448 = vmul.f32 %v377, %v397
      %v449 = vmul.f32 %v378, %v397
      %v450 = vmul.f32 %v379, %v397
      %v451 = vmul.f32 %v380, %v397
      %v452 = vmul.f32 %v381, %v397
      %v453 = vmul.f32 %v382, %v397
      %v454 = vmul.f32 %v383, %v397
      %v455 = vmul.f32 %v384, %v397
      %v456 = vmul.f32 %v385, %v397
      %v457 = vmul.f32 %v386, %v397
      %v458 = vmul.f32 %v387, %v397
      %v459 = vmul.f32 %v388, %v397
      %v460 = vmul.f32 %v389, %v397
      %v461 = vmul.f32 %v390, %v397
      %v462 = vmul.f32 %v391, %v397
      %v463 = vld [vmem:[%s310] sm:$0xff]
      %v464 = vld [vmem:[%s310 + $0x8] sm:$0xff]
      %v465 = vld [vmem:[%s310 + $0x10] sm:$0xff]
      %v466 = vld [vmem:[%s310 + $0x18] sm:$0xff]
      %v467 = vld [vmem:[%s310 + $0x20] sm:$0xff]
      %v468 = vld [vmem:[%s310 + $0x28] sm:$0xff]
      %v469 = vld [vmem:[%s310 + $0x30] sm:$0xff]
      %v470 = vld [vmem:[%s310 + $0x38] sm:$0xff]
      %v471 = vld [vmem:[%s310 + $0x40] sm:$0xff]
      %v472 = vld [vmem:[%s310 + $0x48] sm:$0xff]
      %v473 = vld [vmem:[%s310 + $0x50] sm:$0xff]
      %v474 = vld [vmem:[%s310 + $0x58] sm:$0xff]
      %v475 = vld [vmem:[%s310 + $0x60] sm:$0xff]
      %v476 = vld [vmem:[%s310 + $0x68] sm:$0xff]
      %v477 = vld [vmem:[%s310 + $0x70] sm:$0xff]
      %v478 = vld [vmem:[%s310 + $0x78] sm:$0xff]
      %v479 = vld [vmem:[%s310 + $0x80] sm:$0xff]
      %v480 = vld [vmem:[%s310 + $0x88] sm:$0xff]
      %v481 = vld [vmem:[%s310 + $0x90] sm:$0xff]
      %v482 = vld [vmem:[%s310 + $0x98] sm:$0xff]
      %v483 = vld [vmem:[%s310 + $0xa0] sm:$0xff]
      %v484 = vld [vmem:[%s310 + $0xa8] sm:$0xff]
      %v485 = vld [vmem:[%s310 + $0xb0] sm:$0xff]
      %v486 = vld [vmem:[%s310 + $0xb8] sm:$0xff]
      %v487 = vld [vmem:[%s310 + $0xc0] sm:$0xff]
      %v488 = vld [vmem:[%s310 + $0xc8] sm:$0xff]
      %v489 = vld [vmem:[%s310 + $0xd0] sm:$0xff]
      %v490 = vld [vmem:[%s310 + $0xd8] sm:$0xff]
      %v491 = vld [vmem:[%s310 + $0xe0] sm:$0xff]
      %v492 = vld [vmem:[%s310 + $0xe8] sm:$0xff]
      %v493 = vld [vmem:[%s310 + $0xf0] sm:$0xff]
      %v494 = vld [vmem:[%s310 + $0xf8] sm:$0xff]
      %v495 = vld [vmem:[%s310 + $0x100] sm:$0xff]
      %v496 = vld [vmem:[%s310 + $0x108] sm:$0xff]
      %v497 = vld [vmem:[%s310 + $0x110] sm:$0xff]
      %v498 = vld [vmem:[%s310 + $0x118] sm:$0xff]
      %v499 = vld [vmem:[%s310 + $0x120] sm:$0xff]
      %v500 = vld [vmem:[%s310 + $0x128] sm:$0xff]
      %v501 = vld [vmem:[%s310 + $0x130] sm:$0xff]
      %v502 = vld [vmem:[%s310 + $0x138] sm:$0xff]
      %v503 = vld [vmem:[%s310 + $0x140] sm:$0xff]
      %v504 = vld [vmem:[%s310 + $0x148] sm:$0xff]
      %v505 = vld [vmem:[%s310 + $0x150] sm:$0xff]
      %v506 = vld [vmem:[%s310 + $0x158] sm:$0xff]
      %v507 = vld [vmem:[%s310 + $0x160] sm:$0xff]
      %v508 = vld [vmem:[%s310 + $0x168] sm:$0xff]
      %v509 = vld [vmem:[%s310 + $0x170] sm:$0xff]
      %v510 = vld [vmem:[%s310 + $0x178] sm:$0xff]
      %v511 = vld [vmem:[%s310 + $0x180] sm:$0xff]
      %v512 = vld [vmem:[%s310 + $0x188] sm:$0xff]
      %v513 = vld [vmem:[%s310 + $0x190] sm:$0xff]
      %v514 = vld [vmem:[%s310 + $0x198] sm:$0xff]
      %v515 = vld [vmem:[%s310 + $0x1a0] sm:$0xff]
      %v516 = vld [vmem:[%s310 + $0x1a8] sm:$0xff]
      %v517 = vld [vmem:[%s310 + $0x1b0] sm:$0xff]
      %v518 = vld [vmem:[%s310 + $0x1b8] sm:$0xff]
      %v519 = vld [vmem:[%s310 + $0x1c0] sm:$0xff]
      %v520 = vld [vmem:[%s310 + $0x1c8] sm:$0xff]
      %v521 = vld [vmem:[%s310 + $0x1d0] sm:$0xff]
      %v522 = vld [vmem:[%s310 + $0x1d8] sm:$0xff]
      %v523 = vld [vmem:[%s310 + $0x1e0] sm:$0xff]
      %v524 = vld [vmem:[%s310 + $0x1e8] sm:$0xff]
      %v525 = vld [vmem:[%s310 + $0x1f0] sm:$0xff]
      %v526 = vld [vmem:[%s310 + $0x1f8] sm:$0xff]
      %v527 = vld [vmem:[%s314] sm:$0x1]
      %v529 = vlaneseq
      %v530 = vshrl.u32 %v529, 7
      %v531 = vsub.s32 0, %v530
      %v532 = vrot.slane %v527, %v531
      %v534 = vmul.f32 %v463, %v532
      %v535 = vmul.f32 %v464, %v532
      %v536 = vmul.f32 %v465, %v532
      %v537 = vmul.f32 %v466, %v532
      %v538 = vmul.f32 %v467, %v532
      %v539 = vmul.f32 %v468, %v532
      %v540 = vmul.f32 %v469, %v532
      %v541 = vmul.f32 %v470, %v532
      %v542 = vmul.f32 %v471, %v532
      %v543 = vmul.f32 %v472, %v532
      %v544 = vmul.f32 %v473, %v532
      %v545 = vmul.f32 %v474, %v532
      %v546 = vmul.f32 %v475, %v532
      %v547 = vmul.f32 %v476, %v532
      %v548 = vmul.f32 %v477, %v532
      %v549 = vmul.f32 %v478, %v532
      %v550 = vmul.f32 %v479, %v532
      %v551 = vmul.f32 %v480, %v532
      %v552 = vmul.f32 %v481, %v532
      %v553 = vmul.f32 %v482, %v532
      %v554 = vmul.f32 %v483, %v532
      %v555 = vmul.f32 %v484, %v532
      %v556 = vmul.f32 %v485, %v532
      %v557 = vmul.f32 %v486, %v532
      %v558 = vmul.f32 %v487, %v532
      %v559 = vmul.f32 %v488, %v532
      %v560 = vmul.f32 %v489, %v532
      %v561 = vmul.f32 %v490, %v532
      %v562 = vmul.f32 %v491, %v532
      %v563 = vmul.f32 %v492, %v532
      %v564 = vmul.f32 %v493, %v532
      %v565 = vmul.f32 %v494, %v532
      %v566 = vmul.f32 %v495, %v532
      %v567 = vmul.f32 %v496, %v532
      %v568 = vmul.f32 %v497, %v532
      %v569 = vmul.f32 %v498, %v532
      %v570 = vmul.f32 %v499, %v532
      %v571 = vmul.f32 %v500, %v532
      %v572 = vmul.f32 %v501, %v532
      %v573 = vmul.f32 %v502, %v532
      %v574 = vmul.f32 %v503, %v532
      %v575 = vmul.f32 %v504, %v532
      %v576 = vmul.f32 %v505, %v532
      %v577 = vmul.f32 %v506, %v532
      %v578 = vmul.f32 %v507, %v532
      %v579 = vmul.f32 %v508, %v532
      %v580 = vmul.f32 %v509, %v532
      %v581 = vmul.f32 %v510, %v532
      %v582 = vmul.f32 %v511, %v532
      %v583 = vmul.f32 %v512, %v532
      %v584 = vmul.f32 %v513, %v532
      %v585 = vmul.f32 %v514, %v532
      %v586 = vmul.f32 %v515, %v532
      %v587 = vmul.f32 %v516, %v532
      %v588 = vmul.f32 %v517, %v532
      %v589 = vmul.f32 %v518, %v532
      %v590 = vmul.f32 %v519, %v532
      %v591 = vmul.f32 %v520, %v532
      %v592 = vmul.f32 %v521, %v532
      %v593 = vmul.f32 %v522, %v532
      %v594 = vmul.f32 %v523, %v532
      %v595 = vmul.f32 %v524, %v532
      %v596 = vmul.f32 %v525, %v532
      %v597 = vmul.f32 %v526, %v532
      %v598 = vadd.f32 %v399, %v534
      %v599 = vadd.f32 %v400, %v535
      %v600 = vadd.f32 %v401, %v536
      %v601 = vadd.f32 %v402, %v537
      %v602 = vadd.f32 %v403, %v538
      %v603 = vadd.f32 %v404, %v539
      %v604 = vadd.f32 %v405, %v540
      %v605 = vadd.f32 %v406, %v541
      %v606 = vadd.f32 %v407, %v542
      %v607 = vadd.f32 %v408, %v543
      %v608 = vadd.f32 %v409, %v544
      %v609 = vadd.f32 %v410, %v545
      %v610 = vadd.f32 %v411, %v546
      %v611 = vadd.f32 %v412, %v547
      %v612 = vadd.f32 %v413, %v548
      %v613 = vadd.f32 %v414, %v549
      %v614 = vadd.f32 %v415, %v550
      %v615 = vadd.f32 %v416, %v551
      %v616 = vadd.f32 %v417, %v552
      %v617 = vadd.f32 %v418, %v553
      %v618 = vadd.f32 %v419, %v554
      %v619 = vadd.f32 %v420, %v555
      %v620 = vadd.f32 %v421, %v556
      %v621 = vadd.f32 %v422, %v557
      %v622 = vadd.f32 %v423, %v558
      %v623 = vadd.f32 %v424, %v559
      %v624 = vadd.f32 %v425, %v560
      %v625 = vadd.f32 %v426, %v561
      %v626 = vadd.f32 %v427, %v562
      %v627 = vadd.f32 %v428, %v563
      %v628 = vadd.f32 %v429, %v564
      %v629 = vadd.f32 %v430, %v565
      %v630 = vadd.f32 %v431, %v566
      %v631 = vadd.f32 %v432, %v567
      %v632 = vadd.f32 %v433, %v568
      %v633 = vadd.f32 %v434, %v569
      %v634 = vadd.f32 %v435, %v570
      %v635 = vadd.f32 %v436, %v571
      %v636 = vadd.f32 %v437, %v572
      %v637 = vadd.f32 %v438, %v573
      %v638 = vadd.f32 %v439, %v574
      %v639 = vadd.f32 %v440, %v575
      %v640 = vadd.f32 %v441, %v576
      %v641 = vadd.f32 %v442, %v577
      %v642 = vadd.f32 %v443, %v578
      %v643 = vadd.f32 %v444, %v579
      %v644 = vadd.f32 %v445, %v580
      %v645 = vadd.f32 %v446, %v581
      %v646 = vadd.f32 %v447, %v582
      %v647 = vadd.f32 %v448, %v583
      %v648 = vadd.f32 %v449, %v584
      %v649 = vadd.f32 %v450, %v585
      %v650 = vadd.f32 %v451, %v586
      %v651 = vadd.f32 %v452, %v587
      %v652 = vadd.f32 %v453, %v588
      %v653 = vadd.f32 %v454, %v589
      %v654 = vadd.f32 %v455, %v590
      %v655 = vadd.f32 %v456, %v591
      %v656 = vadd.f32 %v457, %v592
      %v657 = vadd.f32 %v458, %v593
      %v658 = vadd.f32 %v459, %v594
      %v659 = vadd.f32 %v460, %v595
      %v660 = vadd.f32 %v461, %v596
      %v661 = vadd.f32 %v462, %v597
      %v662 = vld [vmem:[%s317] sm:$0x1]
      %v664 = vlaneseq
      %v665 = vshrl.u32 %v664, 7
      %v666 = vsub.s32 0, %v665
      %v667 = vrot.slane %v662, %v666
      %v669 = vadd.f32 %v598, %v667
      %v670 = vadd.f32 %v599, %v667
      %v671 = vadd.f32 %v600, %v667
      %v672 = vadd.f32 %v601, %v667
      %v673 = vadd.f32 %v602, %v667
      %v674 = vadd.f32 %v603, %v667
      %v675 = vadd.f32 %v604, %v667
      %v676 = vadd.f32 %v605, %v667
      %v677 = vadd.f32 %v606, %v667
      %v678 = vadd.f32 %v607, %v667
      %v679 = vadd.f32 %v608, %v667
      %v680 = vadd.f32 %v609, %v667
      %v681 = vadd.f32 %v610, %v667
      %v682 = vadd.f32 %v611, %v667
      %v683 = vadd.f32 %v612, %v667
      %v684 = vadd.f32 %v613, %v667
      %v685 = vadd.f32 %v614, %v667
      %v686 = vadd.f32 %v615, %v667
      %v687 = vadd.f32 %v616, %v667
      %v688 = vadd.f32 %v617, %v667
      %v689 = vadd.f32 %v618, %v667
      %v690 = vadd.f32 %v619, %v667
      %v691 = vadd.f32 %v620, %v667
      %v692 = vadd.f32 %v621, %v667
      %v693 = vadd.f32 %v622, %v667
      %v694 = vadd.f32 %v623, %v667
      %v695 = vadd.f32 %v624, %v667
      %v696 = vadd.f32 %v625, %v667
      %v697 = vadd.f32 %v626, %v667
      %v698 = vadd.f32 %v627, %v667
      %v699 = vadd.f32 %v628, %v667
      %v700 = vadd.f32 %v629, %v667
      %v701 = vadd.f32 %v630, %v667
      %v702 = vadd.f32 %v631, %v667
      %v703 = vadd.f32 %v632, %v667
      %v704 = vadd.f32 %v633, %v667
      %v705 = vadd.f32 %v634, %v667
      %v706 = vadd.f32 %v635, %v667
      %v707 = vadd.f32 %v636, %v667
      %v708 = vadd.f32 %v637, %v667
      %v709 = vadd.f32 %v638, %v667
      %v710 = vadd.f32 %v639, %v667
      %v711 = vadd.f32 %v640, %v667
      %v712 = vadd.f32 %v641, %v667
      %v713 = vadd.f32 %v642, %v667
      %v714 = vadd.f32 %v643, %v667
      %v715 = vadd.f32 %v644, %v667
      %v716 = vadd.f32 %v645, %v667
      %v717 = vadd.f32 %v646, %v667
      %v718 = vadd.f32 %v647, %v667
      %v719 = vadd.f32 %v648, %v667
      %v720 = vadd.f32 %v649, %v667
      %v721 = vadd.f32 %v650, %v667
      %v722 = vadd.f32 %v651, %v667
      %v723 = vadd.f32 %v652, %v667
      %v724 = vadd.f32 %v653, %v667
      %v725 = vadd.f32 %v654, %v667
      %v726 = vadd.f32 %v655, %v667
      %v727 = vadd.f32 %v656, %v667
      %v728 = vadd.f32 %v657, %v667
      %v729 = vadd.f32 %v658, %v667
      %v730 = vadd.f32 %v659, %v667
      %v731 = vadd.f32 %v660, %v667
      %v732 = vadd.f32 %v661, %v667
      %v733 = vmax.f32 %v669, 0.0
      %v734 = vmax.f32 %v670, 0.0
      %v735 = vmax.f32 %v671, 0.0
      %v736 = vmax.f32 %v672, 0.0
      %v737 = vmax.f32 %v673, 0.0
      %v738 = vmax.f32 %v674, 0.0
      %v739 = vmax.f32 %v675, 0.0
      %v740 = vmax.f32 %v676, 0.0
      %v741 = vmax.f32 %v677, 0.0
      %v742 = vmax.f32 %v678, 0.0
      %v743 = vmax.f32 %v679, 0.0
      %v744 = vmax.f32 %v680, 0.0
      %v745 = vmax.f32 %v681, 0.0
      %v746 = vmax.f32 %v682, 0.0
      %v747 = vmax.f32 %v683, 0.0
      %v748 = vmax.f32 %v684, 0.0
      %v749 = vmax.f32 %v685, 0.0
      %v750 = vmax.f32 %v686, 0.0
      %v751 = vmax.f32 %v687, 0.0
      %v752 = vmax.f32 %v688, 0.0
      %v753 = vmax.f32 %v689, 0.0
      %v754 = vmax.f32 %v690, 0.0
      %v755 = vmax.f32 %v691, 0.0
      %v756 = vmax.f32 %v692, 0.0
      %v757 = vmax.f32 %v693, 0.0
      %v758 = vmax.f32 %v694, 0.0
      %v759 = vmax.f32 %v695, 0.0
      %v760 = vmax.f32 %v696, 0.0
      %v761 = vmax.f32 %v697, 0.0
      %v762 = vmax.f32 %v698, 0.0
      %v763 = vmax.f32 %v699, 0.0
      %v764 = vmax.f32 %v700, 0.0
      %v765 = vmax.f32 %v701, 0.0
      %v766 = vmax.f32 %v702, 0.0
      %v767 = vmax.f32 %v703, 0.0
      %v768 = vmax.f32 %v704, 0.0
      %v769 = vmax.f32 %v705, 0.0
      %v770 = vmax.f32 %v706, 0.0
      %v771 = vmax.f32 %v707, 0.0
      %v772 = vmax.f32 %v708, 0.0
      %v773 = vmax.f32 %v709, 0.0
      %v774 = vmax.f32 %v710, 0.0
      %v775 = vmax.f32 %v711, 0.0
      %v776 = vmax.f32 %v712, 0.0
      %v777 = vmax.f32 %v713, 0.0
      %v778 = vmax.f32 %v714, 0.0
      %v779 = vmax.f32 %v715, 0.0
      %v780 = vmax.f32 %v716, 0.0
      %v781 = vmax.f32 %v717, 0.0
      %v782 = vmax.f32 %v718, 0.0
      %v783 = vmax.f32 %v719, 0.0
      %v784 = vmax.f32 %v720, 0.0
      %v785 = vmax.f32 %v721, 0.0
      %v786 = vmax.f32 %v722, 0.0
      %v787 = vmax.f32 %v723, 0.0
      %v788 = vmax.f32 %v724, 0.0
      %v789 = vmax.f32 %v725, 0.0
      %v790 = vmax.f32 %v726, 0.0
      %v791 = vmax.f32 %v727, 0.0
      %v792 = vmax.f32 %v728, 0.0
      %v793 = vmax.f32 %v729, 0.0
      %v794 = vmax.f32 %v730, 0.0
      %v795 = vmax.f32 %v731, 0.0
      %v796 = vmax.f32 %v732, 0.0
      %797 = vst [vmem:[%s326] sm:$0xff] %v733
      %798 = vst [vmem:[%s326 + $0x8] sm:$0xff] %v734
      %799 = vst [vmem:[%s326 + $0x10] sm:$0xff] %v735
      %800 = vst [vmem:[%s326 + $0x18] sm:$0xff] %v736
      %801 = vst [vmem:[%s326 + $0x20] sm:$0xff] %v737
      %802 = vst [vmem:[%s326 + $0x28] sm:$0xff] %v738
      %803 = vst [vmem:[%s326 + $0x30] sm:$0xff] %v739
      %804 = vst [vmem:[%s326 + $0x38] sm:$0xff] %v740
      %805 = vst [vmem:[%s326 + $0x40] sm:$0xff] %v741
      %806 = vst [vmem:[%s326 + $0x48] sm:$0xff] %v742
      %807 = vst [vmem:[%s326 + $0x50] sm:$0xff] %v743
      %808 = vst [vmem:[%s326 + $0x58] sm:$0xff] %v744
      %809 = vst [vmem:[%s326 + $0x60] sm:$0xff] %v745
      %810 = vst [vmem:[%s326 + $0x68] sm:$0xff] %v746
      %811 = vst [vmem:[%s326 + $0x70] sm:$0xff] %v747
      %812 = vst [vmem:[%s326 + $0x78] sm:$0xff] %v748
      %813 = vst [vmem:[%s326 + $0x80] sm:$0xff] %v749
      %814 = vst [vmem:[%s326 + $0x88] sm:$0xff] %v750
      %815 = vst [vmem:[%s326 + $0x90] sm:$0xff] %v751
      %816 = vst [vmem:[%s326 + $0x98] sm:$0xff] %v752
      %817 = vst [vmem:[%s326 + $0xa0] sm:$0xff] %v753
      %818 = vst [vmem:[%s326 + $0xa8] sm:$0xff] %v754
      %819 = vst [vmem:[%s326 + $0xb0] sm:$0xff] %v755
      %820 = vst [vmem:[%s326 + $0xb8] sm:$0xff] %v756
      %821 = vst [vmem:[%s326 + $0xc0] sm:$0xff] %v757
      %822 = vst [vmem:[%s326 + $0xc8] sm:$0xff] %v758
      %823 = vst [vmem:[%s326 + $0xd0] sm:$0xff] %v759
      %824 = vst [vmem:[%s326 + $0xd8] sm:$0xff] %v760
      %825 = vst [vmem:[%s326 + $0xe0] sm:$0xff] %v761
      %826 = vst [vmem:[%s326 + $0xe8] sm:$0xff] %v762
      %827 = vst [vmem:[%s326 + $0xf0] sm:$0xff] %v763
      %828 = vst [vmem:[%s326 + $0xf8] sm:$0xff] %v764
      %829 = vst [vmem:[%s326 + $0x100] sm:$0xff] %v765
      %830 = vst [vmem:[%s326 + $0x108] sm:$0xff] %v766
      %831 = vst [vmem:[%s326 + $0x110] sm:$0xff] %v767
      %832 = vst [vmem:[%s326 + $0x118] sm:$0xff] %v768
      %833 = vst [vmem:[%s326 + $0x120] sm:$0xff] %v769
      %834 = vst [vmem:[%s326 + $0x128] sm:$0xff] %v770
      %835 = vst [vmem:[%s326 + $0x130] sm:$0xff] %v771
      %836 = vst [vmem:[%s326 + $0x138] sm:$0xff] %v772
      %837 = vst [vmem:[%s326 + $0x140] sm:$0xff] %v773
      %838 = vst [vmem:[%s326 + $0x148] sm:$0xff] %v774
      %839 = vst [vmem:[%s326 + $0x150] sm:$0xff] %v775
      %840 = vst [vmem:[%s326 + $0x158] sm:$0xff] %v776
      %841 = vst [vmem:[%s326 + $0x160] sm:$0xff] %v777
      %842 = vst [vmem:[%s326 + $0x168] sm:$0xff] %v778
      %843 = vst [vmem:[%s326 + $0x170] sm:$0xff] %v779
      %844 = vst [vmem:[%s326 + $0x178] sm:$0xff] %v780
      %845 = vst [vmem:[%s326 + $0x180] sm:$0xff] %v781
      %846 = vst [vmem:[%s326 + $0x188] sm:$0xff] %v782
      %847 = vst [vmem:[%s326 + $0x190] sm:$0xff] %v783
      %848 = vst [vmem:[%s326 + $0x198] sm:$0xff] %v784
      %849 = vst [vmem:[%s326 + $0x1a0] sm:$0xff] %v785
      %850 = vst [vmem:[%s326 + $0x1a8] sm:$0xff] %v786
      %851 = vst [vmem:[%s326 + $0x1b0] sm:$0xff] %v787
      %852 = vst [vmem:[%s326 + $0x1b8] sm:$0xff] %v788
      %853 = vst [vmem:[%s326 + $0x1c0] sm:$0xff] %v789
      %854 = vst [vmem:[%s326 + $0x1c8] sm:$0xff] %v790
      %855 = vst [vmem:[%s326 + $0x1d0] sm:$0xff] %v791
      %856 = vst [vmem:[%s326 + $0x1d8] sm:$0xff] %v792
      %857 = vst [vmem:[%s326 + $0x1e0] sm:$0xff] %v793
      %858 = vst [vmem:[%s326 + $0x1e8] sm:$0xff] %v794
      %859 = vst [vmem:[%s326 + $0x1f0] sm:$0xff] %v795
      %860 = vst [vmem:[%s326 + $0x1f8] sm:$0xff] %v796
      %s861 = smul.u32 64, %s21
      %p862 = scmp.lt.s32.totalorder %s20, 1
      %s863 = scalar_select %p862, %s20, 1
      %p864 = scmp.lt.s32.totalorder %s861, 63
      %s865 = scalar_select %p864, %s861, 63
      %s866 = smul.addr %s863, 64
      %s867 = sadd.s32 %s865, %s866
      %s868 = smul.addr %s867, 8
      %s869 = scalar_lea.vmem %s5, %s868
      // Predicated region
      $region41: #{resblock_v2_forward.7} parent=39 // pred_check
        %p870 = pneg %p177
      $region42: #{resblock_v2_forward.7} parent=39 // pred_check_branch
        %872 = sbr.rel (%p870) target = $region44
      $region43: #{resblock_v2_forward.7} parent=39 // pred_region
        %s873 = smul.u32 64, %s21
      $region44: #{resblock_v2_forward.7} parent=39 // pred_fallthru
        _
    $region40: #{resblock_v2_forward.7} parent=5 // pred_fallthru
      _
    %p874 = scmp.le.s32.totalorder 2, %s11
    // Predicated region
    $region45: #{resblock_v2_forward.7} parent=5 // pred_check
      %p875 = pneg %p874
    $region46: #{resblock_v2_forward.7} parent=5 // pred_check_branch
      %877 = sbr.rel (%p875) target = $region48
    $region47: #{resblock_v2_forward.7} parent=5 // pred_region
      %s878 = ssub.s32 %s11, 2
      // Predicated region
      $region49: #{resblock_v2_forward.7} parent=47 // pred_check
        %p879 = pneg %p183
      $region50: #{resblock_v2_forward.7} parent=47 // pred_check_branch
        %881 = sbr.rel (%p879) target = $region52
      $region51: #{resblock_v2_forward.7} parent=47 // pred_region
        %s882 = smul.u32 64, %s23
        %p883 = scmp.lt.s32.totalorder %s22, 1
        %s884 = scalar_select %p883, %s22, 1
        %p885 = scmp.lt.s32.totalorder %s882, 63
        %s886 = scalar_select %p885, %s882, 63
        %s887 = smul.addr %s884, 64
        %s888 = sadd.s32 %s886, %s887
        %s889 = smul.addr %s888, 8
        %s890 = scalar_lea.vmem %s5, %s889
      $region52: #{resblock_v2_forward.7} parent=47 // pred_fallthru
        _
    $region48: #{resblock_v2_forward.7} parent=5 // pred_fallthru
      _
  $region6: #{resblock_v2_forward.7} parent=0 // loop_footer
    %s15 = sadd.s32 1, %s11
  $region7: #{resblock_v2_forward.7} parent=0 // loop_footer_branch
    %10 = sbr.rel target = $region3
  $region8: #{resblock_v2_forward.7} parent=0 // loop_exit
    _

</llo_original>
